<compile_context>
chip_gen: v6e
topology: v6e:2x2x1
jax: 0.10.0
libtpu: 0.0.40
codegen_flags: <defaults>
</compile_context>

<pallas_src>
import functools

import jax
import jax.numpy as jnp
from jax import lax
from jax.experimental import pallas as pl
from jax.experimental.pallas import tpu as pltpu

FEAT = 512
BN_EPS = 1e-5
L2_EPS = 1e-12


def _round_up(x, m):
    return (x + m - 1) // m * m


def _vmem_limit_bytes():
    """~Half of physical VMEM for this generation (32 MiB on v7x, 64 MiB on v5e/v6e)."""
    try:
        info = pltpu.get_tpu_info()
        cap = getattr(info, "vmem_capacity_bytes", None)
        if cap:
            return int(min(cap // 2, 96 * 1024 * 1024))
    except Exception:
        pass
    return 32 * 1024 * 1024


def siamese_head_kernel(
    x_ref,            # (tm, 512)  activations from base_model (f32 or bf16)
    w1_ref,           # (512, 512) fc1 weight, (in, out) layout, matmul dtype
    w2_ref,           # (512, 512) fc2 weight with eval-BN folded in, matmul dtype
    w3_ref,           # (512, embP) embedding weight (lane-padded), matmul dtype
    b12_ref,          # (2, 512)   rows: [fc1 bias, fc2 bias (BN-folded)], f32
    b3_ref,           # (1, embP)  embedding bias (lane-padded), f32
    o_ref,            # (tm, embP) L2-normalized embeddings (out dtype)
):
    mm_dtype = w1_ref.dtype
    x = x_ref[...].astype(mm_dtype)

    b12 = b12_ref[...]
    b1 = b12[0:1, :]
    b2 = b12[1:2, :]

    # fc1 + ReLU  (f32 accumulate on the MXU; bias/ReLU in f32 on the VPU)
    h = jnp.dot(x, w1_ref[...], preferred_element_type=jnp.float32) + b1
    h = jnp.maximum(h, 0.0)

    # BatchNorm1d (eval) is folded into w2/b2 by prepare_params().
    # dropout(p=0.3) -> identity at inference.
    # TODO(synk): training-mode dropout (random mask) intentionally omitted (inference).

    # fc2 (BN-folded) + ReLU
    h = jnp.dot(h.astype(mm_dtype), w2_ref[...], preferred_element_type=jnp.float32) + b2
    h = jnp.maximum(h, 0.0)

    # embedding layer (lane-padded columns are zero -> do not affect the norm)
    e = jnp.dot(h.astype(mm_dtype), w3_ref[...], preferred_element_type=jnp.float32) + b3_ref[...]

    # L2 normalize along the feature dim:
    #   e / max(||e||, 1e-12) == e * rsqrt(max(||e||^2, 1e-24))   (EUP rsqrt + VPU multiply)
    ssq = jnp.sum(e * e, axis=-1, keepdims=True)
    inv = lax.rsqrt(jnp.maximum(ssq, L2_EPS * L2_EPS))
    o_ref[...] = (e * inv).astype(o_ref.dtype)


def prepare_params(params, *, matmul_dtype=jnp.bfloat16):
    """One-time parameter preparation (call at load time, NOT per inference call).

    Folds eval-mode BatchNorm1d into fc2, packs the two 512-wide biases, casts the MXU
    operands, and lane-pads the embedding dim to a multiple of 128 for lane-dense stores.
    """
    (w1t, b1, gamma, beta, rmean, rvar, w2t, b2, w3t, b3) = params
    F = w1t.shape[0]
    emb = int(w3t.shape[1])

    # ---- Fold eval-mode BatchNorm1d into fc2 (BN sits between relu(fc1) and fc2) ----
    #   bn(h) = h * scale + shift,  scale = gamma * rsqrt(var + eps), shift = beta - mean * scale
    #   bn(h) @ w2t + b2 = h @ (scale^T * w2t) + (shift @ w2t + b2)        (exact)
    scale = gamma * lax.rsqrt(rvar + BN_EPS)           # (1, F)
    shift = beta - rmean * scale                       # (1, F)
    w2_folded = w2t * scale.reshape(F, 1)              # scale each input row of fc2
    b2_folded = b2 + shift @ w2t                       # (1, F)

    # ---- Lane-pad embedding dim to a multiple of 128 (zero columns; sliced off later) ----
    emb_p = max(128, _round_up(emb, 128))
    if emb_p != emb:
        w3t = jnp.pad(w3t, ((0, 0), (0, emb_p - emb)))
        b3 = jnp.pad(b3, ((0, 0), (0, emb_p - emb)))

    b12 = jnp.concatenate([b1, b2_folded], axis=0).astype(jnp.float32)   # (2, F)

    return {
        "w1": w1t.astype(matmul_dtype),
        "w2": w2_folded.astype(matmul_dtype),
        "w3": w3t.astype(matmul_dtype),
        "b12": b12,
        "b3": b3.astype(jnp.float32),
        "emb": emb,
        "emb_padded": emb_p,
    }


def siamese_head(x, prep, *, tm=1024, out_dtype=None, single_buffer_weights=False):
    """x: (N, 512) features (output of the frozen base_model), f32 or bf16.

    prep: output of prepare_params().
    tm: max batch tile (rows per grid step).  Batch is padded only to a multiple of 8; the
        last tile may be partial (OOB rows are masked by Pallas), so arbitrary N costs no
        wasted work.  The tile is also capped so the grid has >=2 steps (v7x megacore).
    out_dtype: output dtype; defaults to x.dtype (keep activations bf16 end-to-end for the
        HBM-bound regime on v6e/v7x).
    single_buffer_weights: single-buffer the grid-invariant weight blocks (frees VMEM
        headroom on v7x when tm / embedding_dim are grown).
    """
    N, F = x.shape
    assert F == FEAT
    w1, w2, w3, b12, b3 = prep["w1"], prep["w2"], prep["w3"], prep["b12"], prep["b3"]
    emb = prep["emb"]
    emb_p = prep["emb_padded"]
    out_dtype = x.dtype if out_dtype is None else out_dtype

    # ---- Batch padding to the sublane granule only; partial last tile allowed ----
    Np = _round_up(N, 8)
    if Np != N:
        x = jnp.pad(x, ((0, Np - N), (0, 0)))

    tm_eff = min(int(tm), Np)
    if Np >= 16:
        # Keep >=2 grid steps so ("parallel",) can shard the batch across v7x's two TCs.
        tm_eff = min(tm_eff, _round_up(pl.cdiv(Np, 2), 8))
    tm_eff = max(8, _round_up(tm_eff, 8))
    grid = (pl.cdiv(Np, tm_eff),)

    wmode = {"pipeline_mode": pl.Buffered(1)} if single_buffer_weights else {}

    def full(shape):
        # grid-invariant block: fetched once, never re-DMA'd
        return pl.BlockSpec(shape, lambda i: (0, 0), **wmode)

    w_bytes = jnp.dtype(w1.dtype).itemsize
    act_bytes = jnp.dtype(x.dtype).itemsize
    out_bytes = jnp.dtype(out_dtype).itemsize
    cost = pl.CostEstimate(
        flops=2 * Np * F * (2 * F + emb_p),
        transcendentals=Np,                            # one rsqrt per row
        bytes_accessed=(Np * F * act_bytes + Np * emb_p * out_bytes
                        + (2 * F * F + F * emb_p) * w_bytes
                        + (2 * F + emb_p) * 4),
    )

    out = pl.pallas_call(
        siamese_head_kernel,
        out_shape=jax.ShapeDtypeStruct((Np, emb_p), out_dtype),
        grid=grid,
        in_specs=[
            pl.BlockSpec((tm_eff, F), lambda i: (i, 0)),   # x: tiled over batch
            full((F, F)),                                  # fc1 weight
            full((F, F)),                                  # fc2 weight (BN-folded)
            full((F, emb_p)),                              # embedding weight (lane-padded)
            full((2, F)),                                  # packed biases [b1; b2']
            full((1, emb_p)),                              # embedding bias (lane-padded)
        ],
        out_specs=pl.BlockSpec((tm_eff, emb_p), lambda i: (i, 0)),
        compiler_params=pltpu.CompilerParams(
            dimension_semantics=("parallel",),             # megacore-shard the batch grid
            vmem_limit_bytes=_vmem_limit_bytes(),          # generation-dependent budget
        ),
        cost_estimate=cost,
    )(x, w1, w2, w3, b12, b3)

    return out[:N, :emb]


def init_params(key, embedding_dim=FEAT):
    """Deterministic synthetic parameters matching the PyTorch module shapes."""
    ks = jax.random.split(key, 10)

    def linear(kw, kb, fan_in, fan_out):
        bound = 1.0 / jnp.sqrt(fan_in)
        w = jax.random.uniform(kw, (fan_out, fan_in), jnp.float32, -bound, bound)
        b = jax.random.uniform(kb, (fan_out,), jnp.float32, -bound, bound)
        # pre-transpose to (in, out) for the kernel; bias as (1, out) for broadcast
        return w.T, b.reshape(1, fan_out)

    w1t, b1 = linear(ks[0], ks[1], FEAT, FEAT)             # fc1
    w2t, b2 = linear(ks[2], ks[3], FEAT, FEAT)             # fc2
    w3t, b3 = linear(ks[4], ks[5], FEAT, embedding_dim)    # embedding_layer

    # BatchNorm1d(512) eval-mode params/stats (non-trivial to exercise the fold)
    gamma = jax.random.uniform(ks[6], (1, FEAT), jnp.float32, 0.5, 1.5)
    beta = 0.1 * jax.random.normal(ks[7], (1, FEAT), jnp.float32)
    rmean = 0.1 * jax.random.normal(ks[8], (1, FEAT), jnp.float32)
    rvar = jax.random.uniform(ks[9], (1, FEAT), jnp.float32, 0.5, 1.5)

    return (w1t, b1, gamma, beta, rmean, rvar, w2t, b2, w3t, b3)


def reference(x, params):
    """Pure-JAX reference of the same forward pass (un-folded BN) for a sanity check."""
    (w1t, b1, gamma, beta, rmean, rvar, w2t, b2, w3t, b3) = params
    h = jnp.maximum(x @ w1t + b1, 0.0)
    h = (h - rmean) * lax.rsqrt(rvar + BN_EPS) * gamma + beta
    h = jnp.maximum(h @ w2t + b2, 0.0)
    e = h @ w3t + b3
    n = jnp.sqrt(jnp.sum(e * e, axis=1, keepdims=True))
    return e / jnp.maximum(n, L2_EPS)


if __name__ == "__main__":
    key = jax.random.PRNGKey(0)
    k_x, k_p, k_p2, k_x2 = jax.random.split(key, 4)

    N = 200  # deliberately not a tile multiple -> exercises the partial last tile
    params = init_params(k_p, embedding_dim=FEAT)
    # Synthetic (N, 512) features standing in for base_model(x) output.
    x = jax.random.normal(k_x, (N, FEAT), jnp.float32)
    ref = reference(x, params)

    # --- Exact f32 path (2-step grid with a partial last tile) ---
    prep_f32 = prepare_params(params, matmul_dtype=jnp.float32)
    head_f32 = jax.jit(functools.partial(siamese_head, prep=prep_f32, tm=1024,
                                         out_dtype=jnp.float32))
    out = jax.block_until_ready(head_f32(x))
    assert out.shape == (N, FEAT), out.shape
    assert jnp.allclose(out, ref, atol=1e-5, rtol=1e-5), float(jnp.max(jnp.abs(out - ref)))
    assert jnp.allclose(jnp.linalg.norm(out, axis=1), 1.0, atol=1e-5)

    # --- Fast path: bf16 MXU operands AND bf16 activations end-to-end (all generations) ---
    prep_bf16 = prepare_params(params, matmul_dtype=jnp.bfloat16)
    head_bf16 = jax.jit(functools.partial(siamese_head, prep=prep_bf16, tm=1024))
    out_bf16 = jax.block_until_ready(head_bf16(x.astype(jnp.bfloat16)))
    assert out_bf16.shape == (N, FEAT)
    assert out_bf16.dtype == jnp.bfloat16
    err = float(jnp.max(jnp.abs(out_bf16.astype(jnp.float32) - ref)))
    assert err < 5e-2, err

    # --- Lane-padded embedding path: embedding_dim=96 (not a multiple of 128) ---
    params96 = init_params(k_p2, embedding_dim=96)
    x2 = jax.random.normal(k_x2, (40, FEAT), jnp.float32)
    ref96 = reference(x2, params96)
    prep96 = prepare_params(params96, matmul_dtype=jnp.float32)
    out96 = jax.block_until_ready(siamese_head(x2, prep96, out_dtype=jnp.float32))
    assert out96.shape == (40, 96), out96.shape
    assert jnp.allclose(out96, ref96, atol=1e-5, rtol=1e-5), float(jnp.max(jnp.abs(out96 - ref96)))
    assert jnp.allclose(jnp.linalg.norm(out96, axis=1), 1.0, atol=1e-5)

    print("KERNEL_OK")
</pallas_src>

<mosaic_0001>
module attributes {stable_mosaic.version = 11 : i64} {
  func.func @siamese_head_kernel(%arg0: i32, %arg1: memref<104x512xf32, #tpu.memory_space<vmem>>, %arg2: memref<512x512xf32, #tpu.memory_space<vmem>>, %arg3: memref<512x512xf32, #tpu.memory_space<vmem>>, %arg4: memref<512x512xf32, #tpu.memory_space<vmem>>, %arg5: memref<2x512xf32, #tpu.memory_space<vmem>>, %arg6: memref<1x512xf32, #tpu.memory_space<vmem>>, %arg7: memref<104x512xf32, #tpu.memory_space<vmem>>) attributes {dimension_semantics = [#tpu.dimension_semantics<parallel>], iteration_bounds = array<i64: 2>, scalar_prefetch = 0 : i64, scratch_operands = 0 : i64, tpu.core_type = #tpu.core_type<tc>, window_params = [{transform_indices = @transform_0, window_bounds = array<i64: 104, 512>}, {pipeline_mode = #tpu.pipeline_mode<synchronous>, transform_indices = @transform_1, window_bounds = array<i64: 512, 512>}, {pipeline_mode = #tpu.pipeline_mode<synchronous>, transform_indices = @transform_2, window_bounds = array<i64: 512, 512>}, {pipeline_mode = #tpu.pipeline_mode<synchronous>, transform_indices = @transform_3, window_bounds = array<i64: 512, 512>}, {pipeline_mode = #tpu.pipeline_mode<synchronous>, transform_indices = @transform_4, window_bounds = array<i64: 2, 512>}, {pipeline_mode = #tpu.pipeline_mode<synchronous>, transform_indices = @transform_5, window_bounds = array<i64: 1, 512>}, {transform_indices = @transform_6, window_bounds = array<i64: 104, 512>}]} {
    %c0 = arith.constant 0 : index
    %c0_0 = arith.constant 0 : index
    %0 = vector.load %arg1[%c0, %c0_0] : memref<104x512xf32, #tpu.memory_space<vmem>>, vector<104x512xf32>
    %c0_1 = arith.constant 0 : index
    %c0_2 = arith.constant 0 : index
    %1 = vector.load %arg5[%c0_1, %c0_2] : memref<2x512xf32, #tpu.memory_space<vmem>>, vector<2x512xf32>
    %2 = vector.extract_strided_slice %1 {offsets = [0, 0], sizes = [1, 512], strides = [1, 1]} : vector<2x512xf32> to vector<1x512xf32>
    %3 = vector.extract_strided_slice %1 {offsets = [1, 0], sizes = [1, 512], strides = [1, 1]} : vector<2x512xf32> to vector<1x512xf32>
    %c0_3 = arith.constant 0 : index
    %c0_4 = arith.constant 0 : index
    %4 = vector.load %arg2[%c0_3, %c0_4] : memref<512x512xf32, #tpu.memory_space<vmem>>, vector<512x512xf32>
    %cst = arith.constant dense<0.000000e+00> : vector<104x512xf32>
    %5 = tpu.matmul %0, %4, %cst {dimension_numbers = #tpu.dot_dimension_numbers<[1], [0], [0], [1], [0, 0, 1, 1], [], []>} : vector<104x512xf32>, vector<512x512xf32>, vector<104x512xf32> -> vector<104x512xf32>
    %6 = vector.broadcast %2 : vector<1x512xf32> to vector<104x512xf32>
    %7 = arith.addf %5, %6 : vector<104x512xf32>
    %cst_5 = arith.constant 0.000000e+00 : f32
    %8 = vector.broadcast %cst_5 : f32 to vector<104x512xf32>
    %9 = arith.maximumf %7, %8 : vector<104x512xf32>
    %c0_6 = arith.constant 0 : index
    %c0_7 = arith.constant 0 : index
    %10 = vector.load %arg3[%c0_6, %c0_7] : memref<512x512xf32, #tpu.memory_space<vmem>>, vector<512x512xf32>
    %cst_8 = arith.constant dense<0.000000e+00> : vector<104x512xf32>
    %11 = tpu.matmul %9, %10, %cst_8 {dimension_numbers = #tpu.dot_dimension_numbers<[1], [0], [0], [1], [0, 0, 1, 1], [], []>} : vector<104x512xf32>, vector<512x512xf32>, vector<104x512xf32> -> vector<104x512xf32>
    %12 = vector.broadcast %3 : vector<1x512xf32> to vector<104x512xf32>
    %13 = arith.addf %11, %12 : vector<104x512xf32>
    %cst_9 = arith.constant 0.000000e+00 : f32
    %14 = vector.broadcast %cst_9 : f32 to vector<104x512xf32>
    %15 = arith.maximumf %13, %14 : vector<104x512xf32>
    %c0_10 = arith.constant 0 : index
    %c0_11 = arith.constant 0 : index
    %16 = vector.load %arg4[%c0_10, %c0_11] : memref<512x512xf32, #tpu.memory_space<vmem>>, vector<512x512xf32>
    %cst_12 = arith.constant dense<0.000000e+00> : vector<104x512xf32>
    %17 = tpu.matmul %15, %16, %cst_12 {dimension_numbers = #tpu.dot_dimension_numbers<[1], [0], [0], [1], [0, 0, 1, 1], [], []>} : vector<104x512xf32>, vector<512x512xf32>, vector<104x512xf32> -> vector<104x512xf32>
    %c0_13 = arith.constant 0 : index
    %c0_14 = arith.constant 0 : index
    %18 = vector.load %arg6[%c0_13, %c0_14] : memref<1x512xf32, #tpu.memory_space<vmem>>, vector<1x512xf32>
    %19 = vector.broadcast %18 : vector<1x512xf32> to vector<104x512xf32>
    %20 = arith.addf %17, %19 : vector<104x512xf32>
    %21 = arith.mulf %20, %20 : vector<104x512xf32>
    %cst_15 = arith.constant dense<0.000000e+00> : vector<104xf32>
    %22 = vector.multi_reduction <add>, %21, %cst_15 [1] : vector<104x512xf32> to vector<104xf32>
    %23 = vector.shape_cast %22 : vector<104xf32> to vector<104x1xf32>
    %cst_16 = arith.constant 1.000000e-24 : f32
    %24 = vector.broadcast %cst_16 : f32 to vector<104x1xf32>
    %25 = arith.maximumf %23, %24 : vector<104x1xf32>
    %26 = math.rsqrt %25 : vector<104x1xf32>
    %27 = vector.broadcast %26 : vector<104x1xf32> to vector<104x512xf32>
    %28 = arith.mulf %20, %27 : vector<104x512xf32>
    %c0_17 = arith.constant 0 : index
    %c0_18 = arith.constant 0 : index
    %29 = vector.load %arg7[%c0_17, %c0_18] : memref<104x512xf32, #tpu.memory_space<vmem>>, vector<104x512xf32>
    tpu.vector_store %arg7[%c0_17, %c0_18], %28 {strides = array<i32>} : memref<104x512xf32, #tpu.memory_space<vmem>>, vector<104x512xf32>,
    return
  }
  func.func @transform_0(%arg0: i32) -> (i32, i32) {
    %c0_i32 = arith.constant 0 : i32
    %c0_i32_0 = arith.constant 0 : i32
    return %arg0, %c0_i32 : i32, i32
  }
  func.func @transform_1(%arg0: i32) -> (i32, i32) {
    %c0_i32 = arith.constant 0 : i32
    %c0_i32_0 = arith.constant 0 : i32
    %c0_i32_1 = arith.constant 0 : i32
    return %c0_i32, %c0_i32_0 : i32, i32
  }
  func.func @transform_2(%arg0: i32) -> (i32, i32) {
    %c0_i32 = arith.constant 0 : i32
    %c0_i32_0 = arith.constant 0 : i32
    %c0_i32_1 = arith.constant 0 : i32
    return %c0_i32, %c0_i32_0 : i32, i32
  }
  func.func @transform_3(%arg0: i32) -> (i32, i32) {
    %c0_i32 = arith.constant 0 : i32
    %c0_i32_0 = arith.constant 0 : i32
    %c0_i32_1 = arith.constant 0 : i32
    return %c0_i32, %c0_i32_0 : i32, i32
  }
  func.func @transform_4(%arg0: i32) -> (i32, i32) {
    %c0_i32 = arith.constant 0 : i32
    %c0_i32_0 = arith.constant 0 : i32
    %c0_i32_1 = arith.constant 0 : i32
    return %c0_i32, %c0_i32_0 : i32, i32
  }
  func.func @transform_5(%arg0: i32) -> (i32, i32) {
    %c0_i32 = arith.constant 0 : i32
    %c0_i32_0 = arith.constant 0 : i32
    %c0_i32_1 = arith.constant 0 : i32
    return %c0_i32, %c0_i32_0 : i32, i32
  }
  func.func @transform_6(%arg0: i32) -> (i32, i32) {
    %c0_i32 = arith.constant 0 : i32
    %c0_i32_0 = arith.constant 0 : i32
    return %arg0, %c0_i32 : i32, i32
  }
}

</mosaic_0001>

<llo_original>
// kernel: siamese_head.1
$region0: #{siamese_head.1}
  #allocation0 [shape = 'u32[]', space=smem, size = 0x4, offset = 0x4, fixed_abs, tag = 'smem constant byte address 0x4 - core index']
  #allocation1 [shape = 'u32[144,128]{1,0:T(1,128)}', space=vmem, size = 0x12000, scoped, tag = 'internal scratch']
  %s0 = inlined_call_operand.hbm [shape: f32[200,512], index: 0, kind: input, shape index: {}]
  %s1 = inlined_call_operand.hbm [shape: f32[512,512], index: 1, kind: input, shape index: {}]
  %s2 = inlined_call_operand.hbm [shape: f32[512,512], index: 2, kind: input, shape index: {}]
  %s3 = inlined_call_operand.hbm [shape: f32[512,512], index: 3, kind: input, shape index: {}]
  %s4 = inlined_call_operand.hbm [shape: f32[2,512], index: 4, kind: input, shape index: {}]
  %s5 = inlined_call_operand.vmem [shape: f32[1,512], index: 5, kind: input, shape index: {}]
  %s6 = inlined_call_operand.hbm [shape: f32[200,512], index: 6, kind: output, shape index: {}]
  %s7 = sld [smem:[#allocation0]]
  $region77: #{siamese_head.1} parent=0
    _
  %s9 = ssub.s32 1, %s7
  %s10 = scalar_select 0, %s9, %s7
  $region1: #{siamese_head.1} parent=0
    #allocation2 [shape = 'u8[425984]{0}', space=vmem, size = 0x68000, scoped, tag = 'input window, operand 0']
    #allocation3 [shape = 's32[2]{0}', space=sflag, size = 0x8, scoped, tag = 'scoped memory for siamese_head.1']
    #allocation4 [shape = 's32[2]{0}', space=sflag, size = 0x8, scoped, tag = 'scoped memory for siamese_head.1']
    #allocation5 [shape = 'u8[1048576]{0}', space=vmem, size = 0x100000, scoped, tag = 'input window, operand 1, single buffered']
    #allocation6 [shape = 's32[1]{0}', space=sflag, size = 0x4, scoped, tag = 'scoped memory for siamese_head.1']
    #allocation7 [shape = 'u8[1048576]{0}', space=vmem, size = 0x100000, scoped, tag = 'input window, operand 2, single buffered']
    #allocation8 [shape = 'u8[1048576]{0}', space=vmem, size = 0x100000, scoped, tag = 'input window, operand 3, single buffered']
    #allocation9 [shape = 's32[1]{0}', space=sflag, size = 0x4, scoped, tag = 'scoped memory for siamese_head.1']
    #allocation10 [shape = 'u8[4096]{0}', space=vmem, size = 0x1000, scoped, tag = 'input window, operand 4, single buffered']
    #allocation11 [shape = 'u8[425984]{0}', space=vmem, size = 0x68000, scoped, tag = 'output window, operand 0']
    %11 = vsyncpa [#allocation3], 0
    %s12 = scalar_lea.sflag [#allocation3], 1
    %13 = vsyncpa %s12, 0
    %14 = vsyncpa [#allocation6], 0
    %15 = vsyncpa [#allocation9], 0
    %16 = vsyncpa [#allocation4], 0
    %s17 = scalar_lea.sflag [#allocation4], 1
    %18 = vsyncpa %s17, 0
    loop: start=0, step=1, limit=4
    $region2: #{siamese_head.1} parent=1 // loop_pre_header
      _
    $region3: #{siamese_head.1} parent=1 // loop_header
      %s20 = sphi 0, %s24
      %p21 = scmp.ge.s32.totalorder %s20, 4
      %s30 = sphi 0, %s32
      %s33 = sphi 0, %s30
      %s34 = sphi 0, %s33
      %s50 = sphi 0, %s34
      %s54 = sphi 0, %s54
      %s56 = sphi 0, %s54
      %s57 = sphi 0, %s56
      %s71 = sphi 0, %s57
      %s75 = sphi 0, %s75
      %s77 = sphi 0, %s75
      %s78 = sphi 0, %s77
      %s92 = sphi 0, %s78
      %s96 = sphi 0, %s96
      %s98 = sphi 0, %s96
      %s99 = sphi 0, %s98
      %s113 = sphi 0, %s99
      %s117 = sphi 0, %s117
      %s119 = sphi 0, %s117
      %s120 = sphi 0, %s119
      %s134 = sphi 0, %s120
      %s138 = sphi 0, %s138
      %s140 = sphi 0, %s138
      %s141 = sphi 0, %s140
      %s155 = sphi 0, %s141
      %s161 = sphi 0, %s163
      %s164 = sphi 0, %s161
      %s165 = sphi 0, %s164
      %s181 = sphi 0, %s165
    $region4: #{siamese_head.1} parent=1 // loop_header_branch
      %23 = sbr.rel (%p21) target = $region8
    $region5: #{siamese_head.1} parent=1 // loop_body
      %s25 = ssub.s32 %s20, 1
      %s26 = ssub.s32 %s20, 2
      %s27 = sadd.s32 %s20, 1
      %s28 = ssub.s32 %s20, %s27
      %p29 = scmp.eq.s32.totalorder %s28, 0
      %s31 = sadd.s32 %s30, 1
      %s32 = scalar_select %p29, %s30, %s31
      %p35 = pneg %p29
      %p36 = scmp.eq.s32.totalorder %s20, 1
      %p37 = por %p35, %p36
      %p38 = scmp.ne.s32.totalorder %s30, %s33
      %p39 = scmp.eq.s32.totalorder %s20, 0
      %p40 = por %p38, %p39
      %p41 = scmp.ne.s32.totalorder %s30, %s33
      %p42 = scmp.eq.s32.totalorder %s25, 1
      %p43 = por %p41, %p42
      %p44 = scmp.ne.s32.totalorder %s33, %s34
      %p45 = scmp.eq.s32.totalorder %s25, 0
      %p46 = por %p44, %p45
      %p47 = scmp.ne.s32.totalorder %s33, %s34
      %p48 = scmp.eq.s32.totalorder %s26, 1
      %p49 = por %p47, %p48
      %p51 = scmp.ne.s32.totalorder %s34, %s50
      %p52 = scmp.eq.s32.totalorder %s26, 0
      %p53 = por %p51, %p52
      %s55 = sadd.s32 %s54, 1
      %p58 = scmp.eq.s32.totalorder %s20, 1
      %p59 = scmp.ne.s32.totalorder %s54, %s56
      %p60 = scmp.eq.s32.totalorder %s20, 0
      %p61 = por %p59, %p60
      %p62 = scmp.ne.s32.totalorder %s54, %s56
      %p63 = scmp.eq.s32.totalorder %s25, 1
      %p64 = por %p62, %p63
      %p65 = scmp.ne.s32.totalorder %s56, %s57
      %p66 = scmp.eq.s32.totalorder %s25, 0
      %p67 = por %p65, %p66
      %p68 = scmp.ne.s32.totalorder %s56, %s57
      %p69 = scmp.eq.s32.totalorder %s26, 1
      %p70 = por %p68, %p69
      %p72 = scmp.ne.s32.totalorder %s57, %s71
      %p73 = scmp.eq.s32.totalorder %s26, 0
      %p74 = por %p72, %p73
      %s76 = sadd.s32 %s75, 1
      %p79 = scmp.eq.s32.totalorder %s20, 1
      %p80 = scmp.ne.s32.totalorder %s75, %s77
      %p81 = scmp.eq.s32.totalorder %s20, 0
      %p82 = por %p80, %p81
      %p83 = scmp.ne.s32.totalorder %s75, %s77
      %p84 = scmp.eq.s32.totalorder %s25, 1
      %p85 = por %p83, %p84
      %p86 = scmp.ne.s32.totalorder %s77, %s78
      %p87 = scmp.eq.s32.totalorder %s25, 0
      %p88 = por %p86, %p87
      %p89 = scmp.ne.s32.totalorder %s77, %s78
      %p90 = scmp.eq.s32.totalorder %s26, 1
      %p91 = por %p89, %p90
      %p93 = scmp.ne.s32.totalorder %s78, %s92
      %p94 = scmp.eq.s32.totalorder %s26, 0
      %p95 = por %p93, %p94
      %s97 = sadd.s32 %s96, 1
      %p100 = scmp.eq.s32.totalorder %s20, 1
      %p101 = scmp.ne.s32.totalorder %s96, %s98
      %p102 = scmp.eq.s32.totalorder %s20, 0
      %p103 = por %p101, %p102
      %p104 = scmp.ne.s32.totalorder %s96, %s98
      %p105 = scmp.eq.s32.totalorder %s25, 1
      %p106 = por %p104, %p105
      %p107 = scmp.ne.s32.totalorder %s98, %s99
      %p108 = scmp.eq.s32.totalorder %s25, 0
      %p109 = por %p107, %p108
      %p110 = scmp.ne.s32.totalorder %s98, %s99
      %p111 = scmp.eq.s32.totalorder %s26, 1
      %p112 = por %p110, %p111
      %p114 = scmp.ne.s32.totalorder %s99, %s113
      %p115 = scmp.eq.s32.totalorder %s26, 0
      %p116 = por %p114, %p115
      %s118 = sadd.s32 %s117, 1
      %p121 = scmp.eq.s32.totalorder %s20, 1
      %p122 = scmp.ne.s32.totalorder %s117, %s119
      %p123 = scmp.eq.s32.totalorder %s20, 0
      %p124 = por %p122, %p123
      %p125 = scmp.ne.s32.totalorder %s117, %s119
      %p126 = scmp.eq.s32.totalorder %s25, 1
      %p127 = por %p125, %p126
      %p128 = scmp.ne.s32.totalorder %s119, %s120
      %p129 = scmp.eq.s32.totalorder %s25, 0
      %p130 = por %p128, %p129
      %p131 = scmp.ne.s32.totalorder %s119, %s120
      %p132 = scmp.eq.s32.totalorder %s26, 1
      %p133 = por %p131, %p132
      %p135 = scmp.ne.s32.totalorder %s120, %s134
      %p136 = scmp.eq.s32.totalorder %s26, 0
      %p137 = por %p135, %p136
      %s139 = sadd.s32 %s138, 1
      %p142 = scmp.eq.s32.totalorder %s20, 1
      %p143 = scmp.ne.s32.totalorder %s138, %s140
      %p144 = scmp.eq.s32.totalorder %s20, 0
      %p145 = por %p143, %p144
      %p146 = scmp.ne.s32.totalorder %s138, %s140
      %p147 = scmp.eq.s32.totalorder %s25, 1
      %p148 = por %p146, %p147
      %p149 = scmp.ne.s32.totalorder %s140, %s141
      %p150 = scmp.eq.s32.totalorder %s25, 0
      %p151 = por %p149, %p150
      %p152 = scmp.ne.s32.totalorder %s140, %s141
      %p153 = scmp.eq.s32.totalorder %s26, 1
      %p154 = por %p152, %p153
      %p156 = scmp.ne.s32.totalorder %s141, %s155
      %p157 = scmp.eq.s32.totalorder %s26, 0
      %p158 = por %p156, %p157
      %s159 = ssub.s32 %s20, %s27
      %p160 = scmp.eq.s32.totalorder %s159, 0
      %s162 = sadd.s32 %s161, 1
      %s163 = scalar_select %p160, %s161, %s162
      %p166 = pneg %p160
      %p167 = scmp.eq.s32.totalorder %s20, 1
      %p168 = por %p166, %p167
      %p169 = scmp.ne.s32.totalorder %s161, %s164
      %p170 = scmp.eq.s32.totalorder %s20, 0
      %p171 = por %p169, %p170
      %p172 = scmp.ne.s32.totalorder %s161, %s164
      %p173 = scmp.eq.s32.totalorder %s25, 1
      %p174 = por %p172, %p173
      %p175 = scmp.ne.s32.totalorder %s164, %s165
      %p176 = scmp.eq.s32.totalorder %s25, 0
      %p177 = por %p175, %p176
      %p178 = scmp.ne.s32.totalorder %s164, %s165
      %p179 = scmp.eq.s32.totalorder %s26, 1
      %p180 = por %p178, %p179
      %p182 = scmp.ne.s32.totalorder %s165, %s181
      %p183 = scmp.eq.s32.totalorder %s26, 0
      %p184 = por %p182, %p183
      %p185 = scmp.le.s32.totalorder 1, %s20
      %p186 = scmp.lt.s32.totalorder %s20, 3
      %p187 = pnand %p185, %p186
      %p188 = pneg %p187
      // Predicated region
      $region9: #{siamese_head.1} parent=5 // pred_check
        _
      $region10: #{siamese_head.1} parent=5 // pred_check_branch
        %190 = sbr.rel (%p187) target = $region12
      $region11: #{siamese_head.1} parent=5 // pred_region
        %s191 = ssub.s32 %s20, 1
        // Predicated region
        $region13: #{siamese_head.1} parent=11 // pred_check
          %p192 = pneg %p67
        $region14: #{siamese_head.1} parent=11 // pred_check_branch
          %194 = sbr.rel (%p192) target = $region16
        $region15: #{siamese_head.1} parent=11 // pred_region
          %s196 = ssub.s32 32768, 32768
          %197 = vsyncadd [#allocation6], %s196
          %s198 = sshll.u32 [#allocation5], 4
          %s199 = int_to_ptr.vmem [resolvable:$true] %s198
          %204 = dma.hbm_to_vmem [thread:$0]  %s1, 32768, %s199, [#allocation6], 512, 512, 32
        $region16: #{siamese_head.1} parent=11 // pred_fallthru
          _
        // Predicated region
        $region17: #{siamese_head.1} parent=11 // pred_check
          %p205 = pneg %p88
        $region18: #{siamese_head.1} parent=11 // pred_check_branch
          %207 = sbr.rel (%p205) target = $region20
        $region19: #{siamese_head.1} parent=11 // pred_region
          %s209 = ssub.s32 32768, 32768
          %210 = vsyncadd [#allocation6], %s209
          %s211 = sshll.u32 [#allocation7], 4
          %s212 = int_to_ptr.vmem [resolvable:$true] %s211
          %217 = dma.hbm_to_vmem [thread:$0]  %s2, 32768, %s212, [#allocation6], 512, 512, 32
        $region20: #{siamese_head.1} parent=11 // pred_fallthru
          _
        // Predicated region
        $region21: #{siamese_head.1} parent=11 // pred_check
          %p218 = pneg %p109
        $region22: #{siamese_head.1} parent=11 // pred_check_branch
          %220 = sbr.rel (%p218) target = $region24
        $region23: #{siamese_head.1} parent=11 // pred_region
          %s222 = ssub.s32 32768, 32768
          %223 = vsyncadd [#allocation9], %s222
          %s224 = sshll.u32 [#allocation8], 4
          %s225 = int_to_ptr.vmem [resolvable:$true] %s224
          %230 = dma.hbm_to_vmem [thread:$0]  %s3, 32768, %s225, [#allocation9], 512, 512, 32
        $region24: #{siamese_head.1} parent=11 // pred_fallthru
          _
        // Predicated region
        $region25: #{siamese_head.1} parent=11 // pred_check
          %p231 = pneg %p130
        $region26: #{siamese_head.1} parent=11 // pred_check_branch
          %233 = sbr.rel (%p231) target = $region28
        $region27: #{siamese_head.1} parent=11 // pred_region
          %s235 = ssub.s32 128, 128
          %236 = vsyncadd [#allocation9], %s235
          %s238 = sshll.u32 [#allocation10], 4
          %s239 = int_to_ptr.vmem [resolvable:$true] %s238
          %241 = dma.hbm_to_vmem [thread:$0]  %s4, 128, %s239, [#allocation9]
        $region28: #{siamese_head.1} parent=11 // pred_fallthru
          _
        // Predicated region
        $region29: #{siamese_head.1} parent=11 // pred_check
          %p242 = pneg %p151
        $region30: #{siamese_head.1} parent=11 // pred_check_branch
          %244 = sbr.rel (%p242) target = $region32
        $region31: #{siamese_head.1} parent=11 // pred_region
          _
        $region32: #{siamese_head.1} parent=11 // pred_fallthru
          _
      $region12: #{siamese_head.1} parent=5 // pred_fallthru
        _
      %p245 = scmp.lt.s32.totalorder %s20, 2
      // Predicated region
      $region33: #{siamese_head.1} parent=5 // pred_check
        %p246 = pneg %p245
      $region34: #{siamese_head.1} parent=5 // pred_check_branch
        %248 = sbr.rel (%p246) target = $region36
      $region35: #{siamese_head.1} parent=5 // pred_region
        // Predicated region
        $region37: #{siamese_head.1} parent=35 // pred_check
          %p249 = pneg %p40
        $region38: #{siamese_head.1} parent=35 // pred_check_branch
          %251 = sbr.rel (%p249) target = $region40
        $region39: #{siamese_head.1} parent=35 // pred_region
          %s252 = sand.u32 %s30, 1
          %s253 = scalar_lea.sflag [#allocation3], %s252
          %s254 = sand.u32 %s30, 1
          %s255 = smul.addr %s254, 416
          %s256 = scalar_lea.vmem [#allocation2], %s255
          %s257 = smul.u32 13, %s20
          %s258 = ssub.s32 25, %s257
          %p259 = scmp.lt.s32.totalorder %s258, 13
          %s260 = scalar_select %p259, %s258, 13
          %s261 = smul.u32 128, %s260
          %s262 = smul.u32 %s261, 4
          %s264 = ssub.s32 6656, %s262
          %265 = vsyncadd %s253, %s264
          %p266 = scmp.ne.s32.totalorder 0, %s262
          %s267 = smul.addr %s257, 4
          %s268 = smul.addr %s267, 128
          %s269 = scalar_lea.hbm %s0, %s268
          %s270 = smul.u32 32, %s260
          %s271 = sshll.u32 %s256, 4
          %s272 = int_to_ptr.vmem [resolvable:$true] %s271
          %s273 = sshll.u32 %s270, 4
          %277 = dma.hbm_to_vmem [thread:$0]  (%p266), %s269, %s273, %s272, %s253, 512, 512, 32
        $region40: #{siamese_head.1} parent=35 // pred_fallthru
          _
      $region36: #{siamese_head.1} parent=5 // pred_fallthru
        _
      %p278 = scmp.le.s32.totalorder 1, %s20
      %p279 = scmp.lt.s32.totalorder %s20, 3
      %p280 = pnand %p278, %p279
      %p281 = pneg %p280
      // Predicated region
      $region41: #{siamese_head.1} parent=5 // pred_check
        _
      $region42: #{siamese_head.1} parent=5 // pred_check_branch
        %283 = sbr.rel (%p280) target = $region44
      $region43: #{siamese_head.1} parent=5 // pred_region
        %s284 = ssub.s32 %s20, 1
        %s285 = sand.u32 %s33, 1
        %s286 = scalar_lea.sflag [#allocation3], %s285
        %s287 = sand.u32 %s33, 1
        %s288 = smul.addr %s287, 416
        %s289 = scalar_lea.vmem [#allocation2], %s288
        // Predicated region
        $region45: #{siamese_head.1} parent=43 // pred_check
          %p290 = pneg %p46
        $region46: #{siamese_head.1} parent=43 // pred_check_branch
          %292 = sbr.rel (%p290) target = $region48
        $region47: #{siamese_head.1} parent=43 // pred_region
          %293 = dma.done %s286, 6656
        $region48: #{siamese_head.1} parent=43 // pred_fallthru
          _
        // Predicated region
        $region49: #{siamese_head.1} parent=43 // pred_check
          %p294 = pneg %p67
        $region50: #{siamese_head.1} parent=43 // pred_check_branch
          %296 = sbr.rel (%p294) target = $region52
        $region51: #{siamese_head.1} parent=43 // pred_region
          %297 = dma.done [#allocation6], 32768
        $region52: #{siamese_head.1} parent=43 // pred_fallthru
          _
        // Predicated region
        $region53: #{siamese_head.1} parent=43 // pred_check
          %p298 = pneg %p88
        $region54: #{siamese_head.1} parent=43 // pred_check_branch
          %300 = sbr.rel (%p298) target = $region56
        $region55: #{siamese_head.1} parent=43 // pred_region
          %301 = dma.done [#allocation6], 32768
        $region56: #{siamese_head.1} parent=43 // pred_fallthru
          _
        // Predicated region
        $region57: #{siamese_head.1} parent=43 // pred_check
          %p302 = pneg %p109
        $region58: #{siamese_head.1} parent=43 // pred_check_branch
          %304 = sbr.rel (%p302) target = $region60
        $region59: #{siamese_head.1} parent=43 // pred_region
          %305 = dma.done [#allocation9], 32768
        $region60: #{siamese_head.1} parent=43 // pred_fallthru
          _
        // Predicated region
        $region61: #{siamese_head.1} parent=43 // pred_check
          %p306 = pneg %p130
        $region62: #{siamese_head.1} parent=43 // pred_check_branch
          %308 = sbr.rel (%p306) target = $region64
        $region63: #{siamese_head.1} parent=43 // pred_region
          %309 = dma.done [#allocation9], 128
        $region64: #{siamese_head.1} parent=43 // pred_fallthru
          _
        %s310 = sand.u32 %s33, 1
        %s311 = scalar_lea.sflag [#allocation3], %s310
        %s312 = sand.u32 %s33, 1
        %s313 = smul.addr %s312, 416
        %s314 = scalar_lea.vmem [#allocation2], %s313
        %p315 = pneg %p46
        %p316 = pneg %p43
        %p317 = pneg %p67
        %p318 = pneg %p64
        %p319 = pneg %p88
        %p320 = pneg %p85
        %p321 = pneg %p109
        %p322 = pneg %p106
        %p323 = pneg %p130
        %p324 = pneg %p127
        %p325 = pneg %p151
        %p326 = pneg %p148
        %p327 = pneg %p177
        %p328 = pneg %p174
        %s329 = sand.u32 %s164, 1
        %s330 = scalar_lea.sflag [#allocation4], %s329
        %s331 = sand.u32 %s164, 1
        %s332 = smul.addr %s331, 416
        %s333 = scalar_lea.vmem [#allocation11], %s332
        %s334 = smul.u32 13, %s25
        %s335 = ssub.s32 25, %s334
        %p336 = scmp.lt.s32.totalorder %s335, 13
        %s337 = scalar_select %p336, %s335, 13
        %s338 = smul.u32 128, %s337
        %s339 = smul.u32 %s338, 4
        %s340 = smul.u32 13, %s25
        %s341 = ssub.s32 25, %s340
        %p342 = scmp.lt.s32.totalorder %s341, 13
        %s343 = scalar_select %p342, %s341, 13
        %s344 = smul.u32 128, %s343
        %s345 = smul.u32 %s344, 4
        %v346 = vld [vmem:[%s289] sm:$0xff]
        %v347 = vld [vmem:[%s289 + $0x8] sm:$0xff]
        %v348 = vld [vmem:[%s289 + $0x10] sm:$0xff]
        %v349 = vld [vmem:[%s289 + $0x18] sm:$0xff]
        %v350 = vld [vmem:[%s289 + $0x20] sm:$0xff]
        %v351 = vld [vmem:[%s289 + $0x28] sm:$0xff]
        %v352 = vld [vmem:[%s289 + $0x30] sm:$0xff]
        %v353 = vld [vmem:[%s289 + $0x38] sm:$0xff]
        %v354 = vld [vmem:[%s289 + $0x40] sm:$0xff]
        %v355 = vld [vmem:[%s289 + $0x48] sm:$0xff]
        %v356 = vld [vmem:[%s289 + $0x50] sm:$0xff]
        %v357 = vld [vmem:[%s289 + $0x58] sm:$0xff]
        %v358 = vld [vmem:[%s289 + $0x60] sm:$0xff]
        %v359 = vld [vmem:[%s289 + $0x68] sm:$0xff]
        %v360 = vld [vmem:[%s289 + $0x70] sm:$0xff]
        %v361 = vld [vmem:[%s289 + $0x78] sm:$0xff]
        %v362 = vld [vmem:[%s289 + $0x80] sm:$0xff]
        %v363 = vld [vmem:[%s289 + $0x88] sm:$0xff]
        %v364 = vld [vmem:[%s289 + $0x90] sm:$0xff]
        %v365 = vld [vmem:[%s289 + $0x98] sm:$0xff]
        %v366 = vld [vmem:[%s289 + $0xa0] sm:$0xff]
        %v367 = vld [vmem:[%s289 + $0xa8] sm:$0xff]
        %v368 = vld [vmem:[%s289 + $0xb0] sm:$0xff]
        %v369 = vld [vmem:[%s289 + $0xb8] sm:$0xff]
        %v370 = vld [vmem:[%s289 + $0xc0] sm:$0xff]
        %v371 = vld [vmem:[%s289 + $0xc8] sm:$0xff]
        %v372 = vld [vmem:[%s289 + $0xd0] sm:$0xff]
        %v373 = vld [vmem:[%s289 + $0xd8] sm:$0xff]
        %v374 = vld [vmem:[%s289 + $0xe0] sm:$0xff]
        %v375 = vld [vmem:[%s289 + $0xe8] sm:$0xff]
        %v376 = vld [vmem:[%s289 + $0xf0] sm:$0xff]
        %v377 = vld [vmem:[%s289 + $0xf8] sm:$0xff]
        %v378 = vld [vmem:[%s289 + $0x100] sm:$0xff]
        %v379 = vld [vmem:[%s289 + $0x108] sm:$0xff]
        %v380 = vld [vmem:[%s289 + $0x110] sm:$0xff]
        %v381 = vld [vmem:[%s289 + $0x118] sm:$0xff]
        %v382 = vld [vmem:[%s289 + $0x120] sm:$0xff]
        %v383 = vld [vmem:[%s289 + $0x128] sm:$0xff]
        %v384 = vld [vmem:[%s289 + $0x130] sm:$0xff]
        %v385 = vld [vmem:[%s289 + $0x138] sm:$0xff]
        %v386 = vld [vmem:[%s289 + $0x140] sm:$0xff]
        %v387 = vld [vmem:[%s289 + $0x148] sm:$0xff]
        %v388 = vld [vmem:[%s289 + $0x150] sm:$0xff]
        %v389 = vld [vmem:[%s289 + $0x158] sm:$0xff]
        %v390 = vld [vmem:[%s289 + $0x160] sm:$0xff]
        %v391 = vld [vmem:[%s289 + $0x168] sm:$0xff]
        %v392 = vld [vmem:[%s289 + $0x170] sm:$0xff]
        %v393 = vld [vmem:[%s289 + $0x178] sm:$0xff]
        %v394 = vld [vmem:[%s289 + $0x180] sm:$0xff]
        %v395 = vld [vmem:[%s289 + $0x188] sm:$0xff]
        %v396 = vld [vmem:[%s289 + $0x190] sm:$0xff]
        %v397 = vld [vmem:[%s289 + $0x198] sm:$0xff]
        %v398 = vld [vmem:[#allocation10] sm:$0xff]
        %v399 = vld [vmem:[#allocation5] sm:$0xff]
        %v400 = vld [vmem:[#allocation5 + $0x8] sm:$0xff]
        %v401 = vld [vmem:[#allocation5 + $0x10] sm:$0xff]
        %v402 = vld [vmem:[#allocation5 + $0x18] sm:$0xff]
        %v403 = vld [vmem:[#allocation5 + $0x20] sm:$0xff]
        %v404 = vld [vmem:[#allocation5 + $0x28] sm:$0xff]
        %v405 = vld [vmem:[#allocation5 + $0x30] sm:$0xff]
        %v406 = vld [vmem:[#allocation5 + $0x38] sm:$0xff]
        %v407 = vld [vmem:[#allocation5 + $0x40] sm:$0xff]
        %v408 = vld [vmem:[#allocation5 + $0x48] sm:$0xff]
        %v409 = vld [vmem:[#allocation5 + $0x50] sm:$0xff]
        %v410 = vld [vmem:[#allocation5 + $0x58] sm:$0xff]
        %v411 = vld [vmem:[#allocation5 + $0x60] sm:$0xff]
        %v412 = vld [vmem:[#allocation5 + $0x68] sm:$0xff]
        %v413 = vld [vmem:[#allocation5 + $0x70] sm:$0xff]
        %v414 = vld [vmem:[#allocation5 + $0x78] sm:$0xff]
        %v415 = vld [vmem:[#allocation5 + $0x80] sm:$0xff]
        %v416 = vld [vmem:[#allocation5 + $0x88] sm:$0xff]
        %v417 = vld [vmem:[#allocation5 + $0x90] sm:$0xff]
        %v418 = vld [vmem:[#allocation5 + $0x98] sm:$0xff]
        %v419 = vld [vmem:[#allocation5 + $0xa0] sm:$0xff]
        %v420 = vld [vmem:[#allocation5 + $0xa8] sm:$0xff]
        %v421 = vld [vmem:[#allocation5 + $0xb0] sm:$0xff]
        %v422 = vld [vmem:[#allocation5 + $0xb8] sm:$0xff]
        %v423 = vld [vmem:[#allocation5 + $0xc0] sm:$0xff]
        %v424 = vld [vmem:[#allocation5 + $0xc8] sm:$0xff]
        %v425 = vld [vmem:[#allocation5 + $0xd0] sm:$0xff]
        %v426 = vld [vmem:[#allocation5 + $0xd8] sm:$0xff]
        %v427 = vld [vmem:[#allocation5 + $0xe0] sm:$0xff]
        %v428 = vld [vmem:[#allocation5 + $0xe8] sm:$0xff]
        %v429 = vld [vmem:[#allocation5 + $0xf0] sm:$0xff]
        %v430 = vld [vmem:[#allocation5 + $0xf8] sm:$0xff]
        %v431 = vld [vmem:[#allocation5 + $0x100] sm:$0xff]
        %v432 = vld [vmem:[#allocation5 + $0x108] sm:$0xff]
        %v433 = vld [vmem:[#allocation5 + $0x110] sm:$0xff]
        %v434 = vld [vmem:[#allocation5 + $0x118] sm:$0xff]
        %v435 = vld [vmem:[#allocation5 + $0x120] sm:$0xff]
        %v436 = vld [vmem:[#allocation5 + $0x128] sm:$0xff]
        %v437 = vld [vmem:[#allocation5 + $0x130] sm:$0xff]
        %v438 = vld [vmem:[#allocation5 + $0x138] sm:$0xff]
        %v439 = vld [vmem:[#allocation5 + $0x140] sm:$0xff]
        %v440 = vld [vmem:[#allocation5 + $0x148] sm:$0xff]
        %v441 = vld [vmem:[#allocation5 + $0x150] sm:$0xff]
        %v442 = vld [vmem:[#allocation5 + $0x158] sm:$0xff]
        %v443 = vld [vmem:[#allocation5 + $0x160] sm:$0xff]
        %v444 = vld [vmem:[#allocation5 + $0x168] sm:$0xff]
        %v445 = vld [vmem:[#allocation5 + $0x170] sm:$0xff]
        %v446 = vld [vmem:[#allocation5 + $0x178] sm:$0xff]
        %v447 = vld [vmem:[#allocation5 + $0x180] sm:$0xff]
        %v448 = vld [vmem:[#allocation5 + $0x188] sm:$0xff]
        %v449 = vld [vmem:[#allocation5 + $0x190] sm:$0xff]
        %v450 = vld [vmem:[#allocation5 + $0x198] sm:$0xff]
        %v451 = vld [vmem:[#allocation5 + $0x1a0] sm:$0xff]
        %v452 = vld [vmem:[#allocation5 + $0x1a8] sm:$0xff]
        %v453 = vld [vmem:[#allocation5 + $0x1b0] sm:$0xff]
        %v454 = vld [vmem:[#allocation5 + $0x1b8] sm:$0xff]
        %v455 = vld [vmem:[#allocation5 + $0x1c0] sm:$0xff]
        %v456 = vld [vmem:[#allocation5 + $0x1c8] sm:$0xff]
        %v457 = vld [vmem:[#allocation5 + $0x1d0] sm:$0xff]
        %v458 = vld [vmem:[#allocation5 + $0x1d8] sm:$0xff]
        %v459 = vld [vmem:[#allocation5 + $0x1e0] sm:$0xff]
        %v460 = vld [vmem:[#allocation5 + $0x1e8] sm:$0xff]
        %v461 = vld [vmem:[#allocation5 + $0x1f0] sm:$0xff]
        %v462 = vld [vmem:[#allocation5 + $0x1f8] sm:$0xff]
        %v463 = vld [vmem:[#allocation5 + $0x200] sm:$0xff]
        %v464 = vld [vmem:[#allocation5 + $0x208] sm:$0xff]
        %v465 = vld [vmem:[#allocation5 + $0x210] sm:$0xff]
        %v466 = vld [vmem:[#allocation5 + $0x218] sm:$0xff]
        %v467 = vld [vmem:[#allocation5 + $0x220] sm:$0xff]
        %v468 = vld [vmem:[#allocation5 + $0x228] sm:$0xff]
        %v469 = vld [vmem:[#allocation5 + $0x230] sm:$0xff]
        %v470 = vld [vmem:[#allocation5 + $0x238] sm:$0xff]
        %v471 = vld [vmem:[#allocation5 + $0x240] sm:$0xff]
        %v472 = vld [vmem:[#allocation5 + $0x248] sm:$0xff]
        %v473 = vld [vmem:[#allocation5 + $0x250] sm:$0xff]
        %v474 = vld [vmem:[#allocation5 + $0x258] sm:$0xff]
        %v475 = vld [vmem:[#allocation5 + $0x260] sm:$0xff]
        %v476 = vld [vmem:[#allocation5 + $0x268] sm:$0xff]
        %v477 = vld [vmem:[#allocation5 + $0x270] sm:$0xff]
        %v478 = vld [vmem:[#allocation5 + $0x278] sm:$0xff]
        %v479 = vld [vmem:[#allocation5 + $0x280] sm:$0xff]
        %v480 = vld [vmem:[#allocation5 + $0x288] sm:$0xff]
        %v481 = vld [vmem:[#allocation5 + $0x290] sm:$0xff]
        %v482 = vld [vmem:[#allocation5 + $0x298] sm:$0xff]
        %v483 = vld [vmem:[#allocation5 + $0x2a0] sm:$0xff]
        %v484 = vld [vmem:[#allocation5 + $0x2a8] sm:$0xff]
        %v485 = vld [vmem:[#allocation5 + $0x2b0] sm:$0xff]
        %v486 = vld [vmem:[#allocation5 + $0x2b8] sm:$0xff]
        %v487 = vld [vmem:[#allocation5 + $0x2c0] sm:$0xff]
        %v488 = vld [vmem:[#allocation5 + $0x2c8] sm:$0xff]
        %v489 = vld [vmem:[#allocation5 + $0x2d0] sm:$0xff]
        %v490 = vld [vmem:[#allocation5 + $0x2d8] sm:$0xff]
        %v491 = vld [vmem:[#allocation5 + $0x2e0] sm:$0xff]
        %v492 = vld [vmem:[#allocation5 + $0x2e8] sm:$0xff]
        %v493 = vld [vmem:[#allocation5 + $0x2f0] sm:$0xff]
        %v494 = vld [vmem:[#allocation5 + $0x2f8] sm:$0xff]
        %v495 = vld [vmem:[#allocation5 + $0x300] sm:$0xff]
        %v496 = vld [vmem:[#allocation5 + $0x308] sm:$0xff]
        %v497 = vld [vmem:[#allocation5 + $0x310] sm:$0xff]
        %v498 = vld [vmem:[#allocation5 + $0x318] sm:$0xff]
        %v499 = vld [vmem:[#allocation5 + $0x320] sm:$0xff]
        %v500 = vld [vmem:[#allocation5 + $0x328] sm:$0xff]
        %v501 = vld [vmem:[#allocation5 + $0x330] sm:$0xff]
        %v502 = vld [vmem:[#allocation5 + $0x338] sm:$0xff]
        %v503 = vld [vmem:[#allocation5 + $0x340] sm:$0xff]
        %v504 = vld [vmem:[#allocation5 + $0x348] sm:$0xff]
        %v505 = vld [vmem:[#allocation5 + $0x350] sm:$0xff]
        %v506 = vld [vmem:[#allocation5 + $0x358] sm:$0xff]
        %v507 = vld [vmem:[#allocation5 + $0x360] sm:$0xff]
        %v508 = vld [vmem:[#allocation5 + $0x368] sm:$0xff]
        %v509 = vld [vmem:[#allocation5 + $0x370] sm:$0xff]
        %v510 = vld [vmem:[#allocation5 + $0x378] sm:$0xff]
        %v511 = vld [vmem:[#allocation5 + $0x380] sm:$0xff]
        %v512 = vld [vmem:[#allocation5 + $0x388] sm:$0xff]
        %v513 = vld [vmem:[#allocation5 + $0x390] sm:$0xff]
        %v514 = vld [vmem:[#allocation5 + $0x398] sm:$0xff]
        %v515 = vld [vmem:[#allocation5 + $0x3a0] sm:$0xff]
        %v516 = vld [vmem:[#allocation5 + $0x3a8] sm:$0xff]
        %v517 = vld [vmem:[#allocation5 + $0x3b0] sm:$0xff]
        %v518 = vld [vmem:[#allocation5 + $0x3b8] sm:$0xff]
        %v519 = vld [vmem:[#allocation5 + $0x3c0] sm:$0xff]
        %v520 = vld [vmem:[#allocation5 + $0x3c8] sm:$0xff]
        %v521 = vld [vmem:[#allocation5 + $0x3d0] sm:$0xff]
        %v522 = vld [vmem:[#allocation5 + $0x3d8] sm:$0xff]
        %v523 = vld [vmem:[#allocation5 + $0x3e0] sm:$0xff]
        %v524 = vld [vmem:[#allocation5 + $0x3e8] sm:$0xff]
        %v525 = vld [vmem:[#allocation5 + $0x3f0] sm:$0xff]
        %v526 = vld [vmem:[#allocation5 + $0x3f8] sm:$0xff]
        %v527 = vld [vmem:[#allocation5 + $0x400] sm:$0xff]
        %v528 = vld [vmem:[#allocation5 + $0x408] sm:$0xff]
        %v529 = vld [vmem:[#allocation5 + $0x410] sm:$0xff]
        %v530 = vld [vmem:[#allocation5 + $0x418] sm:$0xff]
        %v531 = vld [vmem:[#allocation5 + $0x420] sm:$0xff]
        %v532 = vld [vmem:[#allocation5 + $0x428] sm:$0xff]
        %v533 = vld [vmem:[#allocation5 + $0x430] sm:$0xff]
        %v534 = vld [vmem:[#allocation5 + $0x438] sm:$0xff]
        %v535 = vld [vmem:[#allocation5 + $0x440] sm:$0xff]
        %v536 = vld [vmem:[#allocation5 + $0x448] sm:$0xff]
        %v537 = vld [vmem:[#allocation5 + $0x450] sm:$0xff]
        %v538 = vld [vmem:[#allocation5 + $0x458] sm:$0xff]
        %v539 = vld [vmem:[#allocation5 + $0x460] sm:$0xff]
        %v540 = vld [vmem:[#allocation5 + $0x468] sm:$0xff]
        %v541 = vld [vmem:[#allocation5 + $0x470] sm:$0xff]
        %v542 = vld [vmem:[#allocation5 + $0x478] sm:$0xff]
        %v543 = vld [vmem:[#allocation5 + $0x480] sm:$0xff]
        %v544 = vld [vmem:[#allocation5 + $0x488] sm:$0xff]
        %v545 = vld [vmem:[#allocation5 + $0x490] sm:$0xff]
        %v546 = vld [vmem:[#allocation5 + $0x498] sm:$0xff]
        %v547 = vld [vmem:[#allocation5 + $0x4a0] sm:$0xff]
        %v548 = vld [vmem:[#allocation5 + $0x4a8] sm:$0xff]
        %v549 = vld [vmem:[#allocation5 + $0x4b0] sm:$0xff]
        %v550 = vld [vmem:[#allocation5 + $0x4b8] sm:$0xff]
        %v551 = vld [vmem:[#allocation5 + $0x4c0] sm:$0xff]
        %v552 = vld [vmem:[#allocation5 + $0x4c8] sm:$0xff]
        %v553 = vld [vmem:[#allocation5 + $0x4d0] sm:$0xff]
        %v554 = vld [vmem:[#allocation5 + $0x4d8] sm:$0xff]
        %v555 = vld [vmem:[#allocation5 + $0x4e0] sm:$0xff]
        %v556 = vld [vmem:[#allocation5 + $0x4e8] sm:$0xff]
        %v557 = vld [vmem:[#allocation5 + $0x4f0] sm:$0xff]
        %v558 = vld [vmem:[#allocation5 + $0x4f8] sm:$0xff]
        %v559 = vld [vmem:[#allocation5 + $0x500] sm:$0xff]
        %v560 = vld [vmem:[#allocation5 + $0x508] sm:$0xff]
        %v561 = vld [vmem:[#allocation5 + $0x510] sm:$0xff]
        %v562 = vld [vmem:[#allocation5 + $0x518] sm:$0xff]
        %v563 = vld [vmem:[#allocation5 + $0x520] sm:$0xff]
        %v564 = vld [vmem:[#allocation5 + $0x528] sm:$0xff]
        %v565 = vld [vmem:[#allocation5 + $0x530] sm:$0xff]
        %v566 = vld [vmem:[#allocation5 + $0x538] sm:$0xff]
        %v567 = vld [vmem:[#allocation5 + $0x540] sm:$0xff]
        %v568 = vld [vmem:[#allocation5 + $0x548] sm:$0xff]
        %v569 = vld [vmem:[#allocation5 + $0x550] sm:$0xff]
        %v570 = vld [vmem:[#allocation5 + $0x558] sm:$0xff]
        %v571 = vld [vmem:[#allocation5 + $0x560] sm:$0xff]
        %v572 = vld [vmem:[#allocation5 + $0x568] sm:$0xff]
        %v573 = vld [vmem:[#allocation5 + $0x570] sm:$0xff]
        %v574 = vld [vmem:[#allocation5 + $0x578] sm:$0xff]
        %v575 = vld [vmem:[#allocation5 + $0x580] sm:$0xff]
        %v576 = vld [vmem:[#allocation5 + $0x588] sm:$0xff]
        %v577 = vld [vmem:[#allocation5 + $0x590] sm:$0xff]
        %v578 = vld [vmem:[#allocation5 + $0x598] sm:$0xff]
        %v579 = vld [vmem:[#allocation5 + $0x5a0] sm:$0xff]
        %v580 = vld [vmem:[#allocation5 + $0x5a8] sm:$0xff]
        %v581 = vld [vmem:[#allocation5 + $0x5b0] sm:$0xff]
        %v582 = vld [vmem:[#allocation5 + $0x5b8] sm:$0xff]
        %v583 = vld [vmem:[#allocation5 + $0x5c0] sm:$0xff]
        %v584 = vld [vmem:[#allocation5 + $0x5c8] sm:$0xff]
        %v585 = vld [vmem:[#allocation5 + $0x5d0] sm:$0xff]
        %v586 = vld [vmem:[#allocation5 + $0x5d8] sm:$0xff]
        %v587 = vld [vmem:[#allocation5 + $0x5e0] sm:$0xff]
        %v588 = vld [vmem:[#allocation5 + $0x5e8] sm:$0xff]
        %v589 = vld [vmem:[#allocation5 + $0x5f0] sm:$0xff]
        %v590 = vld [vmem:[#allocation5 + $0x5f8] sm:$0xff]
        %v591 = vld [vmem:[#allocation5 + $0x600] sm:$0xff]
        %v592 = vld [vmem:[#allocation5 + $0x608] sm:$0xff]
        %v593 = vld [vmem:[#allocation5 + $0x610] sm:$0xff]
        %v594 = vld [vmem:[#allocation5 + $0x618] sm:$0xff]
        %v595 = vld [vmem:[#allocation5 + $0x620] sm:$0xff]
        %v596 = vld [vmem:[#allocation5 + $0x628] sm:$0xff]
        %v597 = vld [vmem:[#allocation5 + $0x630] sm:$0xff]
        %v598 = vld [vmem:[#allocation5 + $0x638] sm:$0xff]
        %v599 = vld [vmem:[#allocation5 + $0x640] sm:$0xff]
        %v600 = vld [vmem:[#allocation5 + $0x648] sm:$0xff]
        %v601 = vld [vmem:[#allocation5 + $0x650] sm:$0xff]
        %v602 = vld [vmem:[#allocation5 + $0x658] sm:$0xff]
        %v603 = vld [vmem:[#allocation5 + $0x660] sm:$0xff]
        %v604 = vld [vmem:[#allocation5 + $0x668] sm:$0xff]
        %v605 = vld [vmem:[#allocation5 + $0x670] sm:$0xff]
        %v606 = vld [vmem:[#allocation5 + $0x678] sm:$0xff]
        %v607 = vld [vmem:[#allocation5 + $0x680] sm:$0xff]
        %v608 = vld [vmem:[#allocation5 + $0x688] sm:$0xff]
        %v609 = vld [vmem:[#allocation5 + $0x690] sm:$0xff]
        %v610 = vld [vmem:[#allocation5 + $0x698] sm:$0xff]
        %v611 = vld [vmem:[#allocation5 + $0x6a0] sm:$0xff]
        %v612 = vld [vmem:[#allocation5 + $0x6a8] sm:$0xff]
        %v613 = vld [vmem:[#allocation5 + $0x6b0] sm:$0xff]
        %v614 = vld [vmem:[#allocation5 + $0x6b8] sm:$0xff]
        %v615 = vld [vmem:[#allocation5 + $0x6c0] sm:$0xff]
        %v616 = vld [vmem:[#allocation5 + $0x6c8] sm:$0xff]
        %v617 = vld [vmem:[#allocation5 + $0x6d0] sm:$0xff]
        %v618 = vld [vmem:[#allocation5 + $0x6d8] sm:$0xff]
        %v619 = vld [vmem:[#allocation5 + $0x6e0] sm:$0xff]
        %v620 = vld [vmem:[#allocation5 + $0x6e8] sm:$0xff]
        %v621 = vld [vmem:[#allocation5 + $0x6f0] sm:$0xff]
        %v622 = vld [vmem:[#allocation5 + $0x6f8] sm:$0xff]
        %v623 = vld [vmem:[#allocation5 + $0x700] sm:$0xff]
        %v624 = vld [vmem:[#allocation5 + $0x708] sm:$0xff]
        %v625 = vld [vmem:[#allocation5 + $0x710] sm:$0xff]
        %v626 = vld [vmem:[#allocation5 + $0x718] sm:$0xff]
        %v627 = vld [vmem:[#allocation5 + $0x720] sm:$0xff]
        %v628 = vld [vmem:[#allocation5 + $0x728] sm:$0xff]
        %v629 = vld [vmem:[#allocation5 + $0x730] sm:$0xff]
        %v630 = vld [vmem:[#allocation5 + $0x738] sm:$0xff]
        %v631 = vld [vmem:[#allocation5 + $0x740] sm:$0xff]
        %v632 = vld [vmem:[#allocation5 + $0x748] sm:$0xff]
        %v633 = vld [vmem:[#allocation5 + $0x750] sm:$0xff]
        %v634 = vld [vmem:[#allocation5 + $0x758] sm:$0xff]
        %v635 = vld [vmem:[#allocation5 + $0x760] sm:$0xff]
        %v636 = vld [vmem:[#allocation5 + $0x768] sm:$0xff]
        %v637 = vld [vmem:[#allocation5 + $0x770] sm:$0xff]
        %v638 = vld [vmem:[#allocation5 + $0x778] sm:$0xff]
        %v639 = vld [vmem:[#allocation5 + $0x780] sm:$0xff]
        %v640 = vld [vmem:[#allocation5 + $0x788] sm:$0xff]
        %v641 = vld [vmem:[#allocation5 + $0x790] sm:$0xff]
        %v642 = vld [vmem:[#allocation5 + $0x798] sm:$0xff]
        %v643 = vld [vmem:[#allocation5 + $0x7a0] sm:$0xff]
        %v644 = vld [vmem:[#allocation5 + $0x7a8] sm:$0xff]
        %v645 = vld [vmem:[#allocation5 + $0x7b0] sm:$0xff]
        %v646 = vld [vmem:[#allocation5 + $0x7b8] sm:$0xff]
        %v647 = vld [vmem:[#allocation5 + $0x7c0] sm:$0xff]
        %v648 = vld [vmem:[#allocation5 + $0x7c8] sm:$0xff]
        %v649 = vld [vmem:[#allocation5 + $0x7d0] sm:$0xff]
        %v650 = vld [vmem:[#allocation5 + $0x7d8] sm:$0xff]
        %v651 = vld [vmem:[#allocation5 + $0x7e0] sm:$0xff]
        %v652 = vld [vmem:[#allocation5 + $0x7e8] sm:$0xff]
        %v653 = vld [vmem:[#allocation5 + $0x7f0] sm:$0xff]
        %v654 = vld [vmem:[#allocation5 + $0x7f8] sm:$0xff]
        %v656 = vlaneseq
        %v657 = vshrl.u32 %v656, 7
        %v658 = vsub.s32 0, %v657
        %v659 = vrot.slane %v398, %v658
        %v660 = vlaneseq
        %v661 = vshrl.u32 %v660, 7
        %v662 = vsub.s32 2, %v661
        %v663 = vrot.slane %v398, %v662
        %v664 = vlaneseq
        %v665 = vshrl.u32 %v664, 7
        %v666 = vsub.s32 4, %v665
        %v667 = vrot.slane %v398, %v666
        %v668 = vlaneseq
        %v669 = vshrl.u32 %v668, 7
        %v670 = vsub.s32 6, %v669
        %v671 = vrot.slane %v398, %v670
        %v676 = vlaneseq
        %v677 = vshrl.u32 %v676, 7
        %v678 = vsub.s32 0, %v677
        %v679 = vrot.slane %v659, %v678
        %v680 = vlaneseq
        %v681 = vshrl.u32 %v680, 7
        %v682 = vsub.s32 0, %v681
        %v683 = vrot.slane %v663, %v682
        %v684 = vlaneseq
        %v685 = vshrl.u32 %v684, 7
        %v686 = vsub.s32 0, %v685
        %v687 = vrot.slane %v667, %v686
        %v688 = vlaneseq
        %v689 = vshrl.u32 %v688, 7
        %v690 = vsub.s32 0, %v689
        %v691 = vrot.slane %v671, %v690
        %692 = vmatprep.subr.mxu0 %v460
        %693 = vmatpush1.msra.mxu0 %v459
        %694 = vmatprep.subr.mxu0 %v456
        %695 = vmatpush1.msra.mxu0 %v455
        %696 = vmatprep.subr.mxu0 %v452
        %697 = vmatpush1.msra.mxu0 %v451
        %698 = vmatprep.subr.mxu0 %v448
        %699 = vmatpush1.msra.mxu0 %v447
        %700 = vmatprep.subr.mxu0 %v444
        %701 = vmatpush1.msra.mxu0 %v443
        %702 = vmatprep.subr.mxu0 %v440
        %703 = vmatpush1.msra.mxu0 %v439
        %704 = vmatprep.subr.mxu0 %v436
        %705 = vmatpush1.msra.mxu0 %v435
        %706 = vmatprep.subr.mxu0 %v432
        %707 = vmatpush1.msra.mxu0 %v431
        %708 = vmatprep.subr.mxu0 %v428
        %709 = vmatpush1.msra.mxu0 %v427
        %710 = vmatprep.subr.mxu0 %v424
        %711 = vmatpush1.msra.mxu0 %v423
        %712 = vmatprep.subr.mxu0 %v420
        %713 = vmatpush1.msra.mxu0 %v419
        %714 = vmatprep.subr.mxu0 %v416
        %715 = vmatpush1.msra.mxu0 %v415
        %716 = vmatprep.subr.mxu0 %v412
        %717 = vmatpush1.msra.mxu0 %v411
        %718 = vmatprep.subr.mxu0 %v408
        %719 = vmatpush1.msra.mxu0 %v407
        %720 = vmatprep.subr.mxu0 %v404
        %721 = vmatpush1.msra.mxu0 %v403
        %722 = vmatprep.subr.mxu0 %v400
        %723 = vmatpush1.msra.mxu0 %v399
        %724 = vmatprep.subr.mxu0 %v524
        %725 = vmatpush2.msra.mxu0 %v523
        %726 = vmatprep.subr.mxu0 %v520
        %727 = vmatpush2.msra.mxu0 %v519
        %728 = vmatprep.subr.mxu0 %v516
        %729 = vmatpush2.msra.mxu0 %v515
        %730 = vmatprep.subr.mxu0 %v512
        %731 = vmatpush2.msra.mxu0 %v511
        %732 = vmatprep.subr.mxu0 %v508
        %733 = vmatpush2.msra.mxu0 %v507
        %734 = vmatprep.subr.mxu0 %v504
        %735 = vmatpush2.msra.mxu0 %v503
        %736 = vmatprep.subr.mxu0 %v500
        %737 = vmatpush2.msra.mxu0 %v499
        %738 = vmatprep.subr.mxu0 %v496
        %739 = vmatpush2.msra.mxu0 %v495
        %740 = vmatprep.subr.mxu0 %v492
        %741 = vmatpush2.msra.mxu0 %v491
        %742 = vmatprep.subr.mxu0 %v488
        %743 = vmatpush2.msra.mxu0 %v487
        %744 = vmatprep.subr.mxu0 %v484
        %745 = vmatpush2.msra.mxu0 %v483
        %746 = vmatprep.subr.mxu0 %v480
        %747 = vmatpush2.msra.mxu0 %v479
        %748 = vmatprep.subr.mxu0 %v476
        %749 = vmatpush2.msra.mxu0 %v475
        %750 = vmatprep.subr.mxu0 %v472
        %751 = vmatpush2.msra.mxu0 %v471
        %752 = vmatprep.subr.mxu0 %v468
        %753 = vmatpush2.msra.mxu0 %v467
        %754 = vmatprep.subr.mxu0 %v464
        %755 = vmatpush2.msra.mxu0 %v463
        %756 = vmatprep.mubr.f32.mxu0 %v347
        %757 = vmatmul.mubr.f32.gmra.mxu0 %v346
        %v758 = vpop.f32.mrf.mxu0
        %v759 = vadd.f32 %v679, %v758
        %v760 = vpop.f32.mrf.mxu0
        %v761 = vadd.f32 %v683, %v760
        %762 = vmatprep.mubr.f32.mxu0 %v351
        %763 = vmatmul.mubr.f32.gmra.mxu0 %v350
        %v764 = vpop.f32.mrf.mxu0
        %v765 = vadd.f32 %v679, %v764
        %v766 = vpop.f32.mrf.mxu0
        %v767 = vadd.f32 %v683, %v766
        %768 = vmatprep.mubr.f32.mxu0 %v355
        %769 = vmatmul.mubr.f32.gmra.mxu0 %v354
        %v770 = vpop.f32.mrf.mxu0
        %v771 = vadd.f32 %v679, %v770
        %v772 = vpop.f32.mrf.mxu0
        %v773 = vadd.f32 %v683, %v772
        %774 = vmatprep.mubr.f32.mxu0 %v359
        %775 = vmatmul.mubr.f32.gmra.mxu0 %v358
        %v776 = vpop.f32.mrf.mxu0
        %v777 = vadd.f32 %v679, %v776
        %v778 = vpop.f32.mrf.mxu0
        %v779 = vadd.f32 %v683, %v778
        %780 = vmatprep.mubr.f32.mxu0 %v363
        %781 = vmatmul.mubr.f32.gmra.mxu0 %v362
        %v782 = vpop.f32.mrf.mxu0
        %v783 = vadd.f32 %v679, %v782
        %v784 = vpop.f32.mrf.mxu0
        %v785 = vadd.f32 %v683, %v784
        %786 = vmatprep.mubr.f32.mxu0 %v367
        %787 = vmatmul.mubr.f32.gmra.mxu0 %v366
        %v788 = vpop.f32.mrf.mxu0
        %v789 = vadd.f32 %v679, %v788
        %v790 = vpop.f32.mrf.mxu0
        %v791 = vadd.f32 %v683, %v790
        %792 = vmatprep.mubr.f32.mxu0 %v371
        %793 = vmatmul.mubr.f32.gmra.mxu0 %v370
        %v794 = vpop.f32.mrf.mxu0
        %v795 = vadd.f32 %v679, %v794
        %v796 = vpop.f32.mrf.mxu0
        %v797 = vadd.f32 %v683, %v796
        %798 = vmatprep.mubr.f32.mxu0 %v375
        %799 = vmatmul.mubr.f32.gmra.mxu0 %v374
        %v800 = vpop.f32.mrf.mxu0
        %v801 = vadd.f32 %v679, %v800
        %v802 = vpop.f32.mrf.mxu0
        %v803 = vadd.f32 %v683, %v802
        %804 = vmatprep.mubr.f32.mxu0 %v379
        %805 = vmatmul.mubr.f32.gmra.mxu0 %v378
        %v806 = vpop.f32.mrf.mxu0
        %v807 = vadd.f32 %v679, %v806
        %v808 = vpop.f32.mrf.mxu0
        %v809 = vadd.f32 %v683, %v808
        %810 = vmatprep.mubr.f32.mxu0 %v383
        %811 = vmatmul.mubr.f32.gmra.mxu0 %v382
        %v812 = vpop.f32.mrf.mxu0
        %v813 = vadd.f32 %v679, %v812
        %v814 = vpop.f32.mrf.mxu0
        %v815 = vadd.f32 %v683, %v814
        %816 = vmatprep.mubr.f32.mxu0 %v387
        %817 = vmatmul.mubr.f32.gmra.mxu0 %v386
        %v818 = vpop.f32.mrf.mxu0
        %v819 = vadd.f32 %v679, %v818
        %v820 = vpop.f32.mrf.mxu0
        %v821 = vadd.f32 %v683, %v820
        %822 = vmatprep.mubr.f32.mxu0 %v391
        %823 = vmatmul.mubr.f32.gmra.mxu0 %v390
        %v824 = vpop.f32.mrf.mxu0
        %v825 = vadd.f32 %v679, %v824
        %v826 = vpop.f32.mrf.mxu0
        %v827 = vadd.f32 %v683, %v826
        %828 = vmatprep.mubr.f32.mxu0 %v395
        %829 = vmatmul.mubr.f32.gmra.mxu0 %v394
        %v830 = vpop.f32.mrf.mxu0
        %v831 = vadd.f32 %v679, %v830
        %v832 = vpop.f32.mrf.mxu0
        %v833 = vadd.f32 %v683, %v832
        %834 = vdwg.mxu0
        %835 = vmatprep.subr.mxu0 %v588
        %836 = vmatpush1.msra.mxu0 %v587
        %837 = vmatprep.subr.mxu0 %v584
        %838 = vmatpush1.msra.mxu0 %v583
        %839 = vmatprep.subr.mxu0 %v580
        %840 = vmatpush1.msra.mxu0 %v579
        %841 = vmatprep.subr.mxu0 %v576
        %842 = vmatpush1.msra.mxu0 %v575
        %843 = vmatprep.subr.mxu0 %v572
        %844 = vmatpush1.msra.mxu0 %v571
        %845 = vmatprep.subr.mxu0 %v568
        %846 = vmatpush1.msra.mxu0 %v567
        %847 = vmatprep.subr.mxu0 %v564
        %848 = vmatpush1.msra.mxu0 %v563
        %849 = vmatprep.subr.mxu0 %v560
        %850 = vmatpush1.msra.mxu0 %v559
        %851 = vmatprep.subr.mxu0 %v556
        %852 = vmatpush1.msra.mxu0 %v555
        %853 = vmatprep.subr.mxu0 %v552
        %854 = vmatpush1.msra.mxu0 %v551
        %855 = vmatprep.subr.mxu0 %v548
        %856 = vmatpush1.msra.mxu0 %v547
        %857 = vmatprep.subr.mxu0 %v544
        %858 = vmatpush1.msra.mxu0 %v543
        %859 = vmatprep.subr.mxu0 %v540
        %860 = vmatpush1.msra.mxu0 %v539
        %861 = vmatprep.subr.mxu0 %v536
        %862 = vmatpush1.msra.mxu0 %v535
        %863 = vmatprep.subr.mxu0 %v532
        %864 = vmatpush1.msra.mxu0 %v531
        %865 = vmatprep.subr.mxu0 %v528
        %866 = vmatpush1.msra.mxu0 %v527
        %867 = vmatprep.subr.mxu0 %v652
        %868 = vmatpush2.msra.mxu0 %v651
        %869 = vmatprep.subr.mxu0 %v648
        %870 = vmatpush2.msra.mxu0 %v647
        %871 = vmatprep.subr.mxu0 %v644
        %872 = vmatpush2.msra.mxu0 %v643
        %873 = vmatprep.subr.mxu0 %v640
        %874 = vmatpush2.msra.mxu0 %v639
        %875 = vmatprep.subr.mxu0 %v636
        %876 = vmatpush2.msra.mxu0 %v635
        %877 = vmatprep.subr.mxu0 %v632
        %878 = vmatpush2.msra.mxu0 %v631
        %879 = vmatprep.subr.mxu0 %v628
        %880 = vmatpush2.msra.mxu0 %v627
        %881 = vmatprep.subr.mxu0 %v624
        %882 = vmatpush2.msra.mxu0 %v623
        %883 = vmatprep.subr.mxu0 %v620
        %884 = vmatpush2.msra.mxu0 %v619
        %885 = vmatprep.subr.mxu0 %v616
        %886 = vmatpush2.msra.mxu0 %v615
        %887 = vmatprep.subr.mxu0 %v612
        %888 = vmatpush2.msra.mxu0 %v611
        %889 = vmatprep.subr.mxu0 %v608
        %890 = vmatpush2.msra.mxu0 %v607
        %891 = vmatprep.subr.mxu0 %v604
        %892 = vmatpush2.msra.mxu0 %v603
        %893 = vmatprep.subr.mxu0 %v600
        %894 = vmatpush2.msra.mxu0 %v599
        %895 = vmatprep.subr.mxu0 %v596
        %896 = vmatpush2.msra.mxu0 %v595
        %897 = vmatprep.subr.mxu0 %v592
        %898 = vmatpush2.msra.mxu0 %v591
        %899 = vmatprep.mubr.f32.mxu0 %v349
        %900 = vmatmul.mubr.f32.gmra.mxu0 %v348
        %v901 = vpop.f32.mrf.mxu0
        %v902 = vadd.f32 %v759, %v901
        %v903 = vpop.f32.mrf.mxu0
        %v904 = vadd.f32 %v761, %v903
        %905 = vmatprep.mubr.f32.mxu0 %v353
        %906 = vmatmul.mubr.f32.gmra.mxu0 %v352
        %v907 = vpop.f32.mrf.mxu0
        %v908 = vadd.f32 %v765, %v907
        %v909 = vpop.f32.mrf.mxu0
        %v910 = vadd.f32 %v767, %v909
        %911 = vmatprep.mubr.f32.mxu0 %v357
        %912 = vmatmul.mubr.f32.gmra.mxu0 %v356
        %v913 = vpop.f32.mrf.mxu0
        %v914 = vadd.f32 %v771, %v913
        %v915 = vpop.f32.mrf.mxu0
        %v916 = vadd.f32 %v773, %v915
        %917 = vmatprep.mubr.f32.mxu0 %v361
        %918 = vmatmul.mubr.f32.gmra.mxu0 %v360
        %v919 = vpop.f32.mrf.mxu0
        %v920 = vadd.f32 %v777, %v919
        %v921 = vpop.f32.mrf.mxu0
        %v922 = vadd.f32 %v779, %v921
        %923 = vmatprep.mubr.f32.mxu0 %v365
        %924 = vmatmul.mubr.f32.gmra.mxu0 %v364
        %v925 = vpop.f32.mrf.mxu0
        %v926 = vadd.f32 %v783, %v925
        %v927 = vpop.f32.mrf.mxu0
        %v928 = vadd.f32 %v785, %v927
        %929 = vmatprep.mubr.f32.mxu0 %v369
        %930 = vmatmul.mubr.f32.gmra.mxu0 %v368
        %v931 = vpop.f32.mrf.mxu0
        %v932 = vadd.f32 %v789, %v931
        %v933 = vpop.f32.mrf.mxu0
        %v934 = vadd.f32 %v791, %v933
        %935 = vmatprep.mubr.f32.mxu0 %v373
        %936 = vmatmul.mubr.f32.gmra.mxu0 %v372
        %v937 = vpop.f32.mrf.mxu0
        %v938 = vadd.f32 %v795, %v937
        %v939 = vpop.f32.mrf.mxu0
        %v940 = vadd.f32 %v797, %v939
        %941 = vmatprep.mubr.f32.mxu0 %v377
        %942 = vmatmul.mubr.f32.gmra.mxu0 %v376
        %v943 = vpop.f32.mrf.mxu0
        %v944 = vadd.f32 %v801, %v943
        %v945 = vpop.f32.mrf.mxu0
        %v946 = vadd.f32 %v803, %v945
        %947 = vmatprep.mubr.f32.mxu0 %v381
        %948 = vmatmul.mubr.f32.gmra.mxu0 %v380
        %v949 = vpop.f32.mrf.mxu0
        %v950 = vadd.f32 %v807, %v949
        %v951 = vpop.f32.mrf.mxu0
        %v952 = vadd.f32 %v809, %v951
        %953 = vmatprep.mubr.f32.mxu0 %v385
        %954 = vmatmul.mubr.f32.gmra.mxu0 %v384
        %v955 = vpop.f32.mrf.mxu0
        %v956 = vadd.f32 %v813, %v955
        %v957 = vpop.f32.mrf.mxu0
        %v958 = vadd.f32 %v815, %v957
        %959 = vmatprep.mubr.f32.mxu0 %v389
        %960 = vmatmul.mubr.f32.gmra.mxu0 %v388
        %v961 = vpop.f32.mrf.mxu0
        %v962 = vadd.f32 %v819, %v961
        %v963 = vpop.f32.mrf.mxu0
        %v964 = vadd.f32 %v821, %v963
        %965 = vmatprep.mubr.f32.mxu0 %v393
        %966 = vmatmul.mubr.f32.gmra.mxu0 %v392
        %v967 = vpop.f32.mrf.mxu0
        %v968 = vadd.f32 %v825, %v967
        %v969 = vpop.f32.mrf.mxu0
        %v970 = vadd.f32 %v827, %v969
        %971 = vmatprep.mubr.f32.mxu0 %v397
        %972 = vmatmul.mubr.f32.gmra.mxu0 %v396
        %v973 = vpop.f32.mrf.mxu0
        %v974 = vadd.f32 %v831, %v973
        %v975 = vpop.f32.mrf.mxu0
        %v976 = vadd.f32 %v833, %v975
        %977 = vdwg.mxu0
        %978 = vmatprep.subr.mxu0 %v462
        %979 = vmatpush1.msra.mxu0 %v461
        %980 = vmatprep.subr.mxu0 %v458
        %981 = vmatpush1.msra.mxu0 %v457
        %982 = vmatprep.subr.mxu0 %v454
        %983 = vmatpush1.msra.mxu0 %v453
        %984 = vmatprep.subr.mxu0 %v450
        %985 = vmatpush1.msra.mxu0 %v449
        %986 = vmatprep.subr.mxu0 %v446
        %987 = vmatpush1.msra.mxu0 %v445
        %988 = vmatprep.subr.mxu0 %v442
        %989 = vmatpush1.msra.mxu0 %v441
        %990 = vmatprep.subr.mxu0 %v438
        %991 = vmatpush1.msra.mxu0 %v437
        %992 = vmatprep.subr.mxu0 %v434
        %993 = vmatpush1.msra.mxu0 %v433
        %994 = vmatprep.subr.mxu0 %v430
        %995 = vmatpush1.msra.mxu0 %v429
        %996 = vmatprep.subr.mxu0 %v426
        %997 = vmatpush1.msra.mxu0 %v425
        %998 = vmatprep.subr.mxu0 %v422
        %999 = vmatpush1.msra.mxu0 %v421
        %1000 = vmatprep.subr.mxu0 %v418
        %1001 = vmatpush1.msra.mxu0 %v417
        %1002 = vmatprep.subr.mxu0 %v414
        %1003 = vmatpush1.msra.mxu0 %v413
        %1004 = vmatprep.subr.mxu0 %v410
        %1005 = vmatpush1.msra.mxu0 %v409
        %1006 = vmatprep.subr.mxu0 %v406
        %1007 = vmatpush1.msra.mxu0 %v405
        %1008 = vmatprep.subr.mxu0 %v402
        %1009 = vmatpush1.msra.mxu0 %v401
        %1010 = vmatprep.subr.mxu0 %v526
        %1011 = vmatpush2.msra.mxu0 %v525
        %1012 = vmatprep.subr.mxu0 %v522
        %1013 = vmatpush2.msra.mxu0 %v521
        %1014 = vmatprep.subr.mxu0 %v518
        %1015 = vmatpush2.msra.mxu0 %v517
        %1016 = vmatprep.subr.mxu0 %v514
        %1017 = vmatpush2.msra.mxu0 %v513
        %1018 = vmatprep.subr.mxu0 %v510
        %1019 = vmatpush2.msra.mxu0 %v509
        %1020 = vmatprep.subr.mxu0 %v506
        %1021 = vmatpush2.msra.mxu0 %v505
        %1022 = vmatprep.subr.mxu0 %v502
        %1023 = vmatpush2.msra.mxu0 %v501
        %1024 = vmatprep.subr.mxu0 %v498
        %1025 = vmatpush2.msra.mxu0 %v497
        %1026 = vmatprep.subr.mxu0 %v494
        %1027 = vmatpush2.msra.mxu0 %v493
        %1028 = vmatprep.subr.mxu0 %v490
        %1029 = vmatpush2.msra.mxu0 %v489
        %1030 = vmatprep.subr.mxu0 %v486
        %1031 = vmatpush2.msra.mxu0 %v485
        %1032 = vmatprep.subr.mxu0 %v482
        %1033 = vmatpush2.msra.mxu0 %v481
        %1034 = vmatprep.subr.mxu0 %v478
        %1035 = vmatpush2.msra.mxu0 %v477
        %1036 = vmatprep.subr.mxu0 %v474
        %1037 = vmatpush2.msra.mxu0 %v473
        %1038 = vmatprep.subr.mxu0 %v470
        %1039 = vmatpush2.msra.mxu0 %v469
        %1040 = vmatprep.subr.mxu0 %v466
        %1041 = vmatpush2.msra.mxu0 %v465
        %1042 = vmatprep.mubr.f32.mxu0 %v347
        %1043 = vmatmul.mubr.f32.gmra.mxu0 %v346
        %v1044 = vpop.f32.mrf.mxu0
        %v1045 = vadd.f32 %v687, %v1044
        %v1046 = vpop.f32.mrf.mxu0
        %v1047 = vadd.f32 %v691, %v1046
        %1048 = vmatprep.mubr.f32.mxu0 %v351
        %1049 = vmatmul.mubr.f32.gmra.mxu0 %v350
        %v1050 = vpop.f32.mrf.mxu0
        %v1051 = vadd.f32 %v687, %v1050
        %v1052 = vpop.f32.mrf.mxu0
        %v1053 = vadd.f32 %v691, %v1052
        %1054 = vmatprep.mubr.f32.mxu0 %v355
        %1055 = vmatmul.mubr.f32.gmra.mxu0 %v354
        %v1056 = vpop.f32.mrf.mxu0
        %v1057 = vadd.f32 %v687, %v1056
        %v1058 = vpop.f32.mrf.mxu0
        %v1059 = vadd.f32 %v691, %v1058
        %1060 = vmatprep.mubr.f32.mxu0 %v359
        %1061 = vmatmul.mubr.f32.gmra.mxu0 %v358
        %v1062 = vpop.f32.mrf.mxu0
        %v1063 = vadd.f32 %v687, %v1062
        %v1064 = vpop.f32.mrf.mxu0
        %v1065 = vadd.f32 %v691, %v1064
        %1066 = vmatprep.mubr.f32.mxu0 %v363
        %1067 = vmatmul.mubr.f32.gmra.mxu0 %v362
        %v1068 = vpop.f32.mrf.mxu0
        %v1069 = vadd.f32 %v687, %v1068
        %v1070 = vpop.f32.mrf.mxu0
        %v1071 = vadd.f32 %v691, %v1070
        %1072 = vmatprep.mubr.f32.mxu0 %v367
        %1073 = vmatmul.mubr.f32.gmra.mxu0 %v366
        %v1074 = vpop.f32.mrf.mxu0
        %v1075 = vadd.f32 %v687, %v1074
        %v1076 = vpop.f32.mrf.mxu0
        %v1077 = vadd.f32 %v691, %v1076
        %1078 = vmatprep.mubr.f32.mxu0 %v371
        %1079 = vmatmul.mubr.f32.gmra.mxu0 %v370
        %v1080 = vpop.f32.mrf.mxu0
        %v1081 = vadd.f32 %v687, %v1080
        %v1082 = vpop.f32.mrf.mxu0
        %v1083 = vadd.f32 %v691, %v1082
        %1084 = vmatprep.mubr.f32.mxu0 %v375
        %1085 = vmatmul.mubr.f32.gmra.mxu0 %v374
        %v1086 = vpop.f32.mrf.mxu0
        %v1087 = vadd.f32 %v687, %v1086
        %v1088 = vpop.f32.mrf.mxu0
        %v1089 = vadd.f32 %v691, %v1088
        %1090 = vmatprep.mubr.f32.mxu0 %v379
        %1091 = vmatmul.mubr.f32.gmra.mxu0 %v378
        %v1092 = vpop.f32.mrf.mxu0
        %v1093 = vadd.f32 %v687, %v1092
        %v1094 = vpop.f32.mrf.mxu0
        %v1095 = vadd.f32 %v691, %v1094
        %1096 = vmatprep.mubr.f32.mxu0 %v383
        %1097 = vmatmul.mubr.f32.gmra.mxu0 %v382
        %v1098 = vpop.f32.mrf.mxu0
        %v1099 = vadd.f32 %v687, %v1098
        %v1100 = vpop.f32.mrf.mxu0
        %v1101 = vadd.f32 %v691, %v1100
        %1102 = vmatprep.mubr.f32.mxu0 %v387
        %1103 = vmatmul.mubr.f32.gmra.mxu0 %v386
        %v1104 = vpop.f32.mrf.mxu0
        %v1105 = vadd.f32 %v687, %v1104
        %v1106 = vpop.f32.mrf.mxu0
        %v1107 = vadd.f32 %v691, %v1106
        %1108 = vmatprep.mubr.f32.mxu0 %v391
        %1109 = vmatmul.mubr.f32.gmra.mxu0 %v390
        %v1110 = vpop.f32.mrf.mxu0
        %v1111 = vadd.f32 %v687, %v1110
        %v1112 = vpop.f32.mrf.mxu0
        %v1113 = vadd.f32 %v691, %v1112
        %1114 = vmatprep.mubr.f32.mxu0 %v395
        %1115 = vmatmul.mubr.f32.gmra.mxu0 %v394
        %v1116 = vpop.f32.mrf.mxu0
        %v1117 = vadd.f32 %v687, %v1116
        %v1118 = vpop.f32.mrf.mxu0
        %v1119 = vadd.f32 %v691, %v1118
        %1120 = vdwg.mxu0
        %1121 = vmatprep.subr.mxu0 %v590
        %1122 = vmatpush1.msra.mxu0 %v589
        %1123 = vmatprep.subr.mxu0 %v586
        %1124 = vmatpush1.msra.mxu0 %v585
        %1125 = vmatprep.subr.mxu0 %v582
        %1126 = vmatpush1.msra.mxu0 %v581
        %1127 = vmatprep.subr.mxu0 %v578
        %1128 = vmatpush1.msra.mxu0 %v577
        %1129 = vmatprep.subr.mxu0 %v574
        %1130 = vmatpush1.msra.mxu0 %v573
        %1131 = vmatprep.subr.mxu0 %v570
        %1132 = vmatpush1.msra.mxu0 %v569
        %1133 = vmatprep.subr.mxu0 %v566
        %1134 = vmatpush1.msra.mxu0 %v565
        %1135 = vmatprep.subr.mxu0 %v562
        %1136 = vmatpush1.msra.mxu0 %v561
        %1137 = vmatprep.subr.mxu0 %v558
        %1138 = vmatpush1.msra.mxu0 %v557
        %1139 = vmatprep.subr.mxu0 %v554
        %1140 = vmatpush1.msra.mxu0 %v553
        %1141 = vmatprep.subr.mxu0 %v550
        %1142 = vmatpush1.msra.mxu0 %v549
        %1143 = vmatprep.subr.mxu0 %v546
        %1144 = vmatpush1.msra.mxu0 %v545
        %1145 = vmatprep.subr.mxu0 %v542
        %1146 = vmatpush1.msra.mxu0 %v541
        %1147 = vmatprep.subr.mxu0 %v538
        %1148 = vmatpush1.msra.mxu0 %v537
        %1149 = vmatprep.subr.mxu0 %v534
        %1150 = vmatpush1.msra.mxu0 %v533
        %1151 = vmatprep.subr.mxu0 %v530
        %1152 = vmatpush1.msra.mxu0 %v529
        %1153 = vmatprep.subr.mxu0 %v654
        %1154 = vmatpush2.msra.mxu0 %v653
        %1155 = vmatprep.subr.mxu0 %v650
        %1156 = vmatpush2.msra.mxu0 %v649
        %1157 = vmatprep.subr.mxu0 %v646
        %1158 = vmatpush2.msra.mxu0 %v645
        %1159 = vmatprep.subr.mxu0 %v642
        %1160 = vmatpush2.msra.mxu0 %v641
        %1161 = vmatprep.subr.mxu0 %v638
        %1162 = vmatpush2.msra.mxu0 %v637
        %1163 = vmatprep.subr.mxu0 %v634
        %1164 = vmatpush2.msra.mxu0 %v633
        %1165 = vmatprep.subr.mxu0 %v630
        %1166 = vmatpush2.msra.mxu0 %v629
        %1167 = vmatprep.subr.mxu0 %v626
        %1168 = vmatpush2.msra.mxu0 %v625
        %1169 = vmatprep.subr.mxu0 %v622
        %1170 = vmatpush2.msra.mxu0 %v621
        %1171 = vmatprep.subr.mxu0 %v618
        %1172 = vmatpush2.msra.mxu0 %v617
        %1173 = vmatprep.subr.mxu0 %v614
        %1174 = vmatpush2.msra.mxu0 %v613
        %1175 = vmatprep.subr.mxu0 %v610
        %1176 = vmatpush2.msra.mxu0 %v609
        %1177 = vmatprep.subr.mxu0 %v606
        %1178 = vmatpush2.msra.mxu0 %v605
        %1179 = vmatprep.subr.mxu0 %v602
        %1180 = vmatpush2.msra.mxu0 %v601
        %1181 = vmatprep.subr.mxu0 %v598
        %1182 = vmatpush2.msra.mxu0 %v597
        %1183 = vmatprep.subr.mxu0 %v594
        %1184 = vmatpush2.msra.mxu0 %v593
        %1185 = vmatprep.mubr.f32.mxu0 %v349
        %1186 = vmatmul.mubr.f32.gmra.mxu0 %v348
        %v1187 = vpop.f32.mrf.mxu0
        %v1188 = vadd.f32 %v1045, %v1187
        %v1189 = vpop.f32.mrf.mxu0
        %v1190 = vadd.f32 %v1047, %v1189
        %1191 = vmatprep.mubr.f32.mxu0 %v353
        %1192 = vmatmul.mubr.f32.gmra.mxu0 %v352
        %v1193 = vpop.f32.mrf.mxu0
        %v1194 = vadd.f32 %v1051, %v1193
        %v1195 = vpop.f32.mrf.mxu0
        %v1196 = vadd.f32 %v1053, %v1195
        %1197 = vmatprep.mubr.f32.mxu0 %v357
        %1198 = vmatmul.mubr.f32.gmra.mxu0 %v356
        %v1199 = vpop.f32.mrf.mxu0
        %v1200 = vadd.f32 %v1057, %v1199
        %v1201 = vpop.f32.mrf.mxu0
        %v1202 = vadd.f32 %v1059, %v1201
        %1203 = vmatprep.mubr.f32.mxu0 %v361
        %1204 = vmatmul.mubr.f32.gmra.mxu0 %v360
        %v1205 = vpop.f32.mrf.mxu0
        %v1206 = vadd.f32 %v1063, %v1205
        %v1207 = vpop.f32.mrf.mxu0
        %v1208 = vadd.f32 %v1065, %v1207
        %1209 = vmatprep.mubr.f32.mxu0 %v365
        %1210 = vmatmul.mubr.f32.gmra.mxu0 %v364
        %v1211 = vpop.f32.mrf.mxu0
        %v1212 = vadd.f32 %v1069, %v1211
        %v1213 = vpop.f32.mrf.mxu0
        %v1214 = vadd.f32 %v1071, %v1213
        %1215 = vmatprep.mubr.f32.mxu0 %v369
        %1216 = vmatmul.mubr.f32.gmra.mxu0 %v368
        %v1217 = vpop.f32.mrf.mxu0
        %v1218 = vadd.f32 %v1075, %v1217
        %v1219 = vpop.f32.mrf.mxu0
        %v1220 = vadd.f32 %v1077, %v1219
        %1221 = vmatprep.mubr.f32.mxu0 %v373
        %1222 = vmatmul.mubr.f32.gmra.mxu0 %v372
        %v1223 = vpop.f32.mrf.mxu0
        %v1224 = vadd.f32 %v1081, %v1223
        %v1225 = vpop.f32.mrf.mxu0
        %v1226 = vadd.f32 %v1083, %v1225
        %1227 = vmatprep.mubr.f32.mxu0 %v377
        %1228 = vmatmul.mubr.f32.gmra.mxu0 %v376
        %v1229 = vpop.f32.mrf.mxu0
        %v1230 = vadd.f32 %v1087, %v1229
        %v1231 = vpop.f32.mrf.mxu0
        %v1232 = vadd.f32 %v1089, %v1231
        %1233 = vmatprep.mubr.f32.mxu0 %v381
        %1234 = vmatmul.mubr.f32.gmra.mxu0 %v380
        %v1235 = vpop.f32.mrf.mxu0
        %v1236 = vadd.f32 %v1093, %v1235
        %v1237 = vpop.f32.mrf.mxu0
        %v1238 = vadd.f32 %v1095, %v1237
        %1239 = vmatprep.mubr.f32.mxu0 %v385
        %1240 = vmatmul.mubr.f32.gmra.mxu0 %v384
        %v1241 = vpop.f32.mrf.mxu0
        %v1242 = vadd.f32 %v1099, %v1241
        %v1243 = vpop.f32.mrf.mxu0
        %v1244 = vadd.f32 %v1101, %v1243
        %1245 = vmatprep.mubr.f32.mxu0 %v389
        %1246 = vmatmul.mubr.f32.gmra.mxu0 %v388
        %v1247 = vpop.f32.mrf.mxu0
        %v1248 = vadd.f32 %v1105, %v1247
        %v1249 = vpop.f32.mrf.mxu0
        %v1250 = vadd.f32 %v1107, %v1249
        %1251 = vmatprep.mubr.f32.mxu0 %v393
        %1252 = vmatmul.mubr.f32.gmra.mxu0 %v392
        %v1253 = vpop.f32.mrf.mxu0
        %v1254 = vadd.f32 %v1111, %v1253
        %v1255 = vpop.f32.mrf.mxu0
        %v1256 = vadd.f32 %v1113, %v1255
        %1257 = vmatprep.mubr.f32.mxu0 %v397
        %1258 = vmatmul.mubr.f32.gmra.mxu0 %v396
        %v1259 = vpop.f32.mrf.mxu0
        %v1260 = vadd.f32 %v1117, %v1259
        %v1261 = vpop.f32.mrf.mxu0
        %v1262 = vadd.f32 %v1119, %v1261
        %1263 = vdwg.mxu0
        %v1264 = vmax.f32 %v902, 0.0
        %v1265 = vmax.f32 %v904, 0.0
        %v1266 = vmax.f32 %v1188, 0.0
        %v1267 = vmax.f32 %v1190, 0.0
        %v1268 = vmax.f32 %v908, 0.0
        %v1269 = vmax.f32 %v910, 0.0
        %v1270 = vmax.f32 %v1194, 0.0
        %v1271 = vmax.f32 %v1196, 0.0
        %v1272 = vmax.f32 %v914, 0.0
        %v1273 = vmax.f32 %v916, 0.0
        %v1274 = vmax.f32 %v1200, 0.0
        %v1275 = vmax.f32 %v1202, 0.0
        %v1276 = vmax.f32 %v920, 0.0
        %v1277 = vmax.f32 %v922, 0.0
        %v1278 = vmax.f32 %v1206, 0.0
        %v1279 = vmax.f32 %v1208, 0.0
        %v1280 = vmax.f32 %v926, 0.0
        %v1281 = vmax.f32 %v928, 0.0
        %v1282 = vmax.f32 %v1212, 0.0
        %v1283 = vmax.f32 %v1214, 0.0
        %v1284 = vmax.f32 %v932, 0.0
        %v1285 = vmax.f32 %v934, 0.0
        %v1286 = vmax.f32 %v1218, 0.0
        %v1287 = vmax.f32 %v1220, 0.0
        %v1288 = vmax.f32 %v938, 0.0
        %v1289 = vmax.f32 %v940, 0.0
        %v1290 = vmax.f32 %v1224, 0.0
        %v1291 = vmax.f32 %v1226, 0.0
        %v1292 = vmax.f32 %v944, 0.0
        %v1293 = vmax.f32 %v946, 0.0
        %v1294 = vmax.f32 %v1230, 0.0
        %v1295 = vmax.f32 %v1232, 0.0
        %v1296 = vmax.f32 %v950, 0.0
        %v1297 = vmax.f32 %v952, 0.0
        %v1298 = vmax.f32 %v1236, 0.0
        %v1299 = vmax.f32 %v1238, 0.0
        %v1300 = vmax.f32 %v956, 0.0
        %v1301 = vmax.f32 %v958, 0.0
        %v1302 = vmax.f32 %v1242, 0.0
        %v1303 = vmax.f32 %v1244, 0.0
        %v1304 = vmax.f32 %v962, 0.0
        %v1305 = vmax.f32 %v964, 0.0
        %v1306 = vmax.f32 %v1248, 0.0
        %v1307 = vmax.f32 %v1250, 0.0
        %v1308 = vmax.f32 %v968, 0.0
        %v1309 = vmax.f32 %v970, 0.0
        %v1310 = vmax.f32 %v1254, 0.0
        %v1311 = vmax.f32 %v1256, 0.0
        %v1312 = vmax.f32 %v974, 0.0
        %v1313 = vmax.f32 %v976, 0.0
        %v1314 = vmax.f32 %v1260, 0.0
        %v1315 = vmax.f32 %v1262, 0.0
        %v1316 = vld [vmem:[#allocation7] sm:$0xff]
        %v1317 = vld [vmem:[#allocation7 + $0x8] sm:$0xff]
        %v1318 = vld [vmem:[#allocation7 + $0x10] sm:$0xff]
        %v1319 = vld [vmem:[#allocation7 + $0x18] sm:$0xff]
        %v1320 = vld [vmem:[#allocation7 + $0x20] sm:$0xff]
        %v1321 = vld [vmem:[#allocation7 + $0x28] sm:$0xff]
        %v1322 = vld [vmem:[#allocation7 + $0x30] sm:$0xff]
        %v1323 = vld [vmem:[#allocation7 + $0x38] sm:$0xff]
        %v1324 = vld [vmem:[#allocation7 + $0x40] sm:$0xff]
        %v1325 = vld [vmem:[#allocation7 + $0x48] sm:$0xff]
        %v1326 = vld [vmem:[#allocation7 + $0x50] sm:$0xff]
        %v1327 = vld [vmem:[#allocation7 + $0x58] sm:$0xff]
        %v1328 = vld [vmem:[#allocation7 + $0x60] sm:$0xff]
        %v1329 = vld [vmem:[#allocation7 + $0x68] sm:$0xff]
        %v1330 = vld [vmem:[#allocation7 + $0x70] sm:$0xff]
        %v1331 = vld [vmem:[#allocation7 + $0x78] sm:$0xff]
        %v1332 = vld [vmem:[#allocation7 + $0x80] sm:$0xff]
        %v1333 = vld [vmem:[#allocation7 + $0x88] sm:$0xff]
        %v1334 = vld [vmem:[#allocation7 + $0x90] sm:$0xff]
        %v1335 = vld [vmem:[#allocation7 + $0x98] sm:$0xff]
        %v1336 = vld [vmem:[#allocation7 + $0xa0] sm:$0xff]
        %v1337 = vld [vmem:[#allocation7 + $0xa8] sm:$0xff]
        %v1338 = vld [vmem:[#allocation7 + $0xb0] sm:$0xff]
        %v1339 = vld [vmem:[#allocation7 + $0xb8] sm:$0xff]
        %v1340 = vld [vmem:[#allocation7 + $0xc0] sm:$0xff]
        %v1341 = vld [vmem:[#allocation7 + $0xc8] sm:$0xff]
        %v1342 = vld [vmem:[#allocation7 + $0xd0] sm:$0xff]
        %v1343 = vld [vmem:[#allocation7 + $0xd8] sm:$0xff]
        %v1344 = vld [vmem:[#allocation7 + $0xe0] sm:$0xff]
        %v1345 = vld [vmem:[#allocation7 + $0xe8] sm:$0xff]
        %v1346 = vld [vmem:[#allocation7 + $0xf0] sm:$0xff]
        %v1347 = vld [vmem:[#allocation7 + $0xf8] sm:$0xff]
        %v1348 = vld [vmem:[#allocation7 + $0x100] sm:$0xff]
        %v1349 = vld [vmem:[#allocation7 + $0x108] sm:$0xff]
        %v1350 = vld [vmem:[#allocation7 + $0x110] sm:$0xff]
        %v1351 = vld [vmem:[#allocation7 + $0x118] sm:$0xff]
        %v1352 = vld [vmem:[#allocation7 + $0x120] sm:$0xff]
        %v1353 = vld [vmem:[#allocation7 + $0x128] sm:$0xff]
        %v1354 = vld [vmem:[#allocation7 + $0x130] sm:$0xff]
        %v1355 = vld [vmem:[#allocation7 + $0x138] sm:$0xff]
        %v1356 = vld [vmem:[#allocation7 + $0x140] sm:$0xff]
        %v1357 = vld [vmem:[#allocation7 + $0x148] sm:$0xff]
        %v1358 = vld [vmem:[#allocation7 + $0x150] sm:$0xff]
        %v1359 = vld [vmem:[#allocation7 + $0x158] sm:$0xff]
        %v1360 = vld [vmem:[#allocation7 + $0x160] sm:$0xff]
        %v1361 = vld [vmem:[#allocation7 + $0x168] sm:$0xff]
        %v1362 = vld [vmem:[#allocation7 + $0x170] sm:$0xff]
        %v1363 = vld [vmem:[#allocation7 + $0x178] sm:$0xff]
        %v1364 = vld [vmem:[#allocation7 + $0x180] sm:$0xff]
        %v1365 = vld [vmem:[#allocation7 + $0x188] sm:$0xff]
        %v1366 = vld [vmem:[#allocation7 + $0x190] sm:$0xff]
        %v1367 = vld [vmem:[#allocation7 + $0x198] sm:$0xff]
        %v1368 = vld [vmem:[#allocation7 + $0x1a0] sm:$0xff]
        %v1369 = vld [vmem:[#allocation7 + $0x1a8] sm:$0xff]
        %v1370 = vld [vmem:[#allocation7 + $0x1b0] sm:$0xff]
        %v1371 = vld [vmem:[#allocation7 + $0x1b8] sm:$0xff]
        %v1372 = vld [vmem:[#allocation7 + $0x1c0] sm:$0xff]
        %v1373 = vld [vmem:[#allocation7 + $0x1c8] sm:$0xff]
        %v1374 = vld [vmem:[#allocation7 + $0x1d0] sm:$0xff]
        %v1375 = vld [vmem:[#allocation7 + $0x1d8] sm:$0xff]
        %v1376 = vld [vmem:[#allocation7 + $0x1e0] sm:$0xff]
        %v1377 = vld [vmem:[#allocation7 + $0x1e8] sm:$0xff]
        %v1378 = vld [vmem:[#allocation7 + $0x1f0] sm:$0xff]
        %v1379 = vld [vmem:[#allocation7 + $0x1f8] sm:$0xff]
        %v1380 = vld [vmem:[#allocation7 + $0x200] sm:$0xff]
        %v1381 = vld [vmem:[#allocation7 + $0x208] sm:$0xff]
        %v1382 = vld [vmem:[#allocation7 + $0x210] sm:$0xff]
        %v1383 = vld [vmem:[#allocation7 + $0x218] sm:$0xff]
        %v1384 = vld [vmem:[#allocation7 + $0x220] sm:$0xff]
        %v1385 = vld [vmem:[#allocation7 + $0x228] sm:$0xff]
        %v1386 = vld [vmem:[#allocation7 + $0x230] sm:$0xff]
        %v1387 = vld [vmem:[#allocation7 + $0x238] sm:$0xff]
        %v1388 = vld [vmem:[#allocation7 + $0x240] sm:$0xff]
        %v1389 = vld [vmem:[#allocation7 + $0x248] sm:$0xff]
        %v1390 = vld [vmem:[#allocation7 + $0x250] sm:$0xff]
        %v1391 = vld [vmem:[#allocation7 + $0x258] sm:$0xff]
        %v1392 = vld [vmem:[#allocation7 + $0x260] sm:$0xff]
        %v1393 = vld [vmem:[#allocation7 + $0x268] sm:$0xff]
        %v1394 = vld [vmem:[#allocation7 + $0x270] sm:$0xff]
        %v1395 = vld [vmem:[#allocation7 + $0x278] sm:$0xff]
        %v1396 = vld [vmem:[#allocation7 + $0x280] sm:$0xff]
        %v1397 = vld [vmem:[#allocation7 + $0x288] sm:$0xff]
        %v1398 = vld [vmem:[#allocation7 + $0x290] sm:$0xff]
        %v1399 = vld [vmem:[#allocation7 + $0x298] sm:$0xff]
        %v1400 = vld [vmem:[#allocation7 + $0x2a0] sm:$0xff]
        %v1401 = vld [vmem:[#allocation7 + $0x2a8] sm:$0xff]
        %v1402 = vld [vmem:[#allocation7 + $0x2b0] sm:$0xff]
        %v1403 = vld [vmem:[#allocation7 + $0x2b8] sm:$0xff]
        %v1404 = vld [vmem:[#allocation7 + $0x2c0] sm:$0xff]
        %v1405 = vld [vmem:[#allocation7 + $0x2c8] sm:$0xff]
        %v1406 = vld [vmem:[#allocation7 + $0x2d0] sm:$0xff]
        %v1407 = vld [vmem:[#allocation7 + $0x2d8] sm:$0xff]
        %v1408 = vld [vmem:[#allocation7 + $0x2e0] sm:$0xff]
        %v1409 = vld [vmem:[#allocation7 + $0x2e8] sm:$0xff]
        %v1410 = vld [vmem:[#allocation7 + $0x2f0] sm:$0xff]
        %v1411 = vld [vmem:[#allocation7 + $0x2f8] sm:$0xff]
        %v1412 = vld [vmem:[#allocation7 + $0x300] sm:$0xff]
        %v1413 = vld [vmem:[#allocation7 + $0x308] sm:$0xff]
        %v1414 = vld [vmem:[#allocation7 + $0x310] sm:$0xff]
        %v1415 = vld [vmem:[#allocation7 + $0x318] sm:$0xff]
        %v1416 = vld [vmem:[#allocation7 + $0x320] sm:$0xff]
        %v1417 = vld [vmem:[#allocation7 + $0x328] sm:$0xff]
        %v1418 = vld [vmem:[#allocation7 + $0x330] sm:$0xff]
        %v1419 = vld [vmem:[#allocation7 + $0x338] sm:$0xff]
        %v1420 = vld [vmem:[#allocation7 + $0x340] sm:$0xff]
        %v1421 = vld [vmem:[#allocation7 + $0x348] sm:$0xff]
        %v1422 = vld [vmem:[#allocation7 + $0x350] sm:$0xff]
        %v1423 = vld [vmem:[#allocation7 + $0x358] sm:$0xff]
        %v1424 = vld [vmem:[#allocation7 + $0x360] sm:$0xff]
        %v1425 = vld [vmem:[#allocation7 + $0x368] sm:$0xff]
        %v1426 = vld [vmem:[#allocation7 + $0x370] sm:$0xff]
        %v1427 = vld [vmem:[#allocation7 + $0x378] sm:$0xff]
        %v1428 = vld [vmem:[#allocation7 + $0x380] sm:$0xff]
        %v1429 = vld [vmem:[#allocation7 + $0x388] sm:$0xff]
        %v1430 = vld [vmem:[#allocation7 + $0x390] sm:$0xff]
        %v1431 = vld [vmem:[#allocation7 + $0x398] sm:$0xff]
        %v1432 = vld [vmem:[#allocation7 + $0x3a0] sm:$0xff]
        %v1433 = vld [vmem:[#allocation7 + $0x3a8] sm:$0xff]
        %v1434 = vld [vmem:[#allocation7 + $0x3b0] sm:$0xff]
        %v1435 = vld [vmem:[#allocation7 + $0x3b8] sm:$0xff]
        %v1436 = vld [vmem:[#allocation7 + $0x3c0] sm:$0xff]
        %v1437 = vld [vmem:[#allocation7 + $0x3c8] sm:$0xff]
        %v1438 = vld [vmem:[#allocation7 + $0x3d0] sm:$0xff]
        %v1439 = vld [vmem:[#allocation7 + $0x3d8] sm:$0xff]
        %v1440 = vld [vmem:[#allocation7 + $0x3e0] sm:$0xff]
        %v1441 = vld [vmem:[#allocation7 + $0x3e8] sm:$0xff]
        %v1442 = vld [vmem:[#allocation7 + $0x3f0] sm:$0xff]
        %v1443 = vld [vmem:[#allocation7 + $0x3f8] sm:$0xff]
        %v1444 = vld [vmem:[#allocation7 + $0x400] sm:$0xff]
        %v1445 = vld [vmem:[#allocation7 + $0x408] sm:$0xff]
        %v1446 = vld [vmem:[#allocation7 + $0x410] sm:$0xff]
        %v1447 = vld [vmem:[#allocation7 + $0x418] sm:$0xff]
        %v1448 = vld [vmem:[#allocation7 + $0x420] sm:$0xff]
        %v1449 = vld [vmem:[#allocation7 + $0x428] sm:$0xff]
        %v1450 = vld [vmem:[#allocation7 + $0x430] sm:$0xff]
        %v1451 = vld [vmem:[#allocation7 + $0x438] sm:$0xff]
        %v1452 = vld [vmem:[#allocation7 + $0x440] sm:$0xff]
        %v1453 = vld [vmem:[#allocation7 + $0x448] sm:$0xff]
        %v1454 = vld [vmem:[#allocation7 + $0x450] sm:$0xff]
        %v1455 = vld [vmem:[#allocation7 + $0x458] sm:$0xff]
        %v1456 = vld [vmem:[#allocation7 + $0x460] sm:$0xff]
        %v1457 = vld [vmem:[#allocation7 + $0x468] sm:$0xff]
        %v1458 = vld [vmem:[#allocation7 + $0x470] sm:$0xff]
        %v1459 = vld [vmem:[#allocation7 + $0x478] sm:$0xff]
        %v1460 = vld [vmem:[#allocation7 + $0x480] sm:$0xff]
        %v1461 = vld [vmem:[#allocation7 + $0x488] sm:$0xff]
        %v1462 = vld [vmem:[#allocation7 + $0x490] sm:$0xff]
        %v1463 = vld [vmem:[#allocation7 + $0x498] sm:$0xff]
        %v1464 = vld [vmem:[#allocation7 + $0x4a0] sm:$0xff]
        %v1465 = vld [vmem:[#allocation7 + $0x4a8] sm:$0xff]
        %v1466 = vld [vmem:[#allocation7 + $0x4b0] sm:$0xff]
        %v1467 = vld [vmem:[#allocation7 + $0x4b8] sm:$0xff]
        %v1468 = vld [vmem:[#allocation7 + $0x4c0] sm:$0xff]
        %v1469 = vld [vmem:[#allocation7 + $0x4c8] sm:$0xff]
        %v1470 = vld [vmem:[#allocation7 + $0x4d0] sm:$0xff]
        %v1471 = vld [vmem:[#allocation7 + $0x4d8] sm:$0xff]
        %v1472 = vld [vmem:[#allocation7 + $0x4e0] sm:$0xff]
        %v1473 = vld [vmem:[#allocation7 + $0x4e8] sm:$0xff]
        %v1474 = vld [vmem:[#allocation7 + $0x4f0] sm:$0xff]
        %v1475 = vld [vmem:[#allocation7 + $0x4f8] sm:$0xff]
        %v1476 = vld [vmem:[#allocation7 + $0x500] sm:$0xff]
        %v1477 = vld [vmem:[#allocation7 + $0x508] sm:$0xff]
        %v1478 = vld [vmem:[#allocation7 + $0x510] sm:$0xff]
        %v1479 = vld [vmem:[#allocation7 + $0x518] sm:$0xff]
        %v1480 = vld [vmem:[#allocation7 + $0x520] sm:$0xff]
        %v1481 = vld [vmem:[#allocation7 + $0x528] sm:$0xff]
        %v1482 = vld [vmem:[#allocation7 + $0x530] sm:$0xff]
        %v1483 = vld [vmem:[#allocation7 + $0x538] sm:$0xff]
        %v1484 = vld [vmem:[#allocation7 + $0x540] sm:$0xff]
        %v1485 = vld [vmem:[#allocation7 + $0x548] sm:$0xff]
        %v1486 = vld [vmem:[#allocation7 + $0x550] sm:$0xff]
        %v1487 = vld [vmem:[#allocation7 + $0x558] sm:$0xff]
        %v1488 = vld [vmem:[#allocation7 + $0x560] sm:$0xff]
        %v1489 = vld [vmem:[#allocation7 + $0x568] sm:$0xff]
        %v1490 = vld [vmem:[#allocation7 + $0x570] sm:$0xff]
        %v1491 = vld [vmem:[#allocation7 + $0x578] sm:$0xff]
        %v1492 = vld [vmem:[#allocation7 + $0x580] sm:$0xff]
        %v1493 = vld [vmem:[#allocation7 + $0x588] sm:$0xff]
        %v1494 = vld [vmem:[#allocation7 + $0x590] sm:$0xff]
        %v1495 = vld [vmem:[#allocation7 + $0x598] sm:$0xff]
        %v1496 = vld [vmem:[#allocation7 + $0x5a0] sm:$0xff]
        %v1497 = vld [vmem:[#allocation7 + $0x5a8] sm:$0xff]
        %v1498 = vld [vmem:[#allocation7 + $0x5b0] sm:$0xff]
        %v1499 = vld [vmem:[#allocation7 + $0x5b8] sm:$0xff]
        %v1500 = vld [vmem:[#allocation7 + $0x5c0] sm:$0xff]
        %v1501 = vld [vmem:[#allocation7 + $0x5c8] sm:$0xff]
        %v1502 = vld [vmem:[#allocation7 + $0x5d0] sm:$0xff]
        %v1503 = vld [vmem:[#allocation7 + $0x5d8] sm:$0xff]
        %v1504 = vld [vmem:[#allocation7 + $0x5e0] sm:$0xff]
        %v1505 = vld [vmem:[#allocation7 + $0x5e8] sm:$0xff]
        %v1506 = vld [vmem:[#allocation7 + $0x5f0] sm:$0xff]
        %v1507 = vld [vmem:[#allocation7 + $0x5f8] sm:$0xff]
        %v1508 = vld [vmem:[#allocation7 + $0x600] sm:$0xff]
        %v1509 = vld [vmem:[#allocation7 + $0x608] sm:$0xff]
        %v1510 = vld [vmem:[#allocation7 + $0x610] sm:$0xff]
        %v1511 = vld [vmem:[#allocation7 + $0x618] sm:$0xff]
        %v1512 = vld [vmem:[#allocation7 + $0x620] sm:$0xff]
        %v1513 = vld [vmem:[#allocation7 + $0x628] sm:$0xff]
        %v1514 = vld [vmem:[#allocation7 + $0x630] sm:$0xff]
        %v1515 = vld [vmem:[#allocation7 + $0x638] sm:$0xff]
        %v1516 = vld [vmem:[#allocation7 + $0x640] sm:$0xff]
        %v1517 = vld [vmem:[#allocation7 + $0x648] sm:$0xff]
        %v1518 = vld [vmem:[#allocation7 + $0x650] sm:$0xff]
        %v1519 = vld [vmem:[#allocation7 + $0x658] sm:$0xff]
        %v1520 = vld [vmem:[#allocation7 + $0x660] sm:$0xff]
        %v1521 = vld [vmem:[#allocation7 + $0x668] sm:$0xff]
        %v1522 = vld [vmem:[#allocation7 + $0x670] sm:$0xff]
        %v1523 = vld [vmem:[#allocation7 + $0x678] sm:$0xff]
        %v1524 = vld [vmem:[#allocation7 + $0x680] sm:$0xff]
        %v1525 = vld [vmem:[#allocation7 + $0x688] sm:$0xff]
        %v1526 = vld [vmem:[#allocation7 + $0x690] sm:$0xff]
        %v1527 = vld [vmem:[#allocation7 + $0x698] sm:$0xff]
        %v1528 = vld [vmem:[#allocation7 + $0x6a0] sm:$0xff]
        %v1529 = vld [vmem:[#allocation7 + $0x6a8] sm:$0xff]
        %v1530 = vld [vmem:[#allocation7 + $0x6b0] sm:$0xff]
        %v1531 = vld [vmem:[#allocation7 + $0x6b8] sm:$0xff]
        %v1532 = vld [vmem:[#allocation7 + $0x6c0] sm:$0xff]
        %v1533 = vld [vmem:[#allocation7 + $0x6c8] sm:$0xff]
        %v1534 = vld [vmem:[#allocation7 + $0x6d0] sm:$0xff]
        %v1535 = vld [vmem:[#allocation7 + $0x6d8] sm:$0xff]
        %v1536 = vld [vmem:[#allocation7 + $0x6e0] sm:$0xff]
        %v1537 = vld [vmem:[#allocation7 + $0x6e8] sm:$0xff]
        %v1538 = vld [vmem:[#allocation7 + $0x6f0] sm:$0xff]
        %v1539 = vld [vmem:[#allocation7 + $0x6f8] sm:$0xff]
        %v1540 = vld [vmem:[#allocation7 + $0x700] sm:$0xff]
        %v1541 = vld [vmem:[#allocation7 + $0x708] sm:$0xff]
        %v1542 = vld [vmem:[#allocation7 + $0x710] sm:$0xff]
        %v1543 = vld [vmem:[#allocation7 + $0x718] sm:$0xff]
        %v1544 = vld [vmem:[#allocation7 + $0x720] sm:$0xff]
        %v1545 = vld [vmem:[#allocation7 + $0x728] sm:$0xff]
        %v1546 = vld [vmem:[#allocation7 + $0x730] sm:$0xff]
        %v1547 = vld [vmem:[#allocation7 + $0x738] sm:$0xff]
        %v1548 = vld [vmem:[#allocation7 + $0x740] sm:$0xff]
        %v1549 = vld [vmem:[#allocation7 + $0x748] sm:$0xff]
        %v1550 = vld [vmem:[#allocation7 + $0x750] sm:$0xff]
        %v1551 = vld [vmem:[#allocation7 + $0x758] sm:$0xff]
        %v1552 = vld [vmem:[#allocation7 + $0x760] sm:$0xff]
        %v1553 = vld [vmem:[#allocation7 + $0x768] sm:$0xff]
        %v1554 = vld [vmem:[#allocation7 + $0x770] sm:$0xff]
        %v1555 = vld [vmem:[#allocation7 + $0x778] sm:$0xff]
        %v1556 = vld [vmem:[#allocation7 + $0x780] sm:$0xff]
        %v1557 = vld [vmem:[#allocation7 + $0x788] sm:$0xff]
        %v1558 = vld [vmem:[#allocation7 + $0x790] sm:$0xff]
        %v1559 = vld [vmem:[#allocation7 + $0x798] sm:$0xff]
        %v1560 = vld [vmem:[#allocation7 + $0x7a0] sm:$0xff]
        %v1561 = vld [vmem:[#allocation7 + $0x7a8] sm:$0xff]
        %v1562 = vld [vmem:[#allocation7 + $0x7b0] sm:$0xff]
        %v1563 = vld [vmem:[#allocation7 + $0x7b8] sm:$0xff]
        %v1564 = vld [vmem:[#allocation7 + $0x7c0] sm:$0xff]
        %v1565 = vld [vmem:[#allocation7 + $0x7c8] sm:$0xff]
        %v1566 = vld [vmem:[#allocation7 + $0x7d0] sm:$0xff]
        %v1567 = vld [vmem:[#allocation7 + $0x7d8] sm:$0xff]
        %v1568 = vld [vmem:[#allocation7 + $0x7e0] sm:$0xff]
        %v1569 = vld [vmem:[#allocation7 + $0x7e8] sm:$0xff]
        %v1570 = vld [vmem:[#allocation7 + $0x7f0] sm:$0xff]
        %v1571 = vld [vmem:[#allocation7 + $0x7f8] sm:$0xff]
        %v1572 = vlaneseq
        %v1573 = vshrl.u32 %v1572, 7
        %v1574 = vsub.s32 1, %v1573
        %v1575 = vrot.slane %v398, %v1574
        %v1576 = vlaneseq
        %v1577 = vshrl.u32 %v1576, 7
        %v1578 = vsub.s32 3, %v1577
        %v1579 = vrot.slane %v398, %v1578
        %v1580 = vlaneseq
        %v1581 = vshrl.u32 %v1580, 7
        %v1582 = vsub.s32 5, %v1581
        %v1583 = vrot.slane %v398, %v1582
        %v1584 = vlaneseq
        %v1585 = vshrl.u32 %v1584, 7
        %v1586 = vsub.s32 7, %v1585
        %v1587 = vrot.slane %v398, %v1586
        %v1592 = vlaneseq
        %v1593 = vshrl.u32 %v1592, 7
        %v1594 = vsub.s32 1, %v1593
        %v1595 = vrot.slane %v1575, %v1594
        %v1596 = vlaneseq
        %v1597 = vshrl.u32 %v1596, 7
        %v1598 = vsub.s32 1, %v1597
        %v1599 = vrot.slane %v1579, %v1598
        %v1600 = vlaneseq
        %v1601 = vshrl.u32 %v1600, 7
        %v1602 = vsub.s32 1, %v1601
        %v1603 = vrot.slane %v1583, %v1602
        %v1604 = vlaneseq
        %v1605 = vshrl.u32 %v1604, 7
        %v1606 = vsub.s32 1, %v1605
        %v1607 = vrot.slane %v1587, %v1606
        %1608 = vmatprep.subr.mxu0 %v1377
        %1609 = vmatpush1.msra.mxu0 %v1376
        %1610 = vmatprep.subr.mxu0 %v1373
        %1611 = vmatpush1.msra.mxu0 %v1372
        %1612 = vmatprep.subr.mxu0 %v1369
        %1613 = vmatpush1.msra.mxu0 %v1368
        %1614 = vmatprep.subr.mxu0 %v1365
        %1615 = vmatpush1.msra.mxu0 %v1364
        %1616 = vmatprep.subr.mxu0 %v1361
        %1617 = vmatpush1.msra.mxu0 %v1360
        %1618 = vmatprep.subr.mxu0 %v1357
        %1619 = vmatpush1.msra.mxu0 %v1356
        %1620 = vmatprep.subr.mxu0 %v1353
        %1621 = vmatpush1.msra.mxu0 %v1352
        %1622 = vmatprep.subr.mxu0 %v1349
        %1623 = vmatpush1.msra.mxu0 %v1348
        %1624 = vmatprep.subr.mxu0 %v1345
        %1625 = vmatpush1.msra.mxu0 %v1344
        %1626 = vmatprep.subr.mxu0 %v1341
        %1627 = vmatpush1.msra.mxu0 %v1340
        %1628 = vmatprep.subr.mxu0 %v1337
        %1629 = vmatpush1.msra.mxu0 %v1336
        %1630 = vmatprep.subr.mxu0 %v1333
        %1631 = vmatpush1.msra.mxu0 %v1332
        %1632 = vmatprep.subr.mxu0 %v1329
        %1633 = vmatpush1.msra.mxu0 %v1328
        %1634 = vmatprep.subr.mxu0 %v1325
        %1635 = vmatpush1.msra.mxu0 %v1324
        %1636 = vmatprep.subr.mxu0 %v1321
        %1637 = vmatpush1.msra.mxu0 %v1320
        %1638 = vmatprep.subr.mxu0 %v1317
        %1639 = vmatpush1.msra.mxu0 %v1316
        %1640 = vmatprep.subr.mxu0 %v1441
        %1641 = vmatpush2.msra.mxu0 %v1440
        %1642 = vmatprep.subr.mxu0 %v1437
        %1643 = vmatpush2.msra.mxu0 %v1436
        %1644 = vmatprep.subr.mxu0 %v1433
        %1645 = vmatpush2.msra.mxu0 %v1432
        %1646 = vmatprep.subr.mxu0 %v1429
        %1647 = vmatpush2.msra.mxu0 %v1428
        %1648 = vmatprep.subr.mxu0 %v1425
        %1649 = vmatpush2.msra.mxu0 %v1424
        %1650 = vmatprep.subr.mxu0 %v1421
        %1651 = vmatpush2.msra.mxu0 %v1420
        %1652 = vmatprep.subr.mxu0 %v1417
        %1653 = vmatpush2.msra.mxu0 %v1416
        %1654 = vmatprep.subr.mxu0 %v1413
        %1655 = vmatpush2.msra.mxu0 %v1412
        %1656 = vmatprep.subr.mxu0 %v1409
        %1657 = vmatpush2.msra.mxu0 %v1408
        %1658 = vmatprep.subr.mxu0 %v1405
        %1659 = vmatpush2.msra.mxu0 %v1404
        %1660 = vmatprep.subr.mxu0 %v1401
        %1661 = vmatpush2.msra.mxu0 %v1400
        %1662 = vmatprep.subr.mxu0 %v1397
        %1663 = vmatpush2.msra.mxu0 %v1396
        %1664 = vmatprep.subr.mxu0 %v1393
        %1665 = vmatpush2.msra.mxu0 %v1392
        %1666 = vmatprep.subr.mxu0 %v1389
        %1667 = vmatpush2.msra.mxu0 %v1388
        %1668 = vmatprep.subr.mxu0 %v1385
        %1669 = vmatpush2.msra.mxu0 %v1384
        %1670 = vmatprep.subr.mxu0 %v1381
        %1671 = vmatpush2.msra.mxu0 %v1380
        %1672 = vmatprep.mubr.f32.mxu0 %v1265
        %1673 = vmatmul.mubr.f32.gmra.mxu0 %v1264
        %v1674 = vpop.f32.mrf.mxu0
        %v1675 = vadd.f32 %v1595, %v1674
        %v1676 = vpop.f32.mrf.mxu0
        %v1677 = vadd.f32 %v1599, %v1676
        %1678 = vmatprep.mubr.f32.mxu0 %v1269
        %1679 = vmatmul.mubr.f32.gmra.mxu0 %v1268
        %v1680 = vpop.f32.mrf.mxu0
        %v1681 = vadd.f32 %v1595, %v1680
        %v1682 = vpop.f32.mrf.mxu0
        %v1683 = vadd.f32 %v1599, %v1682
        %1684 = vmatprep.mubr.f32.mxu0 %v1273
        %1685 = vmatmul.mubr.f32.gmra.mxu0 %v1272
        %v1686 = vpop.f32.mrf.mxu0
        %v1687 = vadd.f32 %v1595, %v1686
        %v1688 = vpop.f32.mrf.mxu0
        %v1689 = vadd.f32 %v1599, %v1688
        %1690 = vmatprep.mubr.f32.mxu0 %v1277
        %1691 = vmatmul.mubr.f32.gmra.mxu0 %v1276
        %v1692 = vpop.f32.mrf.mxu0
        %v1693 = vadd.f32 %v1595, %v1692
        %v1694 = vpop.f32.mrf.mxu0
        %v1695 = vadd.f32 %v1599, %v1694
        %1696 = vmatprep.mubr.f32.mxu0 %v1281
        %1697 = vmatmul.mubr.f32.gmra.mxu0 %v1280
        %v1698 = vpop.f32.mrf.mxu0
        %v1699 = vadd.f32 %v1595, %v1698
        %v1700 = vpop.f32.mrf.mxu0
        %v1701 = vadd.f32 %v1599, %v1700
        %1702 = vmatprep.mubr.f32.mxu0 %v1285
        %1703 = vmatmul.mubr.f32.gmra.mxu0 %v1284
        %v1704 = vpop.f32.mrf.mxu0
        %v1705 = vadd.f32 %v1595, %v1704
        %v1706 = vpop.f32.mrf.mxu0
        %v1707 = vadd.f32 %v1599, %v1706
        %1708 = vmatprep.mubr.f32.mxu0 %v1289
        %1709 = vmatmul.mubr.f32.gmra.mxu0 %v1288
        %v1710 = vpop.f32.mrf.mxu0
        %v1711 = vadd.f32 %v1595, %v1710
        %v1712 = vpop.f32.mrf.mxu0
        %v1713 = vadd.f32 %v1599, %v1712
        %1714 = vmatprep.mubr.f32.mxu0 %v1293
        %1715 = vmatmul.mubr.f32.gmra.mxu0 %v1292
        %v1716 = vpop.f32.mrf.mxu0
        %v1717 = vadd.f32 %v1595, %v1716
        %v1718 = vpop.f32.mrf.mxu0
        %v1719 = vadd.f32 %v1599, %v1718
        %1720 = vmatprep.mubr.f32.mxu0 %v1297
        %1721 = vmatmul.mubr.f32.gmra.mxu0 %v1296
        %v1722 = vpop.f32.mrf.mxu0
        %v1723 = vadd.f32 %v1595, %v1722
        %v1724 = vpop.f32.mrf.mxu0
        %v1725 = vadd.f32 %v1599, %v1724
        %1726 = vmatprep.mubr.f32.mxu0 %v1301
        %1727 = vmatmul.mubr.f32.gmra.mxu0 %v1300
        %v1728 = vpop.f32.mrf.mxu0
        %v1729 = vadd.f32 %v1595, %v1728
        %v1730 = vpop.f32.mrf.mxu0
        %v1731 = vadd.f32 %v1599, %v1730
        %1732 = vmatprep.mubr.f32.mxu0 %v1305
        %1733 = vmatmul.mubr.f32.gmra.mxu0 %v1304
        %v1734 = vpop.f32.mrf.mxu0
        %v1735 = vadd.f32 %v1595, %v1734
        %v1736 = vpop.f32.mrf.mxu0
        %v1737 = vadd.f32 %v1599, %v1736
        %1738 = vmatprep.mubr.f32.mxu0 %v1309
        %1739 = vmatmul.mubr.f32.gmra.mxu0 %v1308
        %v1740 = vpop.f32.mrf.mxu0
        %v1741 = vadd.f32 %v1595, %v1740
        %v1742 = vpop.f32.mrf.mxu0
        %v1743 = vadd.f32 %v1599, %v1742
        %1744 = vmatprep.mubr.f32.mxu0 %v1313
        %1745 = vmatmul.mubr.f32.gmra.mxu0 %v1312
        %v1746 = vpop.f32.mrf.mxu0
        %v1747 = vadd.f32 %v1595, %v1746
        %v1748 = vpop.f32.mrf.mxu0
        %v1749 = vadd.f32 %v1599, %v1748
        %1750 = vdwg.mxu0
        %1751 = vmatprep.subr.mxu0 %v1505
        %1752 = vmatpush1.msra.mxu0 %v1504
        %1753 = vmatprep.subr.mxu0 %v1501
        %1754 = vmatpush1.msra.mxu0 %v1500
        %1755 = vmatprep.subr.mxu0 %v1497
        %1756 = vmatpush1.msra.mxu0 %v1496
        %1757 = vmatprep.subr.mxu0 %v1493
        %1758 = vmatpush1.msra.mxu0 %v1492
        %1759 = vmatprep.subr.mxu0 %v1489
        %1760 = vmatpush1.msra.mxu0 %v1488
        %1761 = vmatprep.subr.mxu0 %v1485
        %1762 = vmatpush1.msra.mxu0 %v1484
        %1763 = vmatprep.subr.mxu0 %v1481
        %1764 = vmatpush1.msra.mxu0 %v1480
        %1765 = vmatprep.subr.mxu0 %v1477
        %1766 = vmatpush1.msra.mxu0 %v1476
        %1767 = vmatprep.subr.mxu0 %v1473
        %1768 = vmatpush1.msra.mxu0 %v1472
        %1769 = vmatprep.subr.mxu0 %v1469
        %1770 = vmatpush1.msra.mxu0 %v1468
        %1771 = vmatprep.subr.mxu0 %v1465
        %1772 = vmatpush1.msra.mxu0 %v1464
        %1773 = vmatprep.subr.mxu0 %v1461
        %1774 = vmatpush1.msra.mxu0 %v1460
        %1775 = vmatprep.subr.mxu0 %v1457
        %1776 = vmatpush1.msra.mxu0 %v1456
        %1777 = vmatprep.subr.mxu0 %v1453
        %1778 = vmatpush1.msra.mxu0 %v1452
        %1779 = vmatprep.subr.mxu0 %v1449
        %1780 = vmatpush1.msra.mxu0 %v1448
        %1781 = vmatprep.subr.mxu0 %v1445
        %1782 = vmatpush1.msra.mxu0 %v1444
        %1783 = vmatprep.subr.mxu0 %v1569
        %1784 = vmatpush2.msra.mxu0 %v1568
        %1785 = vmatprep.subr.mxu0 %v1565
        %1786 = vmatpush2.msra.mxu0 %v1564
        %1787 = vmatprep.subr.mxu0 %v1561
        %1788 = vmatpush2.msra.mxu0 %v1560
        %1789 = vmatprep.subr.mxu0 %v1557
        %1790 = vmatpush2.msra.mxu0 %v1556
        %1791 = vmatprep.subr.mxu0 %v1553
        %1792 = vmatpush2.msra.mxu0 %v1552
        %1793 = vmatprep.subr.mxu0 %v1549
        %1794 = vmatpush2.msra.mxu0 %v1548
        %1795 = vmatprep.subr.mxu0 %v1545
        %1796 = vmatpush2.msra.mxu0 %v1544
        %1797 = vmatprep.subr.mxu0 %v1541
        %1798 = vmatpush2.msra.mxu0 %v1540
        %1799 = vmatprep.subr.mxu0 %v1537
        %1800 = vmatpush2.msra.mxu0 %v1536
        %1801 = vmatprep.subr.mxu0 %v1533
        %1802 = vmatpush2.msra.mxu0 %v1532
        %1803 = vmatprep.subr.mxu0 %v1529
        %1804 = vmatpush2.msra.mxu0 %v1528
        %1805 = vmatprep.subr.mxu0 %v1525
        %1806 = vmatpush2.msra.mxu0 %v1524
        %1807 = vmatprep.subr.mxu0 %v1521
        %1808 = vmatpush2.msra.mxu0 %v1520
        %1809 = vmatprep.subr.mxu0 %v1517
        %1810 = vmatpush2.msra.mxu0 %v1516
        %1811 = vmatprep.subr.mxu0 %v1513
        %1812 = vmatpush2.msra.mxu0 %v1512
        %1813 = vmatprep.subr.mxu0 %v1509
        %1814 = vmatpush2.msra.mxu0 %v1508
        %1815 = vmatprep.mubr.f32.mxu0 %v1267
        %1816 = vmatmul.mubr.f32.gmra.mxu0 %v1266
        %v1817 = vpop.f32.mrf.mxu0
        %v1818 = vadd.f32 %v1675, %v1817
        %v1819 = vpop.f32.mrf.mxu0
        %v1820 = vadd.f32 %v1677, %v1819
        %1821 = vmatprep.mubr.f32.mxu0 %v1271
        %1822 = vmatmul.mubr.f32.gmra.mxu0 %v1270
        %v1823 = vpop.f32.mrf.mxu0
        %v1824 = vadd.f32 %v1681, %v1823
        %v1825 = vpop.f32.mrf.mxu0
        %v1826 = vadd.f32 %v1683, %v1825
        %1827 = vmatprep.mubr.f32.mxu0 %v1275
        %1828 = vmatmul.mubr.f32.gmra.mxu0 %v1274
        %v1829 = vpop.f32.mrf.mxu0
        %v1830 = vadd.f32 %v1687, %v1829
        %v1831 = vpop.f32.mrf.mxu0
        %v1832 = vadd.f32 %v1689, %v1831
        %1833 = vmatprep.mubr.f32.mxu0 %v1279
        %1834 = vmatmul.mubr.f32.gmra.mxu0 %v1278
        %v1835 = vpop.f32.mrf.mxu0
        %v1836 = vadd.f32 %v1693, %v1835
        %v1837 = vpop.f32.mrf.mxu0
        %v1838 = vadd.f32 %v1695, %v1837
        %1839 = vmatprep.mubr.f32.mxu0 %v1283
        %1840 = vmatmul.mubr.f32.gmra.mxu0 %v1282
        %v1841 = vpop.f32.mrf.mxu0
        %v1842 = vadd.f32 %v1699, %v1841
        %v1843 = vpop.f32.mrf.mxu0
        %v1844 = vadd.f32 %v1701, %v1843
        %1845 = vmatprep.mubr.f32.mxu0 %v1287
        %1846 = vmatmul.mubr.f32.gmra.mxu0 %v1286
        %v1847 = vpop.f32.mrf.mxu0
        %v1848 = vadd.f32 %v1705, %v1847
        %v1849 = vpop.f32.mrf.mxu0
        %v1850 = vadd.f32 %v1707, %v1849
        %1851 = vmatprep.mubr.f32.mxu0 %v1291
        %1852 = vmatmul.mubr.f32.gmra.mxu0 %v1290
        %v1853 = vpop.f32.mrf.mxu0
        %v1854 = vadd.f32 %v1711, %v1853
        %v1855 = vpop.f32.mrf.mxu0
        %v1856 = vadd.f32 %v1713, %v1855
        %1857 = vmatprep.mubr.f32.mxu0 %v1295
        %1858 = vmatmul.mubr.f32.gmra.mxu0 %v1294
        %v1859 = vpop.f32.mrf.mxu0
        %v1860 = vadd.f32 %v1717, %v1859
        %v1861 = vpop.f32.mrf.mxu0
        %v1862 = vadd.f32 %v1719, %v1861
        %1863 = vmatprep.mubr.f32.mxu0 %v1299
        %1864 = vmatmul.mubr.f32.gmra.mxu0 %v1298
        %v1865 = vpop.f32.mrf.mxu0
        %v1866 = vadd.f32 %v1723, %v1865
        %v1867 = vpop.f32.mrf.mxu0
        %v1868 = vadd.f32 %v1725, %v1867
        %1869 = vmatprep.mubr.f32.mxu0 %v1303
        %1870 = vmatmul.mubr.f32.gmra.mxu0 %v1302
        %v1871 = vpop.f32.mrf.mxu0
        %v1872 = vadd.f32 %v1729, %v1871
        %v1873 = vpop.f32.mrf.mxu0
        %v1874 = vadd.f32 %v1731, %v1873
        %1875 = vmatprep.mubr.f32.mxu0 %v1307
        %1876 = vmatmul.mubr.f32.gmra.mxu0 %v1306
        %v1877 = vpop.f32.mrf.mxu0
        %v1878 = vadd.f32 %v1735, %v1877
        %v1879 = vpop.f32.mrf.mxu0
        %v1880 = vadd.f32 %v1737, %v1879
        %1881 = vmatprep.mubr.f32.mxu0 %v1311
        %1882 = vmatmul.mubr.f32.gmra.mxu0 %v1310
        %v1883 = vpop.f32.mrf.mxu0
        %v1884 = vadd.f32 %v1741, %v1883
        %v1885 = vpop.f32.mrf.mxu0
        %v1886 = vadd.f32 %v1743, %v1885
        %1887 = vmatprep.mubr.f32.mxu0 %v1315
        %1888 = vmatmul.mubr.f32.gmra.mxu0 %v1314
        %v1889 = vpop.f32.mrf.mxu0
        %v1890 = vadd.f32 %v1747, %v1889
        %v1891 = vpop.f32.mrf.mxu0
        %v1892 = vadd.f32 %v1749, %v1891
        %1893 = vdwg.mxu0
        %1894 = vmatprep.subr.mxu0 %v1379
        %1895 = vmatpush1.msra.mxu0 %v1378
        %1896 = vmatprep.subr.mxu0 %v1375
        %1897 = vmatpush1.msra.mxu0 %v1374
        %1898 = vmatprep.subr.mxu0 %v1371
        %1899 = vmatpush1.msra.mxu0 %v1370
        %1900 = vmatprep.subr.mxu0 %v1367
        %1901 = vmatpush1.msra.mxu0 %v1366
        %1902 = vmatprep.subr.mxu0 %v1363
        %1903 = vmatpush1.msra.mxu0 %v1362
        %1904 = vmatprep.subr.mxu0 %v1359
        %1905 = vmatpush1.msra.mxu0 %v1358
        %1906 = vmatprep.subr.mxu0 %v1355
        %1907 = vmatpush1.msra.mxu0 %v1354
        %1908 = vmatprep.subr.mxu0 %v1351
        %1909 = vmatpush1.msra.mxu0 %v1350
        %1910 = vmatprep.subr.mxu0 %v1347
        %1911 = vmatpush1.msra.mxu0 %v1346
        %1912 = vmatprep.subr.mxu0 %v1343
        %1913 = vmatpush1.msra.mxu0 %v1342
        %1914 = vmatprep.subr.mxu0 %v1339
        %1915 = vmatpush1.msra.mxu0 %v1338
        %1916 = vmatprep.subr.mxu0 %v1335
        %1917 = vmatpush1.msra.mxu0 %v1334
        %1918 = vmatprep.subr.mxu0 %v1331
        %1919 = vmatpush1.msra.mxu0 %v1330
        %1920 = vmatprep.subr.mxu0 %v1327
        %1921 = vmatpush1.msra.mxu0 %v1326
        %1922 = vmatprep.subr.mxu0 %v1323
        %1923 = vmatpush1.msra.mxu0 %v1322
        %1924 = vmatprep.subr.mxu0 %v1319
        %1925 = vmatpush1.msra.mxu0 %v1318
        %1926 = vmatprep.subr.mxu0 %v1443
        %1927 = vmatpush2.msra.mxu0 %v1442
        %1928 = vmatprep.subr.mxu0 %v1439
        %1929 = vmatpush2.msra.mxu0 %v1438
        %1930 = vmatprep.subr.mxu0 %v1435
        %1931 = vmatpush2.msra.mxu0 %v1434
        %1932 = vmatprep.subr.mxu0 %v1431
        %1933 = vmatpush2.msra.mxu0 %v1430
        %1934 = vmatprep.subr.mxu0 %v1427
        %1935 = vmatpush2.msra.mxu0 %v1426
        %1936 = vmatprep.subr.mxu0 %v1423
        %1937 = vmatpush2.msra.mxu0 %v1422
        %1938 = vmatprep.subr.mxu0 %v1419
        %1939 = vmatpush2.msra.mxu0 %v1418
        %1940 = vmatprep.subr.mxu0 %v1415
        %1941 = vmatpush2.msra.mxu0 %v1414
        %1942 = vmatprep.subr.mxu0 %v1411
        %1943 = vmatpush2.msra.mxu0 %v1410
        %1944 = vmatprep.subr.mxu0 %v1407
        %1945 = vmatpush2.msra.mxu0 %v1406
        %1946 = vmatprep.subr.mxu0 %v1403
        %1947 = vmatpush2.msra.mxu0 %v1402
        %1948 = vmatprep.subr.mxu0 %v1399
        %1949 = vmatpush2.msra.mxu0 %v1398
        %1950 = vmatprep.subr.mxu0 %v1395
        %1951 = vmatpush2.msra.mxu0 %v1394
        %1952 = vmatprep.subr.mxu0 %v1391
        %1953 = vmatpush2.msra.mxu0 %v1390
        %1954 = vmatprep.subr.mxu0 %v1387
        %1955 = vmatpush2.msra.mxu0 %v1386
        %1956 = vmatprep.subr.mxu0 %v1383
        %1957 = vmatpush2.msra.mxu0 %v1382
        %1958 = vmatprep.mubr.f32.mxu0 %v1265
        %1959 = vmatmul.mubr.f32.gmra.mxu0 %v1264
        %v1960 = vpop.f32.mrf.mxu0
        %v1961 = vadd.f32 %v1603, %v1960
        %v1962 = vpop.f32.mrf.mxu0
        %v1963 = vadd.f32 %v1607, %v1962
        %1964 = vmatprep.mubr.f32.mxu0 %v1269
        %1965 = vmatmul.mubr.f32.gmra.mxu0 %v1268
        %v1966 = vpop.f32.mrf.mxu0
        %v1967 = vadd.f32 %v1603, %v1966
        %v1968 = vpop.f32.mrf.mxu0
        %v1969 = vadd.f32 %v1607, %v1968
        %1970 = vmatprep.mubr.f32.mxu0 %v1273
        %1971 = vmatmul.mubr.f32.gmra.mxu0 %v1272
        %v1972 = vpop.f32.mrf.mxu0
        %v1973 = vadd.f32 %v1603, %v1972
        %v1974 = vpop.f32.mrf.mxu0
        %v1975 = vadd.f32 %v1607, %v1974
        %1976 = vmatprep.mubr.f32.mxu0 %v1277
        %1977 = vmatmul.mubr.f32.gmra.mxu0 %v1276
        %v1978 = vpop.f32.mrf.mxu0
        %v1979 = vadd.f32 %v1603, %v1978
        %v1980 = vpop.f32.mrf.mxu0
        %v1981 = vadd.f32 %v1607, %v1980
        %1982 = vmatprep.mubr.f32.mxu0 %v1281
        %1983 = vmatmul.mubr.f32.gmra.mxu0 %v1280
        %v1984 = vpop.f32.mrf.mxu0
        %v1985 = vadd.f32 %v1603, %v1984
        %v1986 = vpop.f32.mrf.mxu0
        %v1987 = vadd.f32 %v1607, %v1986
        %1988 = vmatprep.mubr.f32.mxu0 %v1285
        %1989 = vmatmul.mubr.f32.gmra.mxu0 %v1284
        %v1990 = vpop.f32.mrf.mxu0
        %v1991 = vadd.f32 %v1603, %v1990
        %v1992 = vpop.f32.mrf.mxu0
        %v1993 = vadd.f32 %v1607, %v1992
        %1994 = vmatprep.mubr.f32.mxu0 %v1289
        %1995 = vmatmul.mubr.f32.gmra.mxu0 %v1288
        %v1996 = vpop.f32.mrf.mxu0
        %v1997 = vadd.f32 %v1603, %v1996
        %v1998 = vpop.f32.mrf.mxu0
        %v1999 = vadd.f32 %v1607, %v1998
        %2000 = vmatprep.mubr.f32.mxu0 %v1293
        %2001 = vmatmul.mubr.f32.gmra.mxu0 %v1292
        %v2002 = vpop.f32.mrf.mxu0
        %v2003 = vadd.f32 %v1603, %v2002
        %v2004 = vpop.f32.mrf.mxu0
        %v2005 = vadd.f32 %v1607, %v2004
        %2006 = vmatprep.mubr.f32.mxu0 %v1297
        %2007 = vmatmul.mubr.f32.gmra.mxu0 %v1296
        %v2008 = vpop.f32.mrf.mxu0
        %v2009 = vadd.f32 %v1603, %v2008
        %v2010 = vpop.f32.mrf.mxu0
        %v2011 = vadd.f32 %v1607, %v2010
        %2012 = vmatprep.mubr.f32.mxu0 %v1301
        %2013 = vmatmul.mubr.f32.gmra.mxu0 %v1300
        %v2014 = vpop.f32.mrf.mxu0
        %v2015 = vadd.f32 %v1603, %v2014
        %v2016 = vpop.f32.mrf.mxu0
        %v2017 = vadd.f32 %v1607, %v2016
        %2018 = vmatprep.mubr.f32.mxu0 %v1305
        %2019 = vmatmul.mubr.f32.gmra.mxu0 %v1304
        %v2020 = vpop.f32.mrf.mxu0
        %v2021 = vadd.f32 %v1603, %v2020
        %v2022 = vpop.f32.mrf.mxu0
        %v2023 = vadd.f32 %v1607, %v2022
        %2024 = vmatprep.mubr.f32.mxu0 %v1309
        %2025 = vmatmul.mubr.f32.gmra.mxu0 %v1308
        %v2026 = vpop.f32.mrf.mxu0
        %v2027 = vadd.f32 %v1603, %v2026
        %v2028 = vpop.f32.mrf.mxu0
        %v2029 = vadd.f32 %v1607, %v2028
        %2030 = vmatprep.mubr.f32.mxu0 %v1313
        %2031 = vmatmul.mubr.f32.gmra.mxu0 %v1312
        %v2032 = vpop.f32.mrf.mxu0
        %v2033 = vadd.f32 %v1603, %v2032
        %v2034 = vpop.f32.mrf.mxu0
        %v2035 = vadd.f32 %v1607, %v2034
        %2036 = vdwg.mxu0
        %2037 = vmatprep.subr.mxu0 %v1507
        %2038 = vmatpush1.msra.mxu0 %v1506
        %2039 = vmatprep.subr.mxu0 %v1503
        %2040 = vmatpush1.msra.mxu0 %v1502
        %2041 = vmatprep.subr.mxu0 %v1499
        %2042 = vmatpush1.msra.mxu0 %v1498
        %2043 = vmatprep.subr.mxu0 %v1495
        %2044 = vmatpush1.msra.mxu0 %v1494
        %2045 = vmatprep.subr.mxu0 %v1491
        %2046 = vmatpush1.msra.mxu0 %v1490
        %2047 = vmatprep.subr.mxu0 %v1487
        %2048 = vmatpush1.msra.mxu0 %v1486
        %2049 = vmatprep.subr.mxu0 %v1483
        %2050 = vmatpush1.msra.mxu0 %v1482
        %2051 = vmatprep.subr.mxu0 %v1479
        %2052 = vmatpush1.msra.mxu0 %v1478
        %2053 = vmatprep.subr.mxu0 %v1475
        %2054 = vmatpush1.msra.mxu0 %v1474
        %2055 = vmatprep.subr.mxu0 %v1471
        %2056 = vmatpush1.msra.mxu0 %v1470
        %2057 = vmatprep.subr.mxu0 %v1467
        %2058 = vmatpush1.msra.mxu0 %v1466
        %2059 = vmatprep.subr.mxu0 %v1463
        %2060 = vmatpush1.msra.mxu0 %v1462
        %2061 = vmatprep.subr.mxu0 %v1459
        %2062 = vmatpush1.msra.mxu0 %v1458
        %2063 = vmatprep.subr.mxu0 %v1455
        %2064 = vmatpush1.msra.mxu0 %v1454
        %2065 = vmatprep.subr.mxu0 %v1451
        %2066 = vmatpush1.msra.mxu0 %v1450
        %2067 = vmatprep.subr.mxu0 %v1447
        %2068 = vmatpush1.msra.mxu0 %v1446
        %2069 = vmatprep.subr.mxu0 %v1571
        %2070 = vmatpush2.msra.mxu0 %v1570
        %2071 = vmatprep.subr.mxu0 %v1567
        %2072 = vmatpush2.msra.mxu0 %v1566
        %2073 = vmatprep.subr.mxu0 %v1563
        %2074 = vmatpush2.msra.mxu0 %v1562
        %2075 = vmatprep.subr.mxu0 %v1559
        %2076 = vmatpush2.msra.mxu0 %v1558
        %2077 = vmatprep.subr.mxu0 %v1555
        %2078 = vmatpush2.msra.mxu0 %v1554
        %2079 = vmatprep.subr.mxu0 %v1551
        %2080 = vmatpush2.msra.mxu0 %v1550
        %2081 = vmatprep.subr.mxu0 %v1547
        %2082 = vmatpush2.msra.mxu0 %v1546
        %2083 = vmatprep.subr.mxu0 %v1543
        %2084 = vmatpush2.msra.mxu0 %v1542
        %2085 = vmatprep.subr.mxu0 %v1539
        %2086 = vmatpush2.msra.mxu0 %v1538
        %2087 = vmatprep.subr.mxu0 %v1535
        %2088 = vmatpush2.msra.mxu0 %v1534
        %2089 = vmatprep.subr.mxu0 %v1531
        %2090 = vmatpush2.msra.mxu0 %v1530
        %2091 = vmatprep.subr.mxu0 %v1527
        %2092 = vmatpush2.msra.mxu0 %v1526
        %2093 = vmatprep.subr.mxu0 %v1523
        %2094 = vmatpush2.msra.mxu0 %v1522
        %2095 = vmatprep.subr.mxu0 %v1519
        %2096 = vmatpush2.msra.mxu0 %v1518
        %2097 = vmatprep.subr.mxu0 %v1515
        %2098 = vmatpush2.msra.mxu0 %v1514
        %2099 = vmatprep.subr.mxu0 %v1511
        %2100 = vmatpush2.msra.mxu0 %v1510
        %2101 = vmatprep.mubr.f32.mxu0 %v1267
        %2102 = vmatmul.mubr.f32.gmra.mxu0 %v1266
        %v2103 = vpop.f32.mrf.mxu0
        %v2104 = vadd.f32 %v1961, %v2103
        %v2105 = vpop.f32.mrf.mxu0
        %v2106 = vadd.f32 %v1963, %v2105
        %2107 = vmatprep.mubr.f32.mxu0 %v1271
        %2108 = vmatmul.mubr.f32.gmra.mxu0 %v1270
        %v2109 = vpop.f32.mrf.mxu0
        %v2110 = vadd.f32 %v1967, %v2109
        %v2111 = vpop.f32.mrf.mxu0
        %v2112 = vadd.f32 %v1969, %v2111
        %2113 = vmatprep.mubr.f32.mxu0 %v1275
        %2114 = vmatmul.mubr.f32.gmra.mxu0 %v1274
        %v2115 = vpop.f32.mrf.mxu0
        %v2116 = vadd.f32 %v1973, %v2115
        %v2117 = vpop.f32.mrf.mxu0
        %v2118 = vadd.f32 %v1975, %v2117
        %2119 = vmatprep.mubr.f32.mxu0 %v1279
        %2120 = vmatmul.mubr.f32.gmra.mxu0 %v1278
        %v2121 = vpop.f32.mrf.mxu0
        %v2122 = vadd.f32 %v1979, %v2121
        %v2123 = vpop.f32.mrf.mxu0
        %v2124 = vadd.f32 %v1981, %v2123
        %2125 = vmatprep.mubr.f32.mxu0 %v1283
        %2126 = vmatmul.mubr.f32.gmra.mxu0 %v1282
        %v2127 = vpop.f32.mrf.mxu0
        %v2128 = vadd.f32 %v1985, %v2127
        %v2129 = vpop.f32.mrf.mxu0
        %v2130 = vadd.f32 %v1987, %v2129
        %2131 = vmatprep.mubr.f32.mxu0 %v1287
        %2132 = vmatmul.mubr.f32.gmra.mxu0 %v1286
        %v2133 = vpop.f32.mrf.mxu0
        %v2134 = vadd.f32 %v1991, %v2133
        %v2135 = vpop.f32.mrf.mxu0
        %v2136 = vadd.f32 %v1993, %v2135
        %2137 = vmatprep.mubr.f32.mxu0 %v1291
        %2138 = vmatmul.mubr.f32.gmra.mxu0 %v1290
        %v2139 = vpop.f32.mrf.mxu0
        %v2140 = vadd.f32 %v1997, %v2139
        %v2141 = vpop.f32.mrf.mxu0
        %v2142 = vadd.f32 %v1999, %v2141
        %2143 = vmatprep.mubr.f32.mxu0 %v1295
        %2144 = vmatmul.mubr.f32.gmra.mxu0 %v1294
        %v2145 = vpop.f32.mrf.mxu0
        %v2146 = vadd.f32 %v2003, %v2145
        %v2147 = vpop.f32.mrf.mxu0
        %v2148 = vadd.f32 %v2005, %v2147
        %2149 = vmatprep.mubr.f32.mxu0 %v1299
        %2150 = vmatmul.mubr.f32.gmra.mxu0 %v1298
        %v2151 = vpop.f32.mrf.mxu0
        %v2152 = vadd.f32 %v2009, %v2151
        %v2153 = vpop.f32.mrf.mxu0
        %v2154 = vadd.f32 %v2011, %v2153
        %2155 = vmatprep.mubr.f32.mxu0 %v1303
        %2156 = vmatmul.mubr.f32.gmra.mxu0 %v1302
        %v2157 = vpop.f32.mrf.mxu0
        %v2158 = vadd.f32 %v2015, %v2157
        %v2159 = vpop.f32.mrf.mxu0
        %v2160 = vadd.f32 %v2017, %v2159
        %2161 = vmatprep.mubr.f32.mxu0 %v1307
        %2162 = vmatmul.mubr.f32.gmra.mxu0 %v1306
        %v2163 = vpop.f32.mrf.mxu0
        %v2164 = vadd.f32 %v2021, %v2163
        %v2165 = vpop.f32.mrf.mxu0
        %v2166 = vadd.f32 %v2023, %v2165
        %2167 = vmatprep.mubr.f32.mxu0 %v1311
        %2168 = vmatmul.mubr.f32.gmra.mxu0 %v1310
        %v2169 = vpop.f32.mrf.mxu0
        %v2170 = vadd.f32 %v2027, %v2169
        %v2171 = vpop.f32.mrf.mxu0
        %v2172 = vadd.f32 %v2029, %v2171
        %2173 = vmatprep.mubr.f32.mxu0 %v1315
        %2174 = vmatmul.mubr.f32.gmra.mxu0 %v1314
        %v2175 = vpop.f32.mrf.mxu0
        %v2176 = vadd.f32 %v2033, %v2175
        %v2177 = vpop.f32.mrf.mxu0
        %v2178 = vadd.f32 %v2035, %v2177
        %2179 = vdwg.mxu0
        %v2180 = vmax.f32 %v1818, 0.0
        %v2181 = vmax.f32 %v1820, 0.0
        %v2182 = vmax.f32 %v2104, 0.0
        %v2183 = vmax.f32 %v2106, 0.0
        %v2184 = vmax.f32 %v1824, 0.0
        %v2185 = vmax.f32 %v1826, 0.0
        %v2186 = vmax.f32 %v2110, 0.0
        %v2187 = vmax.f32 %v2112, 0.0
        %v2188 = vmax.f32 %v1830, 0.0
        %v2189 = vmax.f32 %v1832, 0.0
        %v2190 = vmax.f32 %v2116, 0.0
        %v2191 = vmax.f32 %v2118, 0.0
        %v2192 = vmax.f32 %v1836, 0.0
        %v2193 = vmax.f32 %v1838, 0.0
        %v2194 = vmax.f32 %v2122, 0.0
        %v2195 = vmax.f32 %v2124, 0.0
        %v2196 = vmax.f32 %v1842, 0.0
        %v2197 = vmax.f32 %v1844, 0.0
        %v2198 = vmax.f32 %v2128, 0.0
        %v2199 = vmax.f32 %v2130, 0.0
        %v2200 = vmax.f32 %v1848, 0.0
        %v2201 = vmax.f32 %v1850, 0.0
        %v2202 = vmax.f32 %v2134, 0.0
        %v2203 = vmax.f32 %v2136, 0.0
        %v2204 = vmax.f32 %v1854, 0.0
        %v2205 = vmax.f32 %v1856, 0.0
        %v2206 = vmax.f32 %v2140, 0.0
        %v2207 = vmax.f32 %v2142, 0.0
        %v2208 = vmax.f32 %v1860, 0.0
        %v2209 = vmax.f32 %v1862, 0.0
        %v2210 = vmax.f32 %v2146, 0.0
        %v2211 = vmax.f32 %v2148, 0.0
        %v2212 = vmax.f32 %v1866, 0.0
        %v2213 = vmax.f32 %v1868, 0.0
        %v2214 = vmax.f32 %v2152, 0.0
        %v2215 = vmax.f32 %v2154, 0.0
        %v2216 = vmax.f32 %v1872, 0.0
        %v2217 = vmax.f32 %v1874, 0.0
        %v2218 = vmax.f32 %v2158, 0.0
        %v2219 = vmax.f32 %v2160, 0.0
        %v2220 = vmax.f32 %v1878, 0.0
        %v2221 = vmax.f32 %v1880, 0.0
        %v2222 = vmax.f32 %v2164, 0.0
        %v2223 = vmax.f32 %v2166, 0.0
        %v2224 = vmax.f32 %v1884, 0.0
        %v2225 = vmax.f32 %v1886, 0.0
        %v2226 = vmax.f32 %v2170, 0.0
        %v2227 = vmax.f32 %v2172, 0.0
        %v2228 = vmax.f32 %v1890, 0.0
        %v2229 = vmax.f32 %v1892, 0.0
        %v2230 = vmax.f32 %v2176, 0.0
        %v2231 = vmax.f32 %v2178, 0.0
        %v2232 = vld [vmem:[#allocation8] sm:$0xff]
        %v2233 = vld [vmem:[#allocation8 + $0x8] sm:$0xff]
        %v2234 = vld [vmem:[#allocation8 + $0x10] sm:$0xff]
        %v2235 = vld [vmem:[#allocation8 + $0x18] sm:$0xff]
        %v2236 = vld [vmem:[#allocation8 + $0x20] sm:$0xff]
        %v2237 = vld [vmem:[#allocation8 + $0x28] sm:$0xff]
        %v2238 = vld [vmem:[#allocation8 + $0x30] sm:$0xff]
        %v2239 = vld [vmem:[#allocation8 + $0x38] sm:$0xff]
        %v2240 = vld [vmem:[#allocation8 + $0x40] sm:$0xff]
        %v2241 = vld [vmem:[#allocation8 + $0x48] sm:$0xff]
        %v2242 = vld [vmem:[#allocation8 + $0x50] sm:$0xff]
        %v2243 = vld [vmem:[#allocation8 + $0x58] sm:$0xff]
        %v2244 = vld [vmem:[#allocation8 + $0x60] sm:$0xff]
        %v2245 = vld [vmem:[#allocation8 + $0x68] sm:$0xff]
        %v2246 = vld [vmem:[#allocation8 + $0x70] sm:$0xff]
        %v2247 = vld [vmem:[#allocation8 + $0x78] sm:$0xff]
        %v2248 = vld [vmem:[#allocation8 + $0x80] sm:$0xff]
        %v2249 = vld [vmem:[#allocation8 + $0x88] sm:$0xff]
        %v2250 = vld [vmem:[#allocation8 + $0x90] sm:$0xff]
        %v2251 = vld [vmem:[#allocation8 + $0x98] sm:$0xff]
        %v2252 = vld [vmem:[#allocation8 + $0xa0] sm:$0xff]
        %v2253 = vld [vmem:[#allocation8 + $0xa8] sm:$0xff]
        %v2254 = vld [vmem:[#allocation8 + $0xb0] sm:$0xff]
        %v2255 = vld [vmem:[#allocation8 + $0xb8] sm:$0xff]
        %v2256 = vld [vmem:[#allocation8 + $0xc0] sm:$0xff]
        %v2257 = vld [vmem:[#allocation8 + $0xc8] sm:$0xff]
        %v2258 = vld [vmem:[#allocation8 + $0xd0] sm:$0xff]
        %v2259 = vld [vmem:[#allocation8 + $0xd8] sm:$0xff]
        %v2260 = vld [vmem:[#allocation8 + $0xe0] sm:$0xff]
        %v2261 = vld [vmem:[#allocation8 + $0xe8] sm:$0xff]
        %v2262 = vld [vmem:[#allocation8 + $0xf0] sm:$0xff]
        %v2263 = vld [vmem:[#allocation8 + $0xf8] sm:$0xff]
        %v2264 = vld [vmem:[#allocation8 + $0x100] sm:$0xff]
        %v2265 = vld [vmem:[#allocation8 + $0x108] sm:$0xff]
        %v2266 = vld [vmem:[#allocation8 + $0x110] sm:$0xff]
        %v2267 = vld [vmem:[#allocation8 + $0x118] sm:$0xff]
        %v2268 = vld [vmem:[#allocation8 + $0x120] sm:$0xff]
        %v2269 = vld [vmem:[#allocation8 + $0x128] sm:$0xff]
        %v2270 = vld [vmem:[#allocation8 + $0x130] sm:$0xff]
        %v2271 = vld [vmem:[#allocation8 + $0x138] sm:$0xff]
        %v2272 = vld [vmem:[#allocation8 + $0x140] sm:$0xff]
        %v2273 = vld [vmem:[#allocation8 + $0x148] sm:$0xff]
        %v2274 = vld [vmem:[#allocation8 + $0x150] sm:$0xff]
        %v2275 = vld [vmem:[#allocation8 + $0x158] sm:$0xff]
        %v2276 = vld [vmem:[#allocation8 + $0x160] sm:$0xff]
        %v2277 = vld [vmem:[#allocation8 + $0x168] sm:$0xff]
        %v2278 = vld [vmem:[#allocation8 + $0x170] sm:$0xff]
        %v2279 = vld [vmem:[#allocation8 + $0x178] sm:$0xff]
        %v2280 = vld [vmem:[#allocation8 + $0x180] sm:$0xff]
        %v2281 = vld [vmem:[#allocation8 + $0x188] sm:$0xff]
        %v2282 = vld [vmem:[#allocation8 + $0x190] sm:$0xff]
        %v2283 = vld [vmem:[#allocation8 + $0x198] sm:$0xff]
        %v2284 = vld [vmem:[#allocation8 + $0x1a0] sm:$0xff]
        %v2285 = vld [vmem:[#allocation8 + $0x1a8] sm:$0xff]
        %v2286 = vld [vmem:[#allocation8 + $0x1b0] sm:$0xff]
        %v2287 = vld [vmem:[#allocation8 + $0x1b8] sm:$0xff]
        %v2288 = vld [vmem:[#allocation8 + $0x1c0] sm:$0xff]
        %v2289 = vld [vmem:[#allocation8 + $0x1c8] sm:$0xff]
        %v2290 = vld [vmem:[#allocation8 + $0x1d0] sm:$0xff]
        %v2291 = vld [vmem:[#allocation8 + $0x1d8] sm:$0xff]
        %v2292 = vld [vmem:[#allocation8 + $0x1e0] sm:$0xff]
        %v2293 = vld [vmem:[#allocation8 + $0x1e8] sm:$0xff]
        %v2294 = vld [vmem:[#allocation8 + $0x1f0] sm:$0xff]
        %v2295 = vld [vmem:[#allocation8 + $0x1f8] sm:$0xff]
        %v2296 = vld [vmem:[#allocation8 + $0x200] sm:$0xff]
        %v2297 = vld [vmem:[#allocation8 + $0x208] sm:$0xff]
        %v2298 = vld [vmem:[#allocation8 + $0x210] sm:$0xff]
        %v2299 = vld [vmem:[#allocation8 + $0x218] sm:$0xff]
        %v2300 = vld [vmem:[#allocation8 + $0x220] sm:$0xff]
        %v2301 = vld [vmem:[#allocation8 + $0x228] sm:$0xff]
        %v2302 = vld [vmem:[#allocation8 + $0x230] sm:$0xff]
        %v2303 = vld [vmem:[#allocation8 + $0x238] sm:$0xff]
        %v2304 = vld [vmem:[#allocation8 + $0x240] sm:$0xff]
        %v2305 = vld [vmem:[#allocation8 + $0x248] sm:$0xff]
        %v2306 = vld [vmem:[#allocation8 + $0x250] sm:$0xff]
        %v2307 = vld [vmem:[#allocation8 + $0x258] sm:$0xff]
        %v2308 = vld [vmem:[#allocation8 + $0x260] sm:$0xff]
        %v2309 = vld [vmem:[#allocation8 + $0x268] sm:$0xff]
        %v2310 = vld [vmem:[#allocation8 + $0x270] sm:$0xff]
        %v2311 = vld [vmem:[#allocation8 + $0x278] sm:$0xff]
        %v2312 = vld [vmem:[#allocation8 + $0x280] sm:$0xff]
        %v2313 = vld [vmem:[#allocation8 + $0x288] sm:$0xff]
        %v2314 = vld [vmem:[#allocation8 + $0x290] sm:$0xff]
        %v2315 = vld [vmem:[#allocation8 + $0x298] sm:$0xff]
        %v2316 = vld [vmem:[#allocation8 + $0x2a0] sm:$0xff]
        %v2317 = vld [vmem:[#allocation8 + $0x2a8] sm:$0xff]
        %v2318 = vld [vmem:[#allocation8 + $0x2b0] sm:$0xff]
        %v2319 = vld [vmem:[#allocation8 + $0x2b8] sm:$0xff]
        %v2320 = vld [vmem:[#allocation8 + $0x2c0] sm:$0xff]
        %v2321 = vld [vmem:[#allocation8 + $0x2c8] sm:$0xff]
        %v2322 = vld [vmem:[#allocation8 + $0x2d0] sm:$0xff]
        %v2323 = vld [vmem:[#allocation8 + $0x2d8] sm:$0xff]
        %v2324 = vld [vmem:[#allocation8 + $0x2e0] sm:$0xff]
        %v2325 = vld [vmem:[#allocation8 + $0x2e8] sm:$0xff]
        %v2326 = vld [vmem:[#allocation8 + $0x2f0] sm:$0xff]
        %v2327 = vld [vmem:[#allocation8 + $0x2f8] sm:$0xff]
        %v2328 = vld [vmem:[#allocation8 + $0x300] sm:$0xff]
        %v2329 = vld [vmem:[#allocation8 + $0x308] sm:$0xff]
        %v2330 = vld [vmem:[#allocation8 + $0x310] sm:$0xff]
        %v2331 = vld [vmem:[#allocation8 + $0x318] sm:$0xff]
        %v2332 = vld [vmem:[#allocation8 + $0x320] sm:$0xff]
        %v2333 = vld [vmem:[#allocation8 + $0x328] sm:$0xff]
        %v2334 = vld [vmem:[#allocation8 + $0x330] sm:$0xff]
        %v2335 = vld [vmem:[#allocation8 + $0x338] sm:$0xff]
        %v2336 = vld [vmem:[#allocation8 + $0x340] sm:$0xff]
        %v2337 = vld [vmem:[#allocation8 + $0x348] sm:$0xff]
        %v2338 = vld [vmem:[#allocation8 + $0x350] sm:$0xff]
        %v2339 = vld [vmem:[#allocation8 + $0x358] sm:$0xff]
        %v2340 = vld [vmem:[#allocation8 + $0x360] sm:$0xff]
        %v2341 = vld [vmem:[#allocation8 + $0x368] sm:$0xff]
        %v2342 = vld [vmem:[#allocation8 + $0x370] sm:$0xff]
        %v2343 = vld [vmem:[#allocation8 + $0x378] sm:$0xff]
        %v2344 = vld [vmem:[#allocation8 + $0x380] sm:$0xff]
        %v2345 = vld [vmem:[#allocation8 + $0x388] sm:$0xff]
        %v2346 = vld [vmem:[#allocation8 + $0x390] sm:$0xff]
        %v2347 = vld [vmem:[#allocation8 + $0x398] sm:$0xff]
        %v2348 = vld [vmem:[#allocation8 + $0x3a0] sm:$0xff]
        %v2349 = vld [vmem:[#allocation8 + $0x3a8] sm:$0xff]
        %v2350 = vld [vmem:[#allocation8 + $0x3b0] sm:$0xff]
        %v2351 = vld [vmem:[#allocation8 + $0x3b8] sm:$0xff]
        %v2352 = vld [vmem:[#allocation8 + $0x3c0] sm:$0xff]
        %v2353 = vld [vmem:[#allocation8 + $0x3c8] sm:$0xff]
        %v2354 = vld [vmem:[#allocation8 + $0x3d0] sm:$0xff]
        %v2355 = vld [vmem:[#allocation8 + $0x3d8] sm:$0xff]
        %v2356 = vld [vmem:[#allocation8 + $0x3e0] sm:$0xff]
        %v2357 = vld [vmem:[#allocation8 + $0x3e8] sm:$0xff]
        %v2358 = vld [vmem:[#allocation8 + $0x3f0] sm:$0xff]
        %v2359 = vld [vmem:[#allocation8 + $0x3f8] sm:$0xff]
        %v2360 = vld [vmem:[#allocation8 + $0x400] sm:$0xff]
        %v2361 = vld [vmem:[#allocation8 + $0x408] sm:$0xff]
        %v2362 = vld [vmem:[#allocation8 + $0x410] sm:$0xff]
        %v2363 = vld [vmem:[#allocation8 + $0x418] sm:$0xff]
        %v2364 = vld [vmem:[#allocation8 + $0x420] sm:$0xff]
        %v2365 = vld [vmem:[#allocation8 + $0x428] sm:$0xff]
        %v2366 = vld [vmem:[#allocation8 + $0x430] sm:$0xff]
        %v2367 = vld [vmem:[#allocation8 + $0x438] sm:$0xff]
        %v2368 = vld [vmem:[#allocation8 + $0x440] sm:$0xff]
        %v2369 = vld [vmem:[#allocation8 + $0x448] sm:$0xff]
        %v2370 = vld [vmem:[#allocation8 + $0x450] sm:$0xff]
        %v2371 = vld [vmem:[#allocation8 + $0x458] sm:$0xff]
        %v2372 = vld [vmem:[#allocation8 + $0x460] sm:$0xff]
        %v2373 = vld [vmem:[#allocation8 + $0x468] sm:$0xff]
        %v2374 = vld [vmem:[#allocation8 + $0x470] sm:$0xff]
        %v2375 = vld [vmem:[#allocation8 + $0x478] sm:$0xff]
        %v2376 = vld [vmem:[#allocation8 + $0x480] sm:$0xff]
        %v2377 = vld [vmem:[#allocation8 + $0x488] sm:$0xff]
        %v2378 = vld [vmem:[#allocation8 + $0x490] sm:$0xff]
        %v2379 = vld [vmem:[#allocation8 + $0x498] sm:$0xff]
        %v2380 = vld [vmem:[#allocation8 + $0x4a0] sm:$0xff]
        %v2381 = vld [vmem:[#allocation8 + $0x4a8] sm:$0xff]
        %v2382 = vld [vmem:[#allocation8 + $0x4b0] sm:$0xff]
        %v2383 = vld [vmem:[#allocation8 + $0x4b8] sm:$0xff]
        %v2384 = vld [vmem:[#allocation8 + $0x4c0] sm:$0xff]
        %v2385 = vld [vmem:[#allocation8 + $0x4c8] sm:$0xff]
        %v2386 = vld [vmem:[#allocation8 + $0x4d0] sm:$0xff]
        %v2387 = vld [vmem:[#allocation8 + $0x4d8] sm:$0xff]
        %v2388 = vld [vmem:[#allocation8 + $0x4e0] sm:$0xff]
        %v2389 = vld [vmem:[#allocation8 + $0x4e8] sm:$0xff]
        %v2390 = vld [vmem:[#allocation8 + $0x4f0] sm:$0xff]
        %v2391 = vld [vmem:[#allocation8 + $0x4f8] sm:$0xff]
        %v2392 = vld [vmem:[#allocation8 + $0x500] sm:$0xff]
        %v2393 = vld [vmem:[#allocation8 + $0x508] sm:$0xff]
        %v2394 = vld [vmem:[#allocation8 + $0x510] sm:$0xff]
        %v2395 = vld [vmem:[#allocation8 + $0x518] sm:$0xff]
        %v2396 = vld [vmem:[#allocation8 + $0x520] sm:$0xff]
        %v2397 = vld [vmem:[#allocation8 + $0x528] sm:$0xff]
        %v2398 = vld [vmem:[#allocation8 + $0x530] sm:$0xff]
        %v2399 = vld [vmem:[#allocation8 + $0x538] sm:$0xff]
        %v2400 = vld [vmem:[#allocation8 + $0x540] sm:$0xff]
        %v2401 = vld [vmem:[#allocation8 + $0x548] sm:$0xff]
        %v2402 = vld [vmem:[#allocation8 + $0x550] sm:$0xff]
        %v2403 = vld [vmem:[#allocation8 + $0x558] sm:$0xff]
        %v2404 = vld [vmem:[#allocation8 + $0x560] sm:$0xff]
        %v2405 = vld [vmem:[#allocation8 + $0x568] sm:$0xff]
        %v2406 = vld [vmem:[#allocation8 + $0x570] sm:$0xff]
        %v2407 = vld [vmem:[#allocation8 + $0x578] sm:$0xff]
        %v2408 = vld [vmem:[#allocation8 + $0x580] sm:$0xff]
        %v2409 = vld [vmem:[#allocation8 + $0x588] sm:$0xff]
        %v2410 = vld [vmem:[#allocation8 + $0x590] sm:$0xff]
        %v2411 = vld [vmem:[#allocation8 + $0x598] sm:$0xff]
        %v2412 = vld [vmem:[#allocation8 + $0x5a0] sm:$0xff]
        %v2413 = vld [vmem:[#allocation8 + $0x5a8] sm:$0xff]
        %v2414 = vld [vmem:[#allocation8 + $0x5b0] sm:$0xff]
        %v2415 = vld [vmem:[#allocation8 + $0x5b8] sm:$0xff]
        %v2416 = vld [vmem:[#allocation8 + $0x5c0] sm:$0xff]
        %v2417 = vld [vmem:[#allocation8 + $0x5c8] sm:$0xff]
        %v2418 = vld [vmem:[#allocation8 + $0x5d0] sm:$0xff]
        %v2419 = vld [vmem:[#allocation8 + $0x5d8] sm:$0xff]
        %v2420 = vld [vmem:[#allocation8 + $0x5e0] sm:$0xff]
        %v2421 = vld [vmem:[#allocation8 + $0x5e8] sm:$0xff]
        %v2422 = vld [vmem:[#allocation8 + $0x5f0] sm:$0xff]
        %v2423 = vld [vmem:[#allocation8 + $0x5f8] sm:$0xff]
        %v2424 = vld [vmem:[#allocation8 + $0x600] sm:$0xff]
        %v2425 = vld [vmem:[#allocation8 + $0x608] sm:$0xff]
        %v2426 = vld [vmem:[#allocation8 + $0x610] sm:$0xff]
        %v2427 = vld [vmem:[#allocation8 + $0x618] sm:$0xff]
        %v2428 = vld [vmem:[#allocation8 + $0x620] sm:$0xff]
        %v2429 = vld [vmem:[#allocation8 + $0x628] sm:$0xff]
        %v2430 = vld [vmem:[#allocation8 + $0x630] sm:$0xff]
        %v2431 = vld [vmem:[#allocation8 + $0x638] sm:$0xff]
        %v2432 = vld [vmem:[#allocation8 + $0x640] sm:$0xff]
        %v2433 = vld [vmem:[#allocation8 + $0x648] sm:$0xff]
        %v2434 = vld [vmem:[#allocation8 + $0x650] sm:$0xff]
        %v2435 = vld [vmem:[#allocation8 + $0x658] sm:$0xff]
        %v2436 = vld [vmem:[#allocation8 + $0x660] sm:$0xff]
        %v2437 = vld [vmem:[#allocation8 + $0x668] sm:$0xff]
        %v2438 = vld [vmem:[#allocation8 + $0x670] sm:$0xff]
        %v2439 = vld [vmem:[#allocation8 + $0x678] sm:$0xff]
        %v2440 = vld [vmem:[#allocation8 + $0x680] sm:$0xff]
        %v2441 = vld [vmem:[#allocation8 + $0x688] sm:$0xff]
        %v2442 = vld [vmem:[#allocation8 + $0x690] sm:$0xff]
        %v2443 = vld [vmem:[#allocation8 + $0x698] sm:$0xff]
        %v2444 = vld [vmem:[#allocation8 + $0x6a0] sm:$0xff]
        %v2445 = vld [vmem:[#allocation8 + $0x6a8] sm:$0xff]
        %v2446 = vld [vmem:[#allocation8 + $0x6b0] sm:$0xff]
        %v2447 = vld [vmem:[#allocation8 + $0x6b8] sm:$0xff]
        %v2448 = vld [vmem:[#allocation8 + $0x6c0] sm:$0xff]
        %v2449 = vld [vmem:[#allocation8 + $0x6c8] sm:$0xff]
        %v2450 = vld [vmem:[#allocation8 + $0x6d0] sm:$0xff]
        %v2451 = vld [vmem:[#allocation8 + $0x6d8] sm:$0xff]
        %v2452 = vld [vmem:[#allocation8 + $0x6e0] sm:$0xff]
        %v2453 = vld [vmem:[#allocation8 + $0x6e8] sm:$0xff]
        %v2454 = vld [vmem:[#allocation8 + $0x6f0] sm:$0xff]
        %v2455 = vld [vmem:[#allocation8 + $0x6f8] sm:$0xff]
        %v2456 = vld [vmem:[#allocation8 + $0x700] sm:$0xff]
        %v2457 = vld [vmem:[#allocation8 + $0x708] sm:$0xff]
        %v2458 = vld [vmem:[#allocation8 + $0x710] sm:$0xff]
        %v2459 = vld [vmem:[#allocation8 + $0x718] sm:$0xff]
        %v2460 = vld [vmem:[#allocation8 + $0x720] sm:$0xff]
        %v2461 = vld [vmem:[#allocation8 + $0x728] sm:$0xff]
        %v2462 = vld [vmem:[#allocation8 + $0x730] sm:$0xff]
        %v2463 = vld [vmem:[#allocation8 + $0x738] sm:$0xff]
        %v2464 = vld [vmem:[#allocation8 + $0x740] sm:$0xff]
        %v2465 = vld [vmem:[#allocation8 + $0x748] sm:$0xff]
        %v2466 = vld [vmem:[#allocation8 + $0x750] sm:$0xff]
        %v2467 = vld [vmem:[#allocation8 + $0x758] sm:$0xff]
        %v2468 = vld [vmem:[#allocation8 + $0x760] sm:$0xff]
        %v2469 = vld [vmem:[#allocation8 + $0x768] sm:$0xff]
        %v2470 = vld [vmem:[#allocation8 + $0x770] sm:$0xff]
        %v2471 = vld [vmem:[#allocation8 + $0x778] sm:$0xff]
        %v2472 = vld [vmem:[#allocation8 + $0x780] sm:$0xff]
        %v2473 = vld [vmem:[#allocation8 + $0x788] sm:$0xff]
        %v2474 = vld [vmem:[#allocation8 + $0x790] sm:$0xff]
        %v2475 = vld [vmem:[#allocation8 + $0x798] sm:$0xff]
        %v2476 = vld [vmem:[#allocation8 + $0x7a0] sm:$0xff]
        %v2477 = vld [vmem:[#allocation8 + $0x7a8] sm:$0xff]
        %v2478 = vld [vmem:[#allocation8 + $0x7b0] sm:$0xff]
        %v2479 = vld [vmem:[#allocation8 + $0x7b8] sm:$0xff]
        %v2480 = vld [vmem:[#allocation8 + $0x7c0] sm:$0xff]
        %v2481 = vld [vmem:[#allocation8 + $0x7c8] sm:$0xff]
        %v2482 = vld [vmem:[#allocation8 + $0x7d0] sm:$0xff]
        %v2483 = vld [vmem:[#allocation8 + $0x7d8] sm:$0xff]
        %v2484 = vld [vmem:[#allocation8 + $0x7e0] sm:$0xff]
        %v2485 = vld [vmem:[#allocation8 + $0x7e8] sm:$0xff]
        %v2486 = vld [vmem:[#allocation8 + $0x7f0] sm:$0xff]
        %v2487 = vld [vmem:[#allocation8 + $0x7f8] sm:$0xff]
        %v2488 = vld [vmem:[%s5] sm:$0xf]
        %v2490 = vlaneseq
        %v2491 = vshrl.u32 %v2490, 7
        %v2492 = vsub.s32 0, %v2491
        %v2493 = vrot.slane %v2488, %v2492
        %v2494 = vlaneseq
        %v2495 = vshrl.u32 %v2494, 7
        %v2496 = vsub.s32 1, %v2495
        %v2497 = vrot.slane %v2488, %v2496
        %v2498 = vlaneseq
        %v2499 = vshrl.u32 %v2498, 7
        %v2500 = vsub.s32 2, %v2499
        %v2501 = vrot.slane %v2488, %v2500
        %v2502 = vlaneseq
        %v2503 = vshrl.u32 %v2502, 7
        %v2504 = vsub.s32 3, %v2503
        %v2505 = vrot.slane %v2488, %v2504
        %2510 = vmatprep.subr.mxu0 %v2293
        %2511 = vmatpush1.msra.mxu0 %v2292
        %2512 = vmatprep.subr.mxu0 %v2289
        %2513 = vmatpush1.msra.mxu0 %v2288
        %2514 = vmatprep.subr.mxu0 %v2285
        %2515 = vmatpush1.msra.mxu0 %v2284
        %2516 = vmatprep.subr.mxu0 %v2281
        %2517 = vmatpush1.msra.mxu0 %v2280
        %2518 = vmatprep.subr.mxu0 %v2277
        %2519 = vmatpush1.msra.mxu0 %v2276
        %2520 = vmatprep.subr.mxu0 %v2273
        %2521 = vmatpush1.msra.mxu0 %v2272
        %2522 = vmatprep.subr.mxu0 %v2269
        %2523 = vmatpush1.msra.mxu0 %v2268
        %2524 = vmatprep.subr.mxu0 %v2265
        %2525 = vmatpush1.msra.mxu0 %v2264
        %2526 = vmatprep.subr.mxu0 %v2261
        %2527 = vmatpush1.msra.mxu0 %v2260
        %2528 = vmatprep.subr.mxu0 %v2257
        %2529 = vmatpush1.msra.mxu0 %v2256
        %2530 = vmatprep.subr.mxu0 %v2253
        %2531 = vmatpush1.msra.mxu0 %v2252
        %2532 = vmatprep.subr.mxu0 %v2249
        %2533 = vmatpush1.msra.mxu0 %v2248
        %2534 = vmatprep.subr.mxu0 %v2245
        %2535 = vmatpush1.msra.mxu0 %v2244
        %2536 = vmatprep.subr.mxu0 %v2241
        %2537 = vmatpush1.msra.mxu0 %v2240
        %2538 = vmatprep.subr.mxu0 %v2237
        %2539 = vmatpush1.msra.mxu0 %v2236
        %2540 = vmatprep.subr.mxu0 %v2233
        %2541 = vmatpush1.msra.mxu0 %v2232
        %2542 = vmatprep.subr.mxu0 %v2357
        %2543 = vmatpush2.msra.mxu0 %v2356
        %2544 = vmatprep.subr.mxu0 %v2353
        %2545 = vmatpush2.msra.mxu0 %v2352
        %2546 = vmatprep.subr.mxu0 %v2349
        %2547 = vmatpush2.msra.mxu0 %v2348
        %2548 = vmatprep.subr.mxu0 %v2345
        %2549 = vmatpush2.msra.mxu0 %v2344
        %2550 = vmatprep.subr.mxu0 %v2341
        %2551 = vmatpush2.msra.mxu0 %v2340
        %2552 = vmatprep.subr.mxu0 %v2337
        %2553 = vmatpush2.msra.mxu0 %v2336
        %2554 = vmatprep.subr.mxu0 %v2333
        %2555 = vmatpush2.msra.mxu0 %v2332
        %2556 = vmatprep.subr.mxu0 %v2329
        %2557 = vmatpush2.msra.mxu0 %v2328
        %2558 = vmatprep.subr.mxu0 %v2325
        %2559 = vmatpush2.msra.mxu0 %v2324
        %2560 = vmatprep.subr.mxu0 %v2321
        %2561 = vmatpush2.msra.mxu0 %v2320
        %2562 = vmatprep.subr.mxu0 %v2317
        %2563 = vmatpush2.msra.mxu0 %v2316
        %2564 = vmatprep.subr.mxu0 %v2313
        %2565 = vmatpush2.msra.mxu0 %v2312
        %2566 = vmatprep.subr.mxu0 %v2309
        %2567 = vmatpush2.msra.mxu0 %v2308
        %2568 = vmatprep.subr.mxu0 %v2305
        %2569 = vmatpush2.msra.mxu0 %v2304
        %2570 = vmatprep.subr.mxu0 %v2301
        %2571 = vmatpush2.msra.mxu0 %v2300
        %2572 = vmatprep.subr.mxu0 %v2297
        %2573 = vmatpush2.msra.mxu0 %v2296
        %2574 = vmatprep.mubr.f32.mxu0 %v2181
        %2575 = vmatmul.mubr.f32.gmra.mxu0 %v2180
        %v2576 = vpop.f32.mrf.mxu0
        %v2577 = vadd.f32 %v2493, %v2576
        %v2578 = vpop.f32.mrf.mxu0
        %v2579 = vadd.f32 %v2497, %v2578
        %2580 = vmatprep.mubr.f32.mxu0 %v2185
        %2581 = vmatmul.mubr.f32.gmra.mxu0 %v2184
        %v2582 = vpop.f32.mrf.mxu0
        %v2583 = vadd.f32 %v2493, %v2582
        %v2584 = vpop.f32.mrf.mxu0
        %v2585 = vadd.f32 %v2497, %v2584
        %2586 = vmatprep.mubr.f32.mxu0 %v2189
        %2587 = vmatmul.mubr.f32.gmra.mxu0 %v2188
        %v2588 = vpop.f32.mrf.mxu0
        %v2589 = vadd.f32 %v2493, %v2588
        %v2590 = vpop.f32.mrf.mxu0
        %v2591 = vadd.f32 %v2497, %v2590
        %2592 = vmatprep.mubr.f32.mxu0 %v2193
        %2593 = vmatmul.mubr.f32.gmra.mxu0 %v2192
        %v2594 = vpop.f32.mrf.mxu0
        %v2595 = vadd.f32 %v2493, %v2594
        %v2596 = vpop.f32.mrf.mxu0
        %v2597 = vadd.f32 %v2497, %v2596
        %2598 = vmatprep.mubr.f32.mxu0 %v2197
        %2599 = vmatmul.mubr.f32.gmra.mxu0 %v2196
        %v2600 = vpop.f32.mrf.mxu0
        %v2601 = vadd.f32 %v2493, %v2600
        %v2602 = vpop.f32.mrf.mxu0
        %v2603 = vadd.f32 %v2497, %v2602
        %2604 = vmatprep.mubr.f32.mxu0 %v2201
        %2605 = vmatmul.mubr.f32.gmra.mxu0 %v2200
        %v2606 = vpop.f32.mrf.mxu0
        %v2607 = vadd.f32 %v2493, %v2606
        %v2608 = vpop.f32.mrf.mxu0
        %v2609 = vadd.f32 %v2497, %v2608
        %2610 = vmatprep.mubr.f32.mxu0 %v2205
        %2611 = vmatmul.mubr.f32.gmra.mxu0 %v2204
        %v2612 = vpop.f32.mrf.mxu0
        %v2613 = vadd.f32 %v2493, %v2612
        %v2614 = vpop.f32.mrf.mxu0
        %v2615 = vadd.f32 %v2497, %v2614
        %2616 = vmatprep.mubr.f32.mxu0 %v2209
        %2617 = vmatmul.mubr.f32.gmra.mxu0 %v2208
        %v2618 = vpop.f32.mrf.mxu0
        %v2619 = vadd.f32 %v2493, %v2618
        %v2620 = vpop.f32.mrf.mxu0
        %v2621 = vadd.f32 %v2497, %v2620
        %2622 = vmatprep.mubr.f32.mxu0 %v2213
        %2623 = vmatmul.mubr.f32.gmra.mxu0 %v2212
        %v2624 = vpop.f32.mrf.mxu0
        %v2625 = vadd.f32 %v2493, %v2624
        %v2626 = vpop.f32.mrf.mxu0
        %v2627 = vadd.f32 %v2497, %v2626
        %2628 = vmatprep.mubr.f32.mxu0 %v2217
        %2629 = vmatmul.mubr.f32.gmra.mxu0 %v2216
        %v2630 = vpop.f32.mrf.mxu0
        %v2631 = vadd.f32 %v2493, %v2630
        %v2632 = vpop.f32.mrf.mxu0
        %v2633 = vadd.f32 %v2497, %v2632
        %2634 = vmatprep.mubr.f32.mxu0 %v2221
        %2635 = vmatmul.mubr.f32.gmra.mxu0 %v2220
        %v2636 = vpop.f32.mrf.mxu0
        %v2637 = vadd.f32 %v2493, %v2636
        %v2638 = vpop.f32.mrf.mxu0
        %v2639 = vadd.f32 %v2497, %v2638
        %2640 = vmatprep.mubr.f32.mxu0 %v2225
        %2641 = vmatmul.mubr.f32.gmra.mxu0 %v2224
        %v2642 = vpop.f32.mrf.mxu0
        %v2643 = vadd.f32 %v2493, %v2642
        %v2644 = vpop.f32.mrf.mxu0
        %v2645 = vadd.f32 %v2497, %v2644
        %2646 = vmatprep.mubr.f32.mxu0 %v2229
        %2647 = vmatmul.mubr.f32.gmra.mxu0 %v2228
        %v2648 = vpop.f32.mrf.mxu0
        %v2649 = vadd.f32 %v2493, %v2648
        %v2650 = vpop.f32.mrf.mxu0
        %v2651 = vadd.f32 %v2497, %v2650
        %2652 = vdwg.mxu0
        %2653 = vmatprep.subr.mxu0 %v2421
        %2654 = vmatpush1.msra.mxu0 %v2420
        %2655 = vmatprep.subr.mxu0 %v2417
        %2656 = vmatpush1.msra.mxu0 %v2416
        %2657 = vmatprep.subr.mxu0 %v2413
        %2658 = vmatpush1.msra.mxu0 %v2412
        %2659 = vmatprep.subr.mxu0 %v2409
        %2660 = vmatpush1.msra.mxu0 %v2408
        %2661 = vmatprep.subr.mxu0 %v2405
        %2662 = vmatpush1.msra.mxu0 %v2404
        %2663 = vmatprep.subr.mxu0 %v2401
        %2664 = vmatpush1.msra.mxu0 %v2400
        %2665 = vmatprep.subr.mxu0 %v2397
        %2666 = vmatpush1.msra.mxu0 %v2396
        %2667 = vmatprep.subr.mxu0 %v2393
        %2668 = vmatpush1.msra.mxu0 %v2392
        %2669 = vmatprep.subr.mxu0 %v2389
        %2670 = vmatpush1.msra.mxu0 %v2388
        %2671 = vmatprep.subr.mxu0 %v2385
        %2672 = vmatpush1.msra.mxu0 %v2384
        %2673 = vmatprep.subr.mxu0 %v2381
        %2674 = vmatpush1.msra.mxu0 %v2380
        %2675 = vmatprep.subr.mxu0 %v2377
        %2676 = vmatpush1.msra.mxu0 %v2376
        %2677 = vmatprep.subr.mxu0 %v2373
        %2678 = vmatpush1.msra.mxu0 %v2372
        %2679 = vmatprep.subr.mxu0 %v2369
        %2680 = vmatpush1.msra.mxu0 %v2368
        %2681 = vmatprep.subr.mxu0 %v2365
        %2682 = vmatpush1.msra.mxu0 %v2364
        %2683 = vmatprep.subr.mxu0 %v2361
        %2684 = vmatpush1.msra.mxu0 %v2360
        %2685 = vmatprep.subr.mxu0 %v2485
        %2686 = vmatpush2.msra.mxu0 %v2484
        %2687 = vmatprep.subr.mxu0 %v2481
        %2688 = vmatpush2.msra.mxu0 %v2480
        %2689 = vmatprep.subr.mxu0 %v2477
        %2690 = vmatpush2.msra.mxu0 %v2476
        %2691 = vmatprep.subr.mxu0 %v2473
        %2692 = vmatpush2.msra.mxu0 %v2472
        %2693 = vmatprep.subr.mxu0 %v2469
        %2694 = vmatpush2.msra.mxu0 %v2468
        %2695 = vmatprep.subr.mxu0 %v2465
        %2696 = vmatpush2.msra.mxu0 %v2464
        %2697 = vmatprep.subr.mxu0 %v2461
        %2698 = vmatpush2.msra.mxu0 %v2460
        %2699 = vmatprep.subr.mxu0 %v2457
        %2700 = vmatpush2.msra.mxu0 %v2456
        %2701 = vmatprep.subr.mxu0 %v2453
        %2702 = vmatpush2.msra.mxu0 %v2452
        %2703 = vmatprep.subr.mxu0 %v2449
        %2704 = vmatpush2.msra.mxu0 %v2448
        %2705 = vmatprep.subr.mxu0 %v2445
        %2706 = vmatpush2.msra.mxu0 %v2444
        %2707 = vmatprep.subr.mxu0 %v2441
        %2708 = vmatpush2.msra.mxu0 %v2440
        %2709 = vmatprep.subr.mxu0 %v2437
        %2710 = vmatpush2.msra.mxu0 %v2436
        %2711 = vmatprep.subr.mxu0 %v2433
        %2712 = vmatpush2.msra.mxu0 %v2432
        %2713 = vmatprep.subr.mxu0 %v2429
        %2714 = vmatpush2.msra.mxu0 %v2428
        %2715 = vmatprep.subr.mxu0 %v2425
        %2716 = vmatpush2.msra.mxu0 %v2424
        %2717 = vmatprep.mubr.f32.mxu0 %v2183
        %2718 = vmatmul.mubr.f32.gmra.mxu0 %v2182
        %v2719 = vpop.f32.mrf.mxu0
        %v2720 = vadd.f32 %v2577, %v2719
        %v2721 = vpop.f32.mrf.mxu0
        %v2722 = vadd.f32 %v2579, %v2721
        %2723 = vmatprep.mubr.f32.mxu0 %v2187
        %2724 = vmatmul.mubr.f32.gmra.mxu0 %v2186
        %v2725 = vpop.f32.mrf.mxu0
        %v2726 = vadd.f32 %v2583, %v2725
        %v2727 = vpop.f32.mrf.mxu0
        %v2728 = vadd.f32 %v2585, %v2727
        %2729 = vmatprep.mubr.f32.mxu0 %v2191
        %2730 = vmatmul.mubr.f32.gmra.mxu0 %v2190
        %v2731 = vpop.f32.mrf.mxu0
        %v2732 = vadd.f32 %v2589, %v2731
        %v2733 = vpop.f32.mrf.mxu0
        %v2734 = vadd.f32 %v2591, %v2733
        %2735 = vmatprep.mubr.f32.mxu0 %v2195
        %2736 = vmatmul.mubr.f32.gmra.mxu0 %v2194
        %v2737 = vpop.f32.mrf.mxu0
        %v2738 = vadd.f32 %v2595, %v2737
        %v2739 = vpop.f32.mrf.mxu0
        %v2740 = vadd.f32 %v2597, %v2739
        %2741 = vmatprep.mubr.f32.mxu0 %v2199
        %2742 = vmatmul.mubr.f32.gmra.mxu0 %v2198
        %v2743 = vpop.f32.mrf.mxu0
        %v2744 = vadd.f32 %v2601, %v2743
        %v2745 = vpop.f32.mrf.mxu0
        %v2746 = vadd.f32 %v2603, %v2745
        %2747 = vmatprep.mubr.f32.mxu0 %v2203
        %2748 = vmatmul.mubr.f32.gmra.mxu0 %v2202
        %v2749 = vpop.f32.mrf.mxu0
        %v2750 = vadd.f32 %v2607, %v2749
        %v2751 = vpop.f32.mrf.mxu0
        %v2752 = vadd.f32 %v2609, %v2751
        %2753 = vmatprep.mubr.f32.mxu0 %v2207
        %2754 = vmatmul.mubr.f32.gmra.mxu0 %v2206
        %v2755 = vpop.f32.mrf.mxu0
        %v2756 = vadd.f32 %v2613, %v2755
        %v2757 = vpop.f32.mrf.mxu0
        %v2758 = vadd.f32 %v2615, %v2757
        %2759 = vmatprep.mubr.f32.mxu0 %v2211
        %2760 = vmatmul.mubr.f32.gmra.mxu0 %v2210
        %v2761 = vpop.f32.mrf.mxu0
        %v2762 = vadd.f32 %v2619, %v2761
        %v2763 = vpop.f32.mrf.mxu0
        %v2764 = vadd.f32 %v2621, %v2763
        %2765 = vmatprep.mubr.f32.mxu0 %v2215
        %2766 = vmatmul.mubr.f32.gmra.mxu0 %v2214
        %v2767 = vpop.f32.mrf.mxu0
        %v2768 = vadd.f32 %v2625, %v2767
        %v2769 = vpop.f32.mrf.mxu0
        %v2770 = vadd.f32 %v2627, %v2769
        %2771 = vmatprep.mubr.f32.mxu0 %v2219
        %2772 = vmatmul.mubr.f32.gmra.mxu0 %v2218
        %v2773 = vpop.f32.mrf.mxu0
        %v2774 = vadd.f32 %v2631, %v2773
        %v2775 = vpop.f32.mrf.mxu0
        %v2776 = vadd.f32 %v2633, %v2775
        %2777 = vmatprep.mubr.f32.mxu0 %v2223
        %2778 = vmatmul.mubr.f32.gmra.mxu0 %v2222
        %v2779 = vpop.f32.mrf.mxu0
        %v2780 = vadd.f32 %v2637, %v2779
        %v2781 = vpop.f32.mrf.mxu0
        %v2782 = vadd.f32 %v2639, %v2781
        %2783 = vmatprep.mubr.f32.mxu0 %v2227
        %2784 = vmatmul.mubr.f32.gmra.mxu0 %v2226
        %v2785 = vpop.f32.mrf.mxu0
        %v2786 = vadd.f32 %v2643, %v2785
        %v2787 = vpop.f32.mrf.mxu0
        %v2788 = vadd.f32 %v2645, %v2787
        %2789 = vmatprep.mubr.f32.mxu0 %v2231
        %2790 = vmatmul.mubr.f32.gmra.mxu0 %v2230
        %v2791 = vpop.f32.mrf.mxu0
        %v2792 = vadd.f32 %v2649, %v2791
        %v2793 = vpop.f32.mrf.mxu0
        %v2794 = vadd.f32 %v2651, %v2793
        %2795 = vdwg.mxu0
        %2796 = vmatprep.subr.mxu0 %v2295
        %2797 = vmatpush1.msra.mxu0 %v2294
        %2798 = vmatprep.subr.mxu0 %v2291
        %2799 = vmatpush1.msra.mxu0 %v2290
        %2800 = vmatprep.subr.mxu0 %v2287
        %2801 = vmatpush1.msra.mxu0 %v2286
        %2802 = vmatprep.subr.mxu0 %v2283
        %2803 = vmatpush1.msra.mxu0 %v2282
        %2804 = vmatprep.subr.mxu0 %v2279
        %2805 = vmatpush1.msra.mxu0 %v2278
        %2806 = vmatprep.subr.mxu0 %v2275
        %2807 = vmatpush1.msra.mxu0 %v2274
        %2808 = vmatprep.subr.mxu0 %v2271
        %2809 = vmatpush1.msra.mxu0 %v2270
        %2810 = vmatprep.subr.mxu0 %v2267
        %2811 = vmatpush1.msra.mxu0 %v2266
        %2812 = vmatprep.subr.mxu0 %v2263
        %2813 = vmatpush1.msra.mxu0 %v2262
        %2814 = vmatprep.subr.mxu0 %v2259
        %2815 = vmatpush1.msra.mxu0 %v2258
        %2816 = vmatprep.subr.mxu0 %v2255
        %2817 = vmatpush1.msra.mxu0 %v2254
        %2818 = vmatprep.subr.mxu0 %v2251
        %2819 = vmatpush1.msra.mxu0 %v2250
        %2820 = vmatprep.subr.mxu0 %v2247
        %2821 = vmatpush1.msra.mxu0 %v2246
        %2822 = vmatprep.subr.mxu0 %v2243
        %2823 = vmatpush1.msra.mxu0 %v2242
        %2824 = vmatprep.subr.mxu0 %v2239
        %2825 = vmatpush1.msra.mxu0 %v2238
        %2826 = vmatprep.subr.mxu0 %v2235
        %2827 = vmatpush1.msra.mxu0 %v2234
        %2828 = vmatprep.subr.mxu0 %v2359
        %2829 = vmatpush2.msra.mxu0 %v2358
        %2830 = vmatprep.subr.mxu0 %v2355
        %2831 = vmatpush2.msra.mxu0 %v2354
        %2832 = vmatprep.subr.mxu0 %v2351
        %2833 = vmatpush2.msra.mxu0 %v2350
        %2834 = vmatprep.subr.mxu0 %v2347
        %2835 = vmatpush2.msra.mxu0 %v2346
        %2836 = vmatprep.subr.mxu0 %v2343
        %2837 = vmatpush2.msra.mxu0 %v2342
        %2838 = vmatprep.subr.mxu0 %v2339
        %2839 = vmatpush2.msra.mxu0 %v2338
        %2840 = vmatprep.subr.mxu0 %v2335
        %2841 = vmatpush2.msra.mxu0 %v2334
        %2842 = vmatprep.subr.mxu0 %v2331
        %2843 = vmatpush2.msra.mxu0 %v2330
        %2844 = vmatprep.subr.mxu0 %v2327
        %2845 = vmatpush2.msra.mxu0 %v2326
        %2846 = vmatprep.subr.mxu0 %v2323
        %2847 = vmatpush2.msra.mxu0 %v2322
        %2848 = vmatprep.subr.mxu0 %v2319
        %2849 = vmatpush2.msra.mxu0 %v2318
        %2850 = vmatprep.subr.mxu0 %v2315
        %2851 = vmatpush2.msra.mxu0 %v2314
        %2852 = vmatprep.subr.mxu0 %v2311
        %2853 = vmatpush2.msra.mxu0 %v2310
        %2854 = vmatprep.subr.mxu0 %v2307
        %2855 = vmatpush2.msra.mxu0 %v2306
        %2856 = vmatprep.subr.mxu0 %v2303
        %2857 = vmatpush2.msra.mxu0 %v2302
        %2858 = vmatprep.subr.mxu0 %v2299
        %2859 = vmatpush2.msra.mxu0 %v2298
        %2860 = vmatprep.mubr.f32.mxu0 %v2181
        %2861 = vmatmul.mubr.f32.gmra.mxu0 %v2180
        %v2862 = vpop.f32.mrf.mxu0
        %v2863 = vadd.f32 %v2501, %v2862
        %v2864 = vpop.f32.mrf.mxu0
        %v2865 = vadd.f32 %v2505, %v2864
        %2866 = vmatprep.mubr.f32.mxu0 %v2185
        %2867 = vmatmul.mubr.f32.gmra.mxu0 %v2184
        %v2868 = vpop.f32.mrf.mxu0
        %v2869 = vadd.f32 %v2501, %v2868
        %v2870 = vpop.f32.mrf.mxu0
        %v2871 = vadd.f32 %v2505, %v2870
        %2872 = vmatprep.mubr.f32.mxu0 %v2189
        %2873 = vmatmul.mubr.f32.gmra.mxu0 %v2188
        %v2874 = vpop.f32.mrf.mxu0
        %v2875 = vadd.f32 %v2501, %v2874
        %v2876 = vpop.f32.mrf.mxu0
        %v2877 = vadd.f32 %v2505, %v2876
        %2878 = vmatprep.mubr.f32.mxu0 %v2193
        %2879 = vmatmul.mubr.f32.gmra.mxu0 %v2192
        %v2880 = vpop.f32.mrf.mxu0
        %v2881 = vadd.f32 %v2501, %v2880
        %v2882 = vpop.f32.mrf.mxu0
        %v2883 = vadd.f32 %v2505, %v2882
        %2884 = vmatprep.mubr.f32.mxu0 %v2197
        %2885 = vmatmul.mubr.f32.gmra.mxu0 %v2196
        %v2886 = vpop.f32.mrf.mxu0
        %v2887 = vadd.f32 %v2501, %v2886
        %v2888 = vpop.f32.mrf.mxu0
        %v2889 = vadd.f32 %v2505, %v2888
        %2890 = vmatprep.mubr.f32.mxu0 %v2201
        %2891 = vmatmul.mubr.f32.gmra.mxu0 %v2200
        %v2892 = vpop.f32.mrf.mxu0
        %v2893 = vadd.f32 %v2501, %v2892
        %v2894 = vpop.f32.mrf.mxu0
        %v2895 = vadd.f32 %v2505, %v2894
        %2896 = vmatprep.mubr.f32.mxu0 %v2205
        %2897 = vmatmul.mubr.f32.gmra.mxu0 %v2204
        %v2898 = vpop.f32.mrf.mxu0
        %v2899 = vadd.f32 %v2501, %v2898
        %v2900 = vpop.f32.mrf.mxu0
        %v2901 = vadd.f32 %v2505, %v2900
        %2902 = vmatprep.mubr.f32.mxu0 %v2209
        %2903 = vmatmul.mubr.f32.gmra.mxu0 %v2208
        %v2904 = vpop.f32.mrf.mxu0
        %v2905 = vadd.f32 %v2501, %v2904
        %v2906 = vpop.f32.mrf.mxu0
        %v2907 = vadd.f32 %v2505, %v2906
        %2908 = vmatprep.mubr.f32.mxu0 %v2213
        %2909 = vmatmul.mubr.f32.gmra.mxu0 %v2212
        %v2910 = vpop.f32.mrf.mxu0
        %v2911 = vadd.f32 %v2501, %v2910
        %v2912 = vpop.f32.mrf.mxu0
        %v2913 = vadd.f32 %v2505, %v2912
        %2914 = vmatprep.mubr.f32.mxu0 %v2217
        %2915 = vmatmul.mubr.f32.gmra.mxu0 %v2216
        %v2916 = vpop.f32.mrf.mxu0
        %v2917 = vadd.f32 %v2501, %v2916
        %v2918 = vpop.f32.mrf.mxu0
        %v2919 = vadd.f32 %v2505, %v2918
        %2920 = vmatprep.mubr.f32.mxu0 %v2221
        %2921 = vmatmul.mubr.f32.gmra.mxu0 %v2220
        %v2922 = vpop.f32.mrf.mxu0
        %v2923 = vadd.f32 %v2501, %v2922
        %v2924 = vpop.f32.mrf.mxu0
        %v2925 = vadd.f32 %v2505, %v2924
        %2926 = vmatprep.mubr.f32.mxu0 %v2225
        %2927 = vmatmul.mubr.f32.gmra.mxu0 %v2224
        %v2928 = vpop.f32.mrf.mxu0
        %v2929 = vadd.f32 %v2501, %v2928
        %v2930 = vpop.f32.mrf.mxu0
        %v2931 = vadd.f32 %v2505, %v2930
        %2932 = vmatprep.mubr.f32.mxu0 %v2229
        %2933 = vmatmul.mubr.f32.gmra.mxu0 %v2228
        %v2934 = vpop.f32.mrf.mxu0
        %v2935 = vadd.f32 %v2501, %v2934
        %v2936 = vpop.f32.mrf.mxu0
        %v2937 = vadd.f32 %v2505, %v2936
        %2938 = vdwg.mxu0
        %2939 = vmatprep.subr.mxu0 %v2423
        %2940 = vmatpush1.msra.mxu0 %v2422
        %2941 = vmatprep.subr.mxu0 %v2419
        %2942 = vmatpush1.msra.mxu0 %v2418
        %2943 = vmatprep.subr.mxu0 %v2415
        %2944 = vmatpush1.msra.mxu0 %v2414
        %2945 = vmatprep.subr.mxu0 %v2411
        %2946 = vmatpush1.msra.mxu0 %v2410
        %2947 = vmatprep.subr.mxu0 %v2407
        %2948 = vmatpush1.msra.mxu0 %v2406
        %2949 = vmatprep.subr.mxu0 %v2403
        %2950 = vmatpush1.msra.mxu0 %v2402
        %2951 = vmatprep.subr.mxu0 %v2399
        %2952 = vmatpush1.msra.mxu0 %v2398
        %2953 = vmatprep.subr.mxu0 %v2395
        %2954 = vmatpush1.msra.mxu0 %v2394
        %2955 = vmatprep.subr.mxu0 %v2391
        %2956 = vmatpush1.msra.mxu0 %v2390
        %2957 = vmatprep.subr.mxu0 %v2387
        %2958 = vmatpush1.msra.mxu0 %v2386
        %2959 = vmatprep.subr.mxu0 %v2383
        %2960 = vmatpush1.msra.mxu0 %v2382
        %2961 = vmatprep.subr.mxu0 %v2379
        %2962 = vmatpush1.msra.mxu0 %v2378
        %2963 = vmatprep.subr.mxu0 %v2375
        %2964 = vmatpush1.msra.mxu0 %v2374
        %2965 = vmatprep.subr.mxu0 %v2371
        %2966 = vmatpush1.msra.mxu0 %v2370
        %2967 = vmatprep.subr.mxu0 %v2367
        %2968 = vmatpush1.msra.mxu0 %v2366
        %2969 = vmatprep.subr.mxu0 %v2363
        %2970 = vmatpush1.msra.mxu0 %v2362
        %2971 = vmatprep.subr.mxu0 %v2487
        %2972 = vmatpush2.msra.mxu0 %v2486
        %2973 = vmatprep.subr.mxu0 %v2483
        %2974 = vmatpush2.msra.mxu0 %v2482
        %2975 = vmatprep.subr.mxu0 %v2479
        %2976 = vmatpush2.msra.mxu0 %v2478
        %2977 = vmatprep.subr.mxu0 %v2475
        %2978 = vmatpush2.msra.mxu0 %v2474
        %2979 = vmatprep.subr.mxu0 %v2471
        %2980 = vmatpush2.msra.mxu0 %v2470
        %2981 = vmatprep.subr.mxu0 %v2467
        %2982 = vmatpush2.msra.mxu0 %v2466
        %2983 = vmatprep.subr.mxu0 %v2463
        %2984 = vmatpush2.msra.mxu0 %v2462
        %2985 = vmatprep.subr.mxu0 %v2459
        %2986 = vmatpush2.msra.mxu0 %v2458
        %2987 = vmatprep.subr.mxu0 %v2455
        %2988 = vmatpush2.msra.mxu0 %v2454
        %2989 = vmatprep.subr.mxu0 %v2451
        %2990 = vmatpush2.msra.mxu0 %v2450
        %2991 = vmatprep.subr.mxu0 %v2447
        %2992 = vmatpush2.msra.mxu0 %v2446
        %2993 = vmatprep.subr.mxu0 %v2443
        %2994 = vmatpush2.msra.mxu0 %v2442
        %2995 = vmatprep.subr.mxu0 %v2439
        %2996 = vmatpush2.msra.mxu0 %v2438
        %2997 = vmatprep.subr.mxu0 %v2435
        %2998 = vmatpush2.msra.mxu0 %v2434
        %2999 = vmatprep.subr.mxu0 %v2431
        %3000 = vmatpush2.msra.mxu0 %v2430
        %3001 = vmatprep.subr.mxu0 %v2427
        %3002 = vmatpush2.msra.mxu0 %v2426
        %3003 = vmatprep.mubr.f32.mxu0 %v2183
        %3004 = vmatmul.mubr.f32.gmra.mxu0 %v2182
        %v3005 = vpop.f32.mrf.mxu0
        %v3006 = vadd.f32 %v2863, %v3005
        %v3007 = vpop.f32.mrf.mxu0
        %v3008 = vadd.f32 %v2865, %v3007
        %3009 = vmatprep.mubr.f32.mxu0 %v2187
        %3010 = vmatmul.mubr.f32.gmra.mxu0 %v2186
        %v3011 = vpop.f32.mrf.mxu0
        %v3012 = vadd.f32 %v2869, %v3011
        %v3013 = vpop.f32.mrf.mxu0
        %v3014 = vadd.f32 %v2871, %v3013
        %3015 = vmatprep.mubr.f32.mxu0 %v2191
        %3016 = vmatmul.mubr.f32.gmra.mxu0 %v2190
        %v3017 = vpop.f32.mrf.mxu0
        %v3018 = vadd.f32 %v2875, %v3017
        %v3019 = vpop.f32.mrf.mxu0
        %v3020 = vadd.f32 %v2877, %v3019
        %3021 = vmatprep.mubr.f32.mxu0 %v2195
        %3022 = vmatmul.mubr.f32.gmra.mxu0 %v2194
        %v3023 = vpop.f32.mrf.mxu0
        %v3024 = vadd.f32 %v2881, %v3023
        %v3025 = vpop.f32.mrf.mxu0
        %v3026 = vadd.f32 %v2883, %v3025
        %3027 = vmatprep.mubr.f32.mxu0 %v2199
        %3028 = vmatmul.mubr.f32.gmra.mxu0 %v2198
        %v3029 = vpop.f32.mrf.mxu0
        %v3030 = vadd.f32 %v2887, %v3029
        %v3031 = vpop.f32.mrf.mxu0
        %v3032 = vadd.f32 %v2889, %v3031
        %3033 = vmatprep.mubr.f32.mxu0 %v2203
        %3034 = vmatmul.mubr.f32.gmra.mxu0 %v2202
        %v3035 = vpop.f32.mrf.mxu0
        %v3036 = vadd.f32 %v2893, %v3035
        %v3037 = vpop.f32.mrf.mxu0
        %v3038 = vadd.f32 %v2895, %v3037
        %3039 = vmatprep.mubr.f32.mxu0 %v2207
        %3040 = vmatmul.mubr.f32.gmra.mxu0 %v2206
        %v3041 = vpop.f32.mrf.mxu0
        %v3042 = vadd.f32 %v2899, %v3041
        %v3043 = vpop.f32.mrf.mxu0
        %v3044 = vadd.f32 %v2901, %v3043
        %3045 = vmatprep.mubr.f32.mxu0 %v2211
        %3046 = vmatmul.mubr.f32.gmra.mxu0 %v2210
        %v3047 = vpop.f32.mrf.mxu0
        %v3048 = vadd.f32 %v2905, %v3047
        %v3049 = vpop.f32.mrf.mxu0
        %v3050 = vadd.f32 %v2907, %v3049
        %3051 = vmatprep.mubr.f32.mxu0 %v2215
        %3052 = vmatmul.mubr.f32.gmra.mxu0 %v2214
        %v3053 = vpop.f32.mrf.mxu0
        %v3054 = vadd.f32 %v2911, %v3053
        %v3055 = vpop.f32.mrf.mxu0
        %v3056 = vadd.f32 %v2913, %v3055
        %3057 = vmatprep.mubr.f32.mxu0 %v2219
        %3058 = vmatmul.mubr.f32.gmra.mxu0 %v2218
        %v3059 = vpop.f32.mrf.mxu0
        %v3060 = vadd.f32 %v2917, %v3059
        %v3061 = vpop.f32.mrf.mxu0
        %v3062 = vadd.f32 %v2919, %v3061
        %3063 = vmatprep.mubr.f32.mxu0 %v2223
        %3064 = vmatmul.mubr.f32.gmra.mxu0 %v2222
        %v3065 = vpop.f32.mrf.mxu0
        %v3066 = vadd.f32 %v2923, %v3065
        %v3067 = vpop.f32.mrf.mxu0
        %v3068 = vadd.f32 %v2925, %v3067
        %3069 = vmatprep.mubr.f32.mxu0 %v2227
        %3070 = vmatmul.mubr.f32.gmra.mxu0 %v2226
        %v3071 = vpop.f32.mrf.mxu0
        %v3072 = vadd.f32 %v2929, %v3071
        %v3073 = vpop.f32.mrf.mxu0
        %v3074 = vadd.f32 %v2931, %v3073
        %3075 = vmatprep.mubr.f32.mxu0 %v2231
        %3076 = vmatmul.mubr.f32.gmra.mxu0 %v2230
        %v3077 = vpop.f32.mrf.mxu0
        %v3078 = vadd.f32 %v2935, %v3077
        %v3079 = vpop.f32.mrf.mxu0
        %v3080 = vadd.f32 %v2937, %v3079
        %3081 = vdwg.mxu0
        %v3082 = vmul.f32 %v2720, %v2720
        %v3083 = vmul.f32 %v2722, %v2722
        %v3084 = vmul.f32 %v3006, %v3006
        %v3085 = vmul.f32 %v3008, %v3008
        %v3086 = vmul.f32 %v2726, %v2726
        %v3087 = vmul.f32 %v2728, %v2728
        %v3088 = vmul.f32 %v3012, %v3012
        %v3089 = vmul.f32 %v3014, %v3014
        %v3090 = vmul.f32 %v2732, %v2732
        %v3091 = vmul.f32 %v2734, %v2734
        %v3092 = vmul.f32 %v3018, %v3018
        %v3093 = vmul.f32 %v3020, %v3020
        %v3094 = vmul.f32 %v2738, %v2738
        %v3095 = vmul.f32 %v2740, %v2740
        %v3096 = vmul.f32 %v3024, %v3024
        %v3097 = vmul.f32 %v3026, %v3026
        %v3098 = vmul.f32 %v2744, %v2744
        %v3099 = vmul.f32 %v2746, %v2746
        %v3100 = vmul.f32 %v3030, %v3030
        %v3101 = vmul.f32 %v3032, %v3032
        %v3102 = vmul.f32 %v2750, %v2750
        %v3103 = vmul.f32 %v2752, %v2752
        %v3104 = vmul.f32 %v3036, %v3036
        %v3105 = vmul.f32 %v3038, %v3038
        %v3106 = vmul.f32 %v2756, %v2756
        %v3107 = vmul.f32 %v2758, %v2758
        %v3108 = vmul.f32 %v3042, %v3042
        %v3109 = vmul.f32 %v3044, %v3044
        %v3110 = vmul.f32 %v2762, %v2762
        %v3111 = vmul.f32 %v2764, %v2764
        %v3112 = vmul.f32 %v3048, %v3048
        %v3113 = vmul.f32 %v3050, %v3050
        %v3114 = vmul.f32 %v2768, %v2768
        %v3115 = vmul.f32 %v2770, %v2770
        %v3116 = vmul.f32 %v3054, %v3054
        %v3117 = vmul.f32 %v3056, %v3056
        %v3118 = vmul.f32 %v2774, %v2774
        %v3119 = vmul.f32 %v2776, %v2776
        %v3120 = vmul.f32 %v3060, %v3060
        %v3121 = vmul.f32 %v3062, %v3062
        %v3122 = vmul.f32 %v2780, %v2780
        %v3123 = vmul.f32 %v2782, %v2782
        %v3124 = vmul.f32 %v3066, %v3066
        %v3125 = vmul.f32 %v3068, %v3068
        %v3126 = vmul.f32 %v2786, %v2786
        %v3127 = vmul.f32 %v2788, %v2788
        %v3128 = vmul.f32 %v3072, %v3072
        %v3129 = vmul.f32 %v3074, %v3074
        %v3130 = vmul.f32 %v2792, %v2792
        %v3131 = vmul.f32 %v2794, %v2794
        %v3132 = vmul.f32 %v3078, %v3078
        %v3133 = vmul.f32 %v3080, %v3080
        %v3134 = vadd.f32 %v3082, %v3083
        %v3135 = vadd.f32 %v3134, %v3084
        %v3136 = vadd.f32 %v3135, %v3085
        %3137 = vadd.xlane.f32.xlu0 %v3136
        %v3138 = vpop.xlane.xlu0 %3137
        %v3139 = vadd.f32 %v3086, %v3087
        %v3140 = vadd.f32 %v3139, %v3088
        %v3141 = vadd.f32 %v3140, %v3089
        %3142 = vadd.xlane.f32.xlu0 %v3141
        %v3143 = vpop.xlane.xlu0 %3142
        %v3144 = vadd.f32 %v3090, %v3091
        %v3145 = vadd.f32 %v3144, %v3092
        %v3146 = vadd.f32 %v3145, %v3093
        %3147 = vadd.xlane.f32.xlu0 %v3146
        %v3148 = vpop.xlane.xlu0 %3147
        %v3149 = vadd.f32 %v3094, %v3095
        %v3150 = vadd.f32 %v3149, %v3096
        %v3151 = vadd.f32 %v3150, %v3097
        %3152 = vadd.xlane.f32.xlu0 %v3151
        %v3153 = vpop.xlane.xlu0 %3152
        %v3154 = vadd.f32 %v3098, %v3099
        %v3155 = vadd.f32 %v3154, %v3100
        %v3156 = vadd.f32 %v3155, %v3101
        %3157 = vadd.xlane.f32.xlu0 %v3156
        %v3158 = vpop.xlane.xlu0 %3157
        %v3159 = vadd.f32 %v3102, %v3103
        %v3160 = vadd.f32 %v3159, %v3104
        %v3161 = vadd.f32 %v3160, %v3105
        %3162 = vadd.xlane.f32.xlu0 %v3161
        %v3163 = vpop.xlane.xlu0 %3162
        %v3164 = vadd.f32 %v3106, %v3107
        %v3165 = vadd.f32 %v3164, %v3108
        %v3166 = vadd.f32 %v3165, %v3109
        %3167 = vadd.xlane.f32.xlu0 %v3166
        %v3168 = vpop.xlane.xlu0 %3167
        %v3169 = vadd.f32 %v3110, %v3111
        %v3170 = vadd.f32 %v3169, %v3112
        %v3171 = vadd.f32 %v3170, %v3113
        %3172 = vadd.xlane.f32.xlu0 %v3171
        %v3173 = vpop.xlane.xlu0 %3172
        %v3174 = vadd.f32 %v3114, %v3115
        %v3175 = vadd.f32 %v3174, %v3116
        %v3176 = vadd.f32 %v3175, %v3117
        %3177 = vadd.xlane.f32.xlu0 %v3176
        %v3178 = vpop.xlane.xlu0 %3177
        %v3179 = vadd.f32 %v3118, %v3119
        %v3180 = vadd.f32 %v3179, %v3120
        %v3181 = vadd.f32 %v3180, %v3121
        %3182 = vadd.xlane.f32.xlu0 %v3181
        %v3183 = vpop.xlane.xlu0 %3182
        %v3184 = vadd.f32 %v3122, %v3123
        %v3185 = vadd.f32 %v3184, %v3124
        %v3186 = vadd.f32 %v3185, %v3125
        %3187 = vadd.xlane.f32.xlu0 %v3186
        %v3188 = vpop.xlane.xlu0 %3187
        %v3189 = vadd.f32 %v3126, %v3127
        %v3190 = vadd.f32 %v3189, %v3128
        %v3191 = vadd.f32 %v3190, %v3129
        %3192 = vadd.xlane.f32.xlu0 %v3191
        %v3193 = vpop.xlane.xlu0 %3192
        %v3194 = vadd.f32 %v3130, %v3131
        %v3195 = vadd.f32 %v3194, %v3132
        %v3196 = vadd.f32 %v3195, %v3133
        %3197 = vadd.xlane.f32.xlu0 %v3196
        %v3198 = vpop.xlane.xlu0 %3197
        %v3199 = vmax.f32 %v3138, 1e-24
        %v3200 = vmax.f32 %v3143, 1e-24
        %v3201 = vmax.f32 %v3148, 1e-24
        %v3202 = vmax.f32 %v3153, 1e-24
        %v3203 = vmax.f32 %v3158, 1e-24
        %v3204 = vmax.f32 %v3163, 1e-24
        %v3205 = vmax.f32 %v3168, 1e-24
        %v3206 = vmax.f32 %v3173, 1e-24
        %v3207 = vmax.f32 %v3178, 1e-24
        %v3208 = vmax.f32 %v3183, 1e-24
        %v3209 = vmax.f32 %v3188, 1e-24
        %v3210 = vmax.f32 %v3193, 1e-24
        %v3211 = vmax.f32 %v3198, 1e-24
        %v3212 = vrsqrt.pop %v3199
        %v3213 = vrsqrt.pop %v3200
        %v3214 = vrsqrt.pop %v3201
        %v3215 = vrsqrt.pop %v3202
        %v3216 = vrsqrt.pop %v3203
        %v3217 = vrsqrt.pop %v3204
        %v3218 = vrsqrt.pop %v3205
        %v3219 = vrsqrt.pop %v3206
        %v3220 = vrsqrt.pop %v3207
        %v3221 = vrsqrt.pop %v3208
        %v3222 = vrsqrt.pop %v3209
        %v3223 = vrsqrt.pop %v3210
        %v3224 = vrsqrt.pop %v3211
        %v3225 = vmul.f32 %v2720, %v3212
        %v3226 = vmul.f32 %v2722, %v3212
        %v3227 = vmul.f32 %v3006, %v3212
        %v3228 = vmul.f32 %v3008, %v3212
        %v3229 = vmul.f32 %v2726, %v3213
        %v3230 = vmul.f32 %v2728, %v3213
        %v3231 = vmul.f32 %v3012, %v3213
        %v3232 = vmul.f32 %v3014, %v3213
        %v3233 = vmul.f32 %v2732, %v3214
        %v3234 = vmul.f32 %v2734, %v3214
        %v3235 = vmul.f32 %v3018, %v3214
        %v3236 = vmul.f32 %v3020, %v3214
        %v3237 = vmul.f32 %v2738, %v3215
        %v3238 = vmul.f32 %v2740, %v3215
        %v3239 = vmul.f32 %v3024, %v3215
        %v3240 = vmul.f32 %v3026, %v3215
        %v3241 = vmul.f32 %v2744, %v3216
        %v3242 = vmul.f32 %v2746, %v3216
        %v3243 = vmul.f32 %v3030, %v3216
        %v3244 = vmul.f32 %v3032, %v3216
        %v3245 = vmul.f32 %v2750, %v3217
        %v3246 = vmul.f32 %v2752, %v3217
        %v3247 = vmul.f32 %v3036, %v3217
        %v3248 = vmul.f32 %v3038, %v3217
        %v3249 = vmul.f32 %v2756, %v3218
        %v3250 = vmul.f32 %v2758, %v3218
        %v3251 = vmul.f32 %v3042, %v3218
        %v3252 = vmul.f32 %v3044, %v3218
        %v3253 = vmul.f32 %v2762, %v3219
        %v3254 = vmul.f32 %v2764, %v3219
        %v3255 = vmul.f32 %v3048, %v3219
        %v3256 = vmul.f32 %v3050, %v3219
        %v3257 = vmul.f32 %v2768, %v3220
        %v3258 = vmul.f32 %v2770, %v3220
        %v3259 = vmul.f32 %v3054, %v3220
        %v3260 = vmul.f32 %v3056, %v3220
        %v3261 = vmul.f32 %v2774, %v3221
        %v3262 = vmul.f32 %v2776, %v3221
        %v3263 = vmul.f32 %v3060, %v3221
        %v3264 = vmul.f32 %v3062, %v3221
        %v3265 = vmul.f32 %v2780, %v3222
        %v3266 = vmul.f32 %v2782, %v3222
        %v3267 = vmul.f32 %v3066, %v3222
        %v3268 = vmul.f32 %v3068, %v3222
        %v3269 = vmul.f32 %v2786, %v3223
        %v3270 = vmul.f32 %v2788, %v3223
        %v3271 = vmul.f32 %v3072, %v3223
        %v3272 = vmul.f32 %v3074, %v3223
        %v3273 = vmul.f32 %v2792, %v3224
        %v3274 = vmul.f32 %v2794, %v3224
        %v3275 = vmul.f32 %v3078, %v3224
        %v3276 = vmul.f32 %v3080, %v3224
        %3277 = vst [vmem:[%s333] sm:$0xff] %v3225
        %3278 = vst [vmem:[%s333 + $0x8] sm:$0xff] %v3226
        %3279 = vst [vmem:[%s333 + $0x10] sm:$0xff] %v3227
        %3280 = vst [vmem:[%s333 + $0x18] sm:$0xff] %v3228
        %3281 = vst [vmem:[%s333 + $0x20] sm:$0xff] %v3229
        %3282 = vst [vmem:[%s333 + $0x28] sm:$0xff] %v3230
        %3283 = vst [vmem:[%s333 + $0x30] sm:$0xff] %v3231
        %3284 = vst [vmem:[%s333 + $0x38] sm:$0xff] %v3232
        %3285 = vst [vmem:[%s333 + $0x40] sm:$0xff] %v3233
        %3286 = vst [vmem:[%s333 + $0x48] sm:$0xff] %v3234
        %3287 = vst [vmem:[%s333 + $0x50] sm:$0xff] %v3235
        %3288 = vst [vmem:[%s333 + $0x58] sm:$0xff] %v3236
        %3289 = vst [vmem:[%s333 + $0x60] sm:$0xff] %v3237
        %3290 = vst [vmem:[%s333 + $0x68] sm:$0xff] %v3238
        %3291 = vst [vmem:[%s333 + $0x70] sm:$0xff] %v3239
        %3292 = vst [vmem:[%s333 + $0x78] sm:$0xff] %v3240
        %3293 = vst [vmem:[%s333 + $0x80] sm:$0xff] %v3241
        %3294 = vst [vmem:[%s333 + $0x88] sm:$0xff] %v3242
        %3295 = vst [vmem:[%s333 + $0x90] sm:$0xff] %v3243
        %3296 = vst [vmem:[%s333 + $0x98] sm:$0xff] %v3244
        %3297 = vst [vmem:[%s333 + $0xa0] sm:$0xff] %v3245
        %3298 = vst [vmem:[%s333 + $0xa8] sm:$0xff] %v3246
        %3299 = vst [vmem:[%s333 + $0xb0] sm:$0xff] %v3247
        %3300 = vst [vmem:[%s333 + $0xb8] sm:$0xff] %v3248
        %3301 = vst [vmem:[%s333 + $0xc0] sm:$0xff] %v3249
        %3302 = vst [vmem:[%s333 + $0xc8] sm:$0xff] %v3250
        %3303 = vst [vmem:[%s333 + $0xd0] sm:$0xff] %v3251
        %3304 = vst [vmem:[%s333 + $0xd8] sm:$0xff] %v3252
        %3305 = vst [vmem:[%s333 + $0xe0] sm:$0xff] %v3253
        %3306 = vst [vmem:[%s333 + $0xe8] sm:$0xff] %v3254
        %3307 = vst [vmem:[%s333 + $0xf0] sm:$0xff] %v3255
        %3308 = vst [vmem:[%s333 + $0xf8] sm:$0xff] %v3256
        %3309 = vst [vmem:[%s333 + $0x100] sm:$0xff] %v3257
        %3310 = vst [vmem:[%s333 + $0x108] sm:$0xff] %v3258
        %3311 = vst [vmem:[%s333 + $0x110] sm:$0xff] %v3259
        %3312 = vst [vmem:[%s333 + $0x118] sm:$0xff] %v3260
        %3313 = vst [vmem:[%s333 + $0x120] sm:$0xff] %v3261
        %3314 = vst [vmem:[%s333 + $0x128] sm:$0xff] %v3262
        %3315 = vst [vmem:[%s333 + $0x130] sm:$0xff] %v3263
        %3316 = vst [vmem:[%s333 + $0x138] sm:$0xff] %v3264
        %3317 = vst [vmem:[%s333 + $0x140] sm:$0xff] %v3265
        %3318 = vst [vmem:[%s333 + $0x148] sm:$0xff] %v3266
        %3319 = vst [vmem:[%s333 + $0x150] sm:$0xff] %v3267
        %3320 = vst [vmem:[%s333 + $0x158] sm:$0xff] %v3268
        %3321 = vst [vmem:[%s333 + $0x160] sm:$0xff] %v3269
        %3322 = vst [vmem:[%s333 + $0x168] sm:$0xff] %v3270
        %3323 = vst [vmem:[%s333 + $0x170] sm:$0xff] %v3271
        %3324 = vst [vmem:[%s333 + $0x178] sm:$0xff] %v3272
        %3325 = vst [vmem:[%s333 + $0x180] sm:$0xff] %v3273
        %3326 = vst [vmem:[%s333 + $0x188] sm:$0xff] %v3274
        %3327 = vst [vmem:[%s333 + $0x190] sm:$0xff] %v3275
        %3328 = vst [vmem:[%s333 + $0x198] sm:$0xff] %v3276
        %s3329 = sand.u32 %s164, 1
        %s3330 = scalar_lea.sflag [#allocation4], %s3329
        %s3331 = sand.u32 %s164, 1
        %s3332 = smul.addr %s3331, 416
        %s3333 = scalar_lea.vmem [#allocation11], %s3332
        // Predicated region
        $region65: #{siamese_head.1} parent=43 // pred_check
          %p3334 = pneg %p174
        $region66: #{siamese_head.1} parent=43 // pred_check_branch
          %3336 = sbr.rel (%p3334) target = $region68
        $region67: #{siamese_head.1} parent=43 // pred_region
          %s3337 = smul.u32 13, %s25
          %s3338 = ssub.s32 25, %s3337
          %p3339 = scmp.lt.s32.totalorder %s3338, 13
          %s3340 = scalar_select %p3339, %s3338, 13
          %s3341 = smul.u32 128, %s3340
          %s3342 = smul.u32 %s3341, 4
          %s3344 = ssub.s32 6656, %s3342
          %3345 = vsyncadd %s3330, %s3344
          %p3346 = scmp.ne.s32.totalorder 0, %s3342
          %s3347 = smul.addr %s3337, 4
          %s3348 = smul.addr %s3347, 128
          %s3349 = scalar_lea.hbm %s6, %s3348
          %s3350 = smul.u32 32, %s3340
          %s3351 = sshll.u32 %s3333, 4
          %s3352 = int_to_ptr.vmem [resolvable:$true] %s3351
          %s3353 = sshll.u32 %s3350, 4
          %3357 = dma.vmem_to_hbm [thread:$0]  (%p3346), %s3352, %s3353, %s3349, %s3330, 512, 512, 32
        $region68: #{siamese_head.1} parent=43 // pred_fallthru
          _
      $region44: #{siamese_head.1} parent=5 // pred_fallthru
        _
      %p3358 = scmp.le.s32.totalorder 2, %s20
      // Predicated region
      $region69: #{siamese_head.1} parent=5 // pred_check
        %p3359 = pneg %p3358
      $region70: #{siamese_head.1} parent=5 // pred_check_branch
        %3361 = sbr.rel (%p3359) target = $region72
      $region71: #{siamese_head.1} parent=5 // pred_region
        %s3362 = ssub.s32 %s20, 2
        // Predicated region
        $region73: #{siamese_head.1} parent=71 // pred_check
          %p3363 = pneg %p180
        $region74: #{siamese_head.1} parent=71 // pred_check_branch
          %3365 = sbr.rel (%p3363) target = $region76
        $region75: #{siamese_head.1} parent=71 // pred_region
          %s3366 = sand.u32 %s165, 1
          %s3367 = scalar_lea.sflag [#allocation4], %s3366
          %s3368 = sand.u32 %s165, 1
          %s3369 = smul.addr %s3368, 416
          %s3370 = scalar_lea.vmem [#allocation11], %s3369
          %3371 = dma.done %s3367, 6656
        $region76: #{siamese_head.1} parent=71 // pred_fallthru
          _
      $region72: #{siamese_head.1} parent=5 // pred_fallthru
        _
    $region6: #{siamese_head.1} parent=1 // loop_footer
      %s24 = sadd.s32 1, %s20
    $region7: #{siamese_head.1} parent=1 // loop_footer_branch
      %19 = sbr.rel target = $region3
    $region8: #{siamese_head.1} parent=1 // loop_exit
      _
    %3372 = vsyncpa [#allocation3], 1
    %s3373 = scalar_lea.sflag [#allocation3], 1
    %3374 = vsyncpa %s3373, 1
    %3375 = vsyncpa [#allocation6], 1
    %3376 = vsyncpa [#allocation9], 1
    %3377 = vsyncpa [#allocation4], 1
    %s3378 = scalar_lea.sflag [#allocation4], 1
    %3379 = vsyncpa %s3378, 1

</llo_original>
